<compile_context>
chip_gen: v6e
topology: v6e:2x2x1
jax: 0.10.0
libtpu: 0.0.40
codegen_flags: <defaults>
</compile_context>

<pallas_src>
import functools

import jax
import jax.numpy as jnp
from jax import lax
from jax.experimental import pallas as pl
from jax.experimental.pallas import tpu as pltpu

LN_EPS = 1e-6
_NEG = -1e30          # sentinel spatial padding: acts as -inf for the max-pool path
_NEG_THRESH = -1e29   # anything below this is treated as padding by the conv path


def _vmem_capacity_bytes():
    """Physical VMEM per TensorCore (trace-time query; falls back to 128 MiB)."""
    try:
        info = pltpu.get_tpu_info()
        cap = getattr(info, "vmem_capacity_bytes", None)
        if cap:
            return int(cap)
    except Exception:
        pass
    return 128 * 1024 * 1024


def _rmc_kernel(v_ref, w_ref, b_ref, g_ref, beta_ref, o_ref, *, K, S, O, OW, TOH, C, Wgp):
    """One (batch, output-row-tile) grid step.

    v_ref:    (1, K, TOH, Wgp, S*C) row-phase views of the sentinel-padded NHWC input:
              v[0, kh, t, wg, p*C + c] == x_pad[(j*TOH + t)*S + kh, wg*S + p, c]
    w_ref:    (K*O, S*C, C) conv weight grouped per (kh, column-group offset o);
              taps with kw = o*S + p >= K carry zero weight.
    b_ref:    (1, C) conv bias;  g_ref / beta_ref: (1, C) LN gamma / beta (f32).
    o_ref:    (1, TOH, OW, C) output tile (channels on lanes).
    """
    SC = S * C
    nvalid_last = K - (O - 1) * S            # valid column-phases of the last offset o = O-1

    acc = None                               # f32 conv accumulator, (TOH, OW, C)
    mx = None                                # pool accumulator (views dtype), (TOH, OW, C)

    for kh in range(K):
        slab = v_ref[0, kh]                                       # (TOH, Wgp, SC)

        # ---- conv: full-slab MXU matmuls, C-wide shifted accumulation -------------------
        # Spatial padding (sentinel) must contribute 0 to the conv; mask only this kh slab.
        s_conv = jnp.where(slab > _NEG_THRESH, slab, 0).reshape(TOH * Wgp, SC)
        for o in range(O):
            res = jnp.dot(s_conv, w_ref[kh * O + o],
                          preferred_element_type=jnp.float32).reshape(TOH, Wgp, C)
            part = res[:, o:o + OW, :]
            acc = part if acc is None else acc + part

        # ---- max-pool: collapse the S column-phases once on the full slab (VPU), then
        #      C-wide shifted maxes.  Sentinel == -1e30 acts as -inf; the wrapper asserts
        #      every output window sees >= 1 valid pixel.
        pm = slab[:, :, 0:C]
        pm_part = pm if nvalid_last == 1 else None
        for p in range(1, S):
            pm = jnp.maximum(pm, slab[:, :, p * C:(p + 1) * C])
            if p + 1 == nvalid_last:
                pm_part = pm                  # max over the first nvalid_last phases only
        if pm_part is None:
            pm_part = pm
        for o in range(O):
            src = pm if o * S + S <= K else pm_part
            upd = src[:, o:o + OW, :]
            mx = upd if mx is None else jnp.maximum(mx, upd)

    # ---- conv bias + channel LayerNorm (two-pass variance, all f32) ---------------------
    conv = acc + b_ref[...]                                       # (TOH, OW, C)
    mean = jnp.sum(conv, axis=-1, keepdims=True) * (1.0 / C)
    cen = conv - mean
    var = jnp.sum(cen * cen, axis=-1, keepdims=True) * (1.0 / C)
    ln = cen * lax.rsqrt(var + LN_EPS) * g_ref[...] + beta_ref[...]

    o_ref[0] = (mx.astype(jnp.float32) + ln).astype(o_ref.dtype)


def residual_max_conv(x_nchw, weight, bias, gamma, beta, *, pool_kernel, pool_stride,
                      row_tile=None, matmul_dtype=jnp.bfloat16):
    """x_nchw: (B, C, H, W).  weight: (C, C, K, K) (groups=1).  Returns (B, C, OH, OW).

    matmul_dtype: dtype of the MXU operands (views + weight); bf16 (default) runs the
    v6e/v7x MXU at full rate and halves HBM/VMEM bytes.  Accumulation / LN stay f32.
    """
    B, C, H, W = x_nchw.shape
    K, S = pool_kernel, pool_stride
    pad = K // 2                                     # PyTorch-style padding = K // 2
    OH = (H + 2 * pad - K) // S + 1
    OW = (W + 2 * pad - K) // S + 1
    O = -(-K // S)                                   # ceil(K/S): column-group offsets per row
    SC = S * C
    # Every pool window must overlap >= 1 valid pixel so the sentinel never reaches the
    # output (holds for the module's pad = K//2 with odd K).
    assert K > pad and (OH - 1) * S < pad + H and (OW - 1) * S < pad + W, \
        "max-pool window entirely inside padding: sentinel would leak into the output"

    # Column groups: wide enough for the widest in-kernel slice, multiple of 8 so the
    # in-kernel (TOH, Wgp, SC) <-> (TOH*Wgp, SC) reshapes are layout-preserving.
    Wgp = max(O - 1 + OW, -(-(W + 2 * pad) // S))
    Wgp = ((Wgp + 7) // 8) * 8

    vdt = jnp.dtype(matmul_dtype)

    # ---- glue: one sentinel-padded NHWC copy + K row-phase views (no HBM im2col) --------
    x = jnp.transpose(x_nchw, (0, 2, 3, 1)).astype(vdt)                   # (B, H, W, C)
    xp = jnp.pad(x, ((0, 0), (pad, pad), (pad, Wgp * S - W - pad), (0, 0)),
                 constant_values=_NEG)                                    # (B, Hp, Wgp*S, C)
    views = jnp.stack([xp[:, kh:kh + (OH - 1) * S + 1:S] for kh in range(K)], axis=1)
    views = views.reshape(B, K, OH, Wgp, SC)

    # (Cout, Cin, K, K) -> (K*O, S*Cin, Cout); kw padded with zero weight up to O*S so the
    # padded taps contribute exactly 0 to the matmul.
    w = jnp.transpose(weight, (2, 3, 1, 0)).astype(jnp.float32)           # (K, K, Cin, Cout)
    w = jnp.pad(w, ((0, 0), (0, O * S - K), (0, 0), (0, 0)))
    w2 = w.reshape(K, O, S, C, C).reshape(K * O, SC, C).astype(vdt)
    b_r = bias.reshape(1, C).astype(jnp.float32)
    g_r = gamma.reshape(1, C).astype(jnp.float32)
    beta_r = beta.reshape(1, C).astype(jnp.float32)

    # ---- generation-aware VMEM budget + row tiling ---------------------------------------
    cap = _vmem_capacity_bytes()
    budget = int(cap * 0.75)          # ~96 MiB on 128 MiB parts, ~48 MiB on v7x's 64 MiB
    vbytes = vdt.itemsize
    obytes = jnp.dtype(x_nchw.dtype).itemsize
    w_resident = K * O * SC * C * vbytes

    def est_vmem(toh):
        in_blk = K * toh * Wgp * SC * vbytes                  # one views buffer
        out_blk = toh * OW * C * obytes
        interm = (toh * Wgp * SC * vbytes                     # per-kh conv-masked slab
                  + 2 * toh * Wgp * C * 4                     # matmul result + phase max
                  + toh * OW * C * (4 + vbytes)               # f32 acc + pool accumulator
                  + 3 * toh * OW * C * 4)                     # conv / LN temporaries
        return 2 * in_blk + 2 * out_blk + 2 * w_resident + interm

    if row_tile is not None:
        toh = max(1, min(int(row_tile), OH))
    else:
        toh = OH
        if B == 1 and OH > 1:
            toh = -(-OH // 2)         # keep >= 2 grid units for 2-TensorCore chips (v7x)
    while toh > 1 and est_vmem(toh) > budget:
        toh = -(-toh // 2)            # shrink the tile rather than clamp the VMEM limit
    NJ = -(-OH // toh)
    vmem_limit = budget

    kernel = functools.partial(_rmc_kernel, K=K, S=S, O=O, OW=OW, TOH=toh, C=C, Wgp=Wgp)
    out = pl.pallas_call(
        kernel,
        out_shape=jax.ShapeDtypeStruct((B, OH, OW, C), x_nchw.dtype),
        grid=(B, NJ),
        in_specs=[
            pl.BlockSpec((1, K, toh, Wgp, SC), lambda b, j: (b, 0, j, 0, 0)),
            pl.BlockSpec((K * O, SC, C), lambda b, j: (0, 0, 0)),   # resident weight
            pl.BlockSpec((1, C), lambda b, j: (0, 0)),
            pl.BlockSpec((1, C), lambda b, j: (0, 0)),
            pl.BlockSpec((1, C), lambda b, j: (0, 0)),
        ],
        out_specs=pl.BlockSpec((1, toh, OW, C), lambda b, j: (b, j, 0, 0)),
        compiler_params=pltpu.CompilerParams(
            dimension_semantics=("parallel", "parallel"),
            vmem_limit_bytes=vmem_limit),
        cost_estimate=pl.CostEstimate(
            flops=2 * B * K * O * OH * Wgp * SC * C,
            transcendentals=B * OH * OW,
            bytes_accessed=(B * K * OH * Wgp * SC + K * O * SC * C) * vbytes
                           + B * OH * OW * C * obytes),
    )(views, w2, b_r, g_r, beta_r)

    return jnp.transpose(out, (0, 3, 1, 2))          # (B, OH, OW, C) -> NCHW


def _reference(x_nchw, weight, bias, gamma, beta, *, pool_kernel, pool_stride):
    """Pure-JAX reference mirroring the PyTorch module (NCHW, f32)."""
    K, S = pool_kernel, pool_stride
    pad = K // 2
    conv = lax.conv_general_dilated(
        x_nchw, weight, window_strides=(S, S),
        padding=((pad, pad), (pad, pad)),
        dimension_numbers=("NCHW", "OIHW", "NCHW"),
    ) + bias[None, :, None, None]
    u = conv.mean(axis=1, keepdims=True)
    s = ((conv - u) ** 2).mean(axis=1, keepdims=True)
    ln = (conv - u) / jnp.sqrt(s + LN_EPS)
    ln = gamma[None, :, None, None] * ln + beta[None, :, None, None]
    mx = lax.reduce_window(
        x_nchw, -jnp.inf, lax.max,
        window_dimensions=(1, 1, K, K), window_strides=(1, 1, S, S),
        padding=((0, 0), (0, 0), (pad, pad), (pad, pad)),
    )
    return mx + ln


if __name__ == "__main__":
    # Small, module-consistent shapes: dim=32, pool_kernel=3, pool_stride=2, groups=1 (default).
    B, C, H, W = 2, 32, 32, 32
    K, S = 3, 2

    key = jax.random.PRNGKey(0)
    kx, kw, kb, kg, kbt = jax.random.split(key, 5)
    x = jax.random.normal(kx, (B, C, H, W), dtype=jnp.float32)
    weight = jax.random.normal(kw, (C, C, K, K), dtype=jnp.float32) * 0.1   # Conv2d(dim, dim, K)
    bias = 0.1 * jax.random.normal(kb, (C,), dtype=jnp.float32)
    gamma = 1.0 + 0.1 * jax.random.normal(kg, (C,), dtype=jnp.float32)      # LN weight
    beta = 0.1 * jax.random.normal(kbt, (C,), dtype=jnp.float32)            # LN bias

    # row_tile=8 with OH=16 -> grid=(2, 2): exercises the row-tiled / parallel-grid path.
    fn = jax.jit(functools.partial(residual_max_conv,
                                   pool_kernel=K, pool_stride=S, row_tile=8))
    out = jax.block_until_ready(fn(x, weight, bias, gamma, beta))

    pad = K // 2
    OH = (H + 2 * pad - K) // S + 1
    OW = (W + 2 * pad - K) // S + 1
    assert out.shape == (B, C, OH, OW)

    # Tight structural check: compare against a reference fed the same bf16-rounded MXU
    # operands (isolates kernel-structure error from bf16 operand quantization).
    xq = x.astype(jnp.bfloat16).astype(jnp.float32)
    wq = weight.astype(jnp.bfloat16).astype(jnp.float32)
    ref_q = _reference(xq, wq, bias, gamma, beta, pool_kernel=K, pool_stride=S)
    err_q = float(jnp.max(jnp.abs(out - ref_q)))
    assert jnp.allclose(out, ref_q, atol=3e-3, rtol=3e-3), err_q

    # Loose sanity check against the full-f32 module semantics (bf16 MXU operands in-kernel).
    ref = _reference(x, weight, bias, gamma, beta, pool_kernel=K, pool_stride=S)
    err = float(jnp.max(jnp.abs(out - ref)))
    assert jnp.allclose(out, ref, atol=2e-1, rtol=1e-1), err

    print("KERNEL_OK")
</pallas_src>

<mosaic_0001>
module attributes {stable_mosaic.version = 11 : i64} {
  func.func @_rmc_kernel(%arg0: i32, %arg1: i32, %arg2: memref<1x3x8x24x64xbf16, #tpu.memory_space<vmem>>, %arg3: memref<6x64x32xbf16, #tpu.memory_space<vmem>>, %arg4: memref<1x32xf32, #tpu.memory_space<vmem>>, %arg5: memref<1x32xf32, #tpu.memory_space<vmem>>, %arg6: memref<1x32xf32, #tpu.memory_space<vmem>>, %arg7: memref<1x8x16x32xf32, #tpu.memory_space<vmem>>) attributes {dimension_semantics = [#tpu.dimension_semantics<parallel>, #tpu.dimension_semantics<parallel>], iteration_bounds = array<i64: 2, 2>, scalar_prefetch = 0 : i64, scratch_operands = 0 : i64, tpu.core_type = #tpu.core_type<tc>, window_params = [{transform_indices = @transform_0, window_bounds = array<i64: 1, 3, 8, 24, 64>}, {pipeline_mode = #tpu.pipeline_mode<synchronous>, transform_indices = @transform_1, window_bounds = array<i64: 6, 64, 32>}, {pipeline_mode = #tpu.pipeline_mode<synchronous>, transform_indices = @transform_2, window_bounds = array<i64: 1, 32>}, {pipeline_mode = #tpu.pipeline_mode<synchronous>, transform_indices = @transform_3, window_bounds = array<i64: 1, 32>}, {pipeline_mode = #tpu.pipeline_mode<synchronous>, transform_indices = @transform_4, window_bounds = array<i64: 1, 32>}, {transform_indices = @transform_5, window_bounds = array<i64: 1, 8, 16, 32>}]} {
    %c0 = arith.constant 0 : index
    %c0_0 = arith.constant 0 : index
    %c0_1 = arith.constant 0 : index
    %c0_2 = arith.constant 0 : index
    %c0_3 = arith.constant 0 : index
    %0 = vector.load %arg2[%c0, %c0_0, %c0_1, %c0_2, %c0_3] : memref<1x3x8x24x64xbf16, #tpu.memory_space<vmem>>, vector<1x1x8x24x64xbf16>
    %1 = vector.shape_cast %0 : vector<1x1x8x24x64xbf16> to vector<8x24x64xbf16>
    %cst = arith.constant -1.002730e+29 : bf16
    %2 = vector.broadcast %cst : bf16 to vector<8x24x64xbf16>
    %3 = arith.cmpf ogt, %1, %2 : vector<8x24x64xbf16>
    %c0_i32 = arith.constant 0 : i32
    %4 = arith.sitofp %c0_i32 : i32 to bf16
    %5 = vector.broadcast %4 : bf16 to vector<8x24x64xbf16>
    %6 = arith.select %3, %1, %5 : vector<8x24x64xi1>, vector<8x24x64xbf16>
    %7 = vector.shape_cast %6 : vector<8x24x64xbf16> to vector<192x64xbf16>
    %c0_4 = arith.constant 0 : index
    %c0_5 = arith.constant 0 : index
    %c0_6 = arith.constant 0 : index
    %8 = vector.load %arg3[%c0_4, %c0_5, %c0_6] : memref<6x64x32xbf16, #tpu.memory_space<vmem>>, vector<1x64x32xbf16>
    %9 = vector.shape_cast %8 : vector<1x64x32xbf16> to vector<64x32xbf16>
    %cst_7 = arith.constant dense<0.000000e+00> : vector<192x32xf32>
    %10 = tpu.matmul %7, %9, %cst_7 {dimension_numbers = #tpu.dot_dimension_numbers<[1], [0], [0], [1], [0, 0, 1, 1], [], []>} : vector<192x64xbf16>, vector<64x32xbf16>, vector<192x32xf32> -> vector<192x32xf32>
    %11 = vector.shape_cast %10 : vector<192x32xf32> to vector<8x24x32xf32>
    %12 = vector.extract_strided_slice %11 {offsets = [0, 0, 0], sizes = [8, 16, 32], strides = [1, 1, 1]} : vector<8x24x32xf32> to vector<8x16x32xf32>
    %c1 = arith.constant 1 : index
    %c0_8 = arith.constant 0 : index
    %c0_9 = arith.constant 0 : index
    %13 = vector.load %arg3[%c1, %c0_8, %c0_9] : memref<6x64x32xbf16, #tpu.memory_space<vmem>>, vector<1x64x32xbf16>
    %14 = vector.shape_cast %13 : vector<1x64x32xbf16> to vector<64x32xbf16>
    %cst_10 = arith.constant dense<0.000000e+00> : vector<192x32xf32>
    %15 = tpu.matmul %7, %14, %cst_10 {dimension_numbers = #tpu.dot_dimension_numbers<[1], [0], [0], [1], [0, 0, 1, 1], [], []>} : vector<192x64xbf16>, vector<64x32xbf16>, vector<192x32xf32> -> vector<192x32xf32>
    %16 = vector.shape_cast %15 : vector<192x32xf32> to vector<8x24x32xf32>
    %17 = vector.extract_strided_slice %16 {offsets = [0, 1, 0], sizes = [8, 16, 32], strides = [1, 1, 1]} : vector<8x24x32xf32> to vector<8x16x32xf32>
    %18 = arith.addf %12, %17 : vector<8x16x32xf32>
    %19 = vector.extract_strided_slice %1 {offsets = [0, 0, 0], sizes = [8, 24, 32], strides = [1, 1, 1]} : vector<8x24x64xbf16> to vector<8x24x32xbf16>
    %20 = vector.extract_strided_slice %1 {offsets = [0, 0, 32], sizes = [8, 24, 32], strides = [1, 1, 1]} : vector<8x24x64xbf16> to vector<8x24x32xbf16>
    %21 = arith.maximumf %19, %20 : vector<8x24x32xbf16>
    %22 = vector.extract_strided_slice %21 {offsets = [0, 0, 0], sizes = [8, 16, 32], strides = [1, 1, 1]} : vector<8x24x32xbf16> to vector<8x16x32xbf16>
    %23 = vector.extract_strided_slice %19 {offsets = [0, 1, 0], sizes = [8, 16, 32], strides = [1, 1, 1]} : vector<8x24x32xbf16> to vector<8x16x32xbf16>
    %24 = arith.maximumf %22, %23 : vector<8x16x32xbf16>
    %c0_11 = arith.constant 0 : index
    %c1_12 = arith.constant 1 : index
    %c0_13 = arith.constant 0 : index
    %c0_14 = arith.constant 0 : index
    %c0_15 = arith.constant 0 : index
    %25 = vector.load %arg2[%c0_11, %c1_12, %c0_13, %c0_14, %c0_15] : memref<1x3x8x24x64xbf16, #tpu.memory_space<vmem>>, vector<1x1x8x24x64xbf16>
    %26 = vector.shape_cast %25 : vector<1x1x8x24x64xbf16> to vector<8x24x64xbf16>
    %cst_16 = arith.constant -1.002730e+29 : bf16
    %27 = vector.broadcast %cst_16 : bf16 to vector<8x24x64xbf16>
    %28 = arith.cmpf ogt, %26, %27 : vector<8x24x64xbf16>
    %c0_i32_17 = arith.constant 0 : i32
    %29 = arith.sitofp %c0_i32_17 : i32 to bf16
    %30 = vector.broadcast %29 : bf16 to vector<8x24x64xbf16>
    %31 = arith.select %28, %26, %30 : vector<8x24x64xi1>, vector<8x24x64xbf16>
    %32 = vector.shape_cast %31 : vector<8x24x64xbf16> to vector<192x64xbf16>
    %c2 = arith.constant 2 : index
    %c0_18 = arith.constant 0 : index
    %c0_19 = arith.constant 0 : index
    %33 = vector.load %arg3[%c2, %c0_18, %c0_19] : memref<6x64x32xbf16, #tpu.memory_space<vmem>>, vector<1x64x32xbf16>
    %34 = vector.shape_cast %33 : vector<1x64x32xbf16> to vector<64x32xbf16>
    %cst_20 = arith.constant dense<0.000000e+00> : vector<192x32xf32>
    %35 = tpu.matmul %32, %34, %cst_20 {dimension_numbers = #tpu.dot_dimension_numbers<[1], [0], [0], [1], [0, 0, 1, 1], [], []>} : vector<192x64xbf16>, vector<64x32xbf16>, vector<192x32xf32> -> vector<192x32xf32>
    %36 = vector.shape_cast %35 : vector<192x32xf32> to vector<8x24x32xf32>
    %37 = vector.extract_strided_slice %36 {offsets = [0, 0, 0], sizes = [8, 16, 32], strides = [1, 1, 1]} : vector<8x24x32xf32> to vector<8x16x32xf32>
    %38 = arith.addf %18, %37 : vector<8x16x32xf32>
    %c3 = arith.constant 3 : index
    %c0_21 = arith.constant 0 : index
    %c0_22 = arith.constant 0 : index
    %39 = vector.load %arg3[%c3, %c0_21, %c0_22] : memref<6x64x32xbf16, #tpu.memory_space<vmem>>, vector<1x64x32xbf16>
    %40 = vector.shape_cast %39 : vector<1x64x32xbf16> to vector<64x32xbf16>
    %cst_23 = arith.constant dense<0.000000e+00> : vector<192x32xf32>
    %41 = tpu.matmul %32, %40, %cst_23 {dimension_numbers = #tpu.dot_dimension_numbers<[1], [0], [0], [1], [0, 0, 1, 1], [], []>} : vector<192x64xbf16>, vector<64x32xbf16>, vector<192x32xf32> -> vector<192x32xf32>
    %42 = vector.shape_cast %41 : vector<192x32xf32> to vector<8x24x32xf32>
    %43 = vector.extract_strided_slice %42 {offsets = [0, 1, 0], sizes = [8, 16, 32], strides = [1, 1, 1]} : vector<8x24x32xf32> to vector<8x16x32xf32>
    %44 = arith.addf %38, %43 : vector<8x16x32xf32>
    %45 = vector.extract_strided_slice %26 {offsets = [0, 0, 0], sizes = [8, 24, 32], strides = [1, 1, 1]} : vector<8x24x64xbf16> to vector<8x24x32xbf16>
    %46 = vector.extract_strided_slice %26 {offsets = [0, 0, 32], sizes = [8, 24, 32], strides = [1, 1, 1]} : vector<8x24x64xbf16> to vector<8x24x32xbf16>
    %47 = arith.maximumf %45, %46 : vector<8x24x32xbf16>
    %48 = vector.extract_strided_slice %47 {offsets = [0, 0, 0], sizes = [8, 16, 32], strides = [1, 1, 1]} : vector<8x24x32xbf16> to vector<8x16x32xbf16>
    %49 = arith.maximumf %24, %48 : vector<8x16x32xbf16>
    %50 = vector.extract_strided_slice %45 {offsets = [0, 1, 0], sizes = [8, 16, 32], strides = [1, 1, 1]} : vector<8x24x32xbf16> to vector<8x16x32xbf16>
    %51 = arith.maximumf %49, %50 : vector<8x16x32xbf16>
    %c0_24 = arith.constant 0 : index
    %c2_25 = arith.constant 2 : index
    %c0_26 = arith.constant 0 : index
    %c0_27 = arith.constant 0 : index
    %c0_28 = arith.constant 0 : index
    %52 = vector.load %arg2[%c0_24, %c2_25, %c0_26, %c0_27, %c0_28] : memref<1x3x8x24x64xbf16, #tpu.memory_space<vmem>>, vector<1x1x8x24x64xbf16>
    %53 = vector.shape_cast %52 : vector<1x1x8x24x64xbf16> to vector<8x24x64xbf16>
    %cst_29 = arith.constant -1.002730e+29 : bf16
    %54 = vector.broadcast %cst_29 : bf16 to vector<8x24x64xbf16>
    %55 = arith.cmpf ogt, %53, %54 : vector<8x24x64xbf16>
    %c0_i32_30 = arith.constant 0 : i32
    %56 = arith.sitofp %c0_i32_30 : i32 to bf16
    %57 = vector.broadcast %56 : bf16 to vector<8x24x64xbf16>
    %58 = arith.select %55, %53, %57 : vector<8x24x64xi1>, vector<8x24x64xbf16>
    %59 = vector.shape_cast %58 : vector<8x24x64xbf16> to vector<192x64xbf16>
    %c4 = arith.constant 4 : index
    %c0_31 = arith.constant 0 : index
    %c0_32 = arith.constant 0 : index
    %60 = vector.load %arg3[%c4, %c0_31, %c0_32] : memref<6x64x32xbf16, #tpu.memory_space<vmem>>, vector<1x64x32xbf16>
    %61 = vector.shape_cast %60 : vector<1x64x32xbf16> to vector<64x32xbf16>
    %cst_33 = arith.constant dense<0.000000e+00> : vector<192x32xf32>
    %62 = tpu.matmul %59, %61, %cst_33 {dimension_numbers = #tpu.dot_dimension_numbers<[1], [0], [0], [1], [0, 0, 1, 1], [], []>} : vector<192x64xbf16>, vector<64x32xbf16>, vector<192x32xf32> -> vector<192x32xf32>
    %63 = vector.shape_cast %62 : vector<192x32xf32> to vector<8x24x32xf32>
    %64 = vector.extract_strided_slice %63 {offsets = [0, 0, 0], sizes = [8, 16, 32], strides = [1, 1, 1]} : vector<8x24x32xf32> to vector<8x16x32xf32>
    %65 = arith.addf %44, %64 : vector<8x16x32xf32>
    %c5 = arith.constant 5 : index
    %c0_34 = arith.constant 0 : index
    %c0_35 = arith.constant 0 : index
    %66 = vector.load %arg3[%c5, %c0_34, %c0_35] : memref<6x64x32xbf16, #tpu.memory_space<vmem>>, vector<1x64x32xbf16>
    %67 = vector.shape_cast %66 : vector<1x64x32xbf16> to vector<64x32xbf16>
    %cst_36 = arith.constant dense<0.000000e+00> : vector<192x32xf32>
    %68 = tpu.matmul %59, %67, %cst_36 {dimension_numbers = #tpu.dot_dimension_numbers<[1], [0], [0], [1], [0, 0, 1, 1], [], []>} : vector<192x64xbf16>, vector<64x32xbf16>, vector<192x32xf32> -> vector<192x32xf32>
    %69 = vector.shape_cast %68 : vector<192x32xf32> to vector<8x24x32xf32>
    %70 = vector.extract_strided_slice %69 {offsets = [0, 1, 0], sizes = [8, 16, 32], strides = [1, 1, 1]} : vector<8x24x32xf32> to vector<8x16x32xf32>
    %71 = arith.addf %65, %70 : vector<8x16x32xf32>
    %72 = vector.extract_strided_slice %53 {offsets = [0, 0, 0], sizes = [8, 24, 32], strides = [1, 1, 1]} : vector<8x24x64xbf16> to vector<8x24x32xbf16>
    %73 = vector.extract_strided_slice %53 {offsets = [0, 0, 32], sizes = [8, 24, 32], strides = [1, 1, 1]} : vector<8x24x64xbf16> to vector<8x24x32xbf16>
    %74 = arith.maximumf %72, %73 : vector<8x24x32xbf16>
    %75 = vector.extract_strided_slice %74 {offsets = [0, 0, 0], sizes = [8, 16, 32], strides = [1, 1, 1]} : vector<8x24x32xbf16> to vector<8x16x32xbf16>
    %76 = arith.maximumf %51, %75 : vector<8x16x32xbf16>
    %77 = vector.extract_strided_slice %72 {offsets = [0, 1, 0], sizes = [8, 16, 32], strides = [1, 1, 1]} : vector<8x24x32xbf16> to vector<8x16x32xbf16>
    %78 = arith.maximumf %76, %77 : vector<8x16x32xbf16>
    %c0_37 = arith.constant 0 : index
    %c0_38 = arith.constant 0 : index
    %79 = vector.load %arg4[%c0_37, %c0_38] : memref<1x32xf32, #tpu.memory_space<vmem>>, vector<1x32xf32>
    %80 = vector.shape_cast %79 : vector<1x32xf32> to vector<1x1x32xf32>
    %81 = vector.broadcast %80 : vector<1x1x32xf32> to vector<8x16x32xf32>
    %82 = arith.addf %71, %81 : vector<8x16x32xf32>
    %cst_39 = arith.constant dense<0.000000e+00> : vector<8x16xf32>
    %83 = vector.multi_reduction <add>, %82, %cst_39 [2] : vector<8x16x32xf32> to vector<8x16xf32>
    %84 = vector.shape_cast %83 : vector<8x16xf32> to vector<8x16x1xf32>
    %cst_40 = arith.constant 3.125000e-02 : f32
    %85 = vector.broadcast %cst_40 : f32 to vector<8x16x1xf32>
    %86 = arith.mulf %84, %85 : vector<8x16x1xf32>
    %87 = vector.broadcast %86 : vector<8x16x1xf32> to vector<8x16x32xf32>
    %88 = arith.subf %82, %87 : vector<8x16x32xf32>
    %89 = arith.mulf %88, %88 : vector<8x16x32xf32>
    %cst_41 = arith.constant dense<0.000000e+00> : vector<8x16xf32>
    %90 = vector.multi_reduction <add>, %89, %cst_41 [2] : vector<8x16x32xf32> to vector<8x16xf32>
    %91 = vector.shape_cast %90 : vector<8x16xf32> to vector<8x16x1xf32>
    %cst_42 = arith.constant 3.125000e-02 : f32
    %92 = vector.broadcast %cst_42 : f32 to vector<8x16x1xf32>
    %93 = arith.mulf %91, %92 : vector<8x16x1xf32>
    %cst_43 = arith.constant 9.99999997E-7 : f32
    %94 = vector.broadcast %cst_43 : f32 to vector<8x16x1xf32>
    %95 = arith.addf %93, %94 : vector<8x16x1xf32>
    %96 = math.rsqrt %95 : vector<8x16x1xf32>
    %97 = vector.broadcast %96 : vector<8x16x1xf32> to vector<8x16x32xf32>
    %98 = arith.mulf %88, %97 : vector<8x16x32xf32>
    %c0_44 = arith.constant 0 : index
    %c0_45 = arith.constant 0 : index
    %99 = vector.load %arg5[%c0_44, %c0_45] : memref<1x32xf32, #tpu.memory_space<vmem>>, vector<1x32xf32>
    %100 = vector.shape_cast %99 : vector<1x32xf32> to vector<1x1x32xf32>
    %101 = vector.broadcast %100 : vector<1x1x32xf32> to vector<8x16x32xf32>
    %102 = arith.mulf %98, %101 : vector<8x16x32xf32>
    %c0_46 = arith.constant 0 : index
    %c0_47 = arith.constant 0 : index
    %103 = vector.load %arg6[%c0_46, %c0_47] : memref<1x32xf32, #tpu.memory_space<vmem>>, vector<1x32xf32>
    %104 = vector.shape_cast %103 : vector<1x32xf32> to vector<1x1x32xf32>
    %105 = vector.broadcast %104 : vector<1x1x32xf32> to vector<8x16x32xf32>
    %106 = arith.addf %102, %105 : vector<8x16x32xf32>
    %107 = arith.extf %78 : vector<8x16x32xbf16> to vector<8x16x32xf32>
    %108 = arith.addf %107, %106 : vector<8x16x32xf32>
    %c0_48 = arith.constant 0 : index
    %c0_49 = arith.constant 0 : index
    %c0_50 = arith.constant 0 : index
    %c0_51 = arith.constant 0 : index
    %109 = vector.load %arg7[%c0_48, %c0_49, %c0_50, %c0_51] : memref<1x8x16x32xf32, #tpu.memory_space<vmem>>, vector<1x8x16x32xf32>
    %110 = vector.shape_cast %109 : vector<1x8x16x32xf32> to vector<8x16x32xf32>
    %111 = vector.shape_cast %108 : vector<8x16x32xf32> to vector<1x8x16x32xf32>
    tpu.vector_store %arg7[%c0_48, %c0_49, %c0_50, %c0_51], %111 {strides = array<i32>} : memref<1x8x16x32xf32, #tpu.memory_space<vmem>>, vector<1x8x16x32xf32>,
    return
  }
  func.func @transform_0(%arg0: i32, %arg1: i32) -> (i32, i32, i32, i32, i32) {
    %c0_i32 = arith.constant 0 : i32
    %c0_i32_0 = arith.constant 0 : i32
    %c0_i32_1 = arith.constant 0 : i32
    %c0_i32_2 = arith.constant 0 : i32
    return %arg0, %c0_i32, %arg1, %c0_i32_0, %c0_i32_1 : i32, i32, i32, i32, i32
  }
  func.func @transform_1(%arg0: i32, %arg1: i32) -> (i32, i32, i32) {
    %c0_i32 = arith.constant 0 : i32
    %c0_i32_0 = arith.constant 0 : i32
    %c0_i32_1 = arith.constant 0 : i32
    %c0_i32_2 = arith.constant 0 : i32
    return %c0_i32, %c0_i32_0, %c0_i32_1 : i32, i32, i32
  }
  func.func @transform_2(%arg0: i32, %arg1: i32) -> (i32, i32) {
    %c0_i32 = arith.constant 0 : i32
    %c0_i32_0 = arith.constant 0 : i32
    %c0_i32_1 = arith.constant 0 : i32
    return %c0_i32, %c0_i32_0 : i32, i32
  }
  func.func @transform_3(%arg0: i32, %arg1: i32) -> (i32, i32) {
    %c0_i32 = arith.constant 0 : i32
    %c0_i32_0 = arith.constant 0 : i32
    %c0_i32_1 = arith.constant 0 : i32
    return %c0_i32, %c0_i32_0 : i32, i32
  }
  func.func @transform_4(%arg0: i32, %arg1: i32) -> (i32, i32) {
    %c0_i32 = arith.constant 0 : i32
    %c0_i32_0 = arith.constant 0 : i32
    %c0_i32_1 = arith.constant 0 : i32
    return %c0_i32, %c0_i32_0 : i32, i32
  }
  func.func @transform_5(%arg0: i32, %arg1: i32) -> (i32, i32, i32, i32) {
    %c0_i32 = arith.constant 0 : i32
    %c0_i32_0 = arith.constant 0 : i32
    %c0_i32_1 = arith.constant 0 : i32
    return %arg0, %arg1, %c0_i32, %c0_i32_0 : i32, i32, i32, i32
  }
}

</mosaic_0001>

<llo_original>
// kernel: residual_max_conv.1
$region0: #{residual_max_conv.1}
  #allocation0 [shape = 'u32[]', space=smem, size = 0x4, offset = 0x4, fixed_abs, tag = 'smem constant byte address 0x4 - core index']
  #allocation1 [shape = 'u32[144,128]{1,0:T(1,128)}', space=vmem, size = 0x12000, scoped, tag = 'internal scratch']
  %s0 = inlined_call_operand.vmem [shape: bf16[2,3,16,24,64], index: 0, kind: input, shape index: {}]
  %s1 = inlined_call_operand.vmem [shape: bf16[6,64,32], index: 1, kind: input, shape index: {}]
  %s2 = inlined_call_operand.vmem [shape: f32[1,32], index: 2, kind: input, shape index: {}]
  %s3 = inlined_call_operand.vmem [shape: f32[1,32], index: 3, kind: input, shape index: {}]
  %s4 = inlined_call_operand.vmem [shape: f32[1,32], index: 4, kind: input, shape index: {}]
  %s5 = inlined_call_operand.hbm [shape: f32[2,16,16,32], index: 5, kind: output, shape index: {}]
  %s6 = sld [smem:[#allocation0]]
  $region94: #{residual_max_conv.1} parent=0
    _
  %s8 = ssub.s32 1, %s6
  %s9 = scalar_select 0, %s8, %s6
  $region1: #{residual_max_conv.1} parent=0
    #allocation2 [shape = 'u8[294912]{0}', space=vmem, size = 0x48000, scoped, tag = 'input window, operand 0']
    #allocation3 [shape = 'u8[131072]{0}', space=vmem, size = 0x20000, scoped, tag = 'output window, operand 0']
    #allocation4 [shape = 's32[2]{0}', space=sflag, size = 0x8, scoped, tag = 'scoped memory for residual_max_conv.1']
    %10 = vsyncpa [#allocation4], 0
    %s11 = scalar_lea.sflag [#allocation4], 1
    %12 = vsyncpa %s11, 0
    loop: start=0, step=1, limit=6
    $region2: #{residual_max_conv.1} parent=1 // loop_pre_header
      _
    $region3: #{residual_max_conv.1} parent=1 // loop_header
      %s14 = sphi 0, %s18
      %p15 = scmp.ge.s32.totalorder %s14, 6
      %s21 = sphi 0, %s33
      %s22 = sphi 0, %s29
      %s23 = sphi 0, %s21
      %s24 = sphi 0, %s22
      %s25 = sphi 0, %s23
      %s26 = sphi 0, %s24
      %s38 = sphi 0, %s40
      %s41 = sphi 0, %s38
      %s42 = sphi 0, %s41
      %s58 = sphi 0, %s42
      %s62 = sphi 0, %s62
      %s64 = sphi 0, %s62
      %s65 = sphi 0, %s64
      %s79 = sphi 0, %s65
      %s83 = sphi 0, %s83
      %s85 = sphi 0, %s83
      %s86 = sphi 0, %s85
      %s100 = sphi 0, %s86
      %s104 = sphi 0, %s104
      %s106 = sphi 0, %s104
      %s107 = sphi 0, %s106
      %s121 = sphi 0, %s107
      %s125 = sphi 0, %s125
      %s127 = sphi 0, %s125
      %s128 = sphi 0, %s127
      %s142 = sphi 0, %s128
      %s150 = sphi 0, %s152
      %s153 = sphi 0, %s150
      %s154 = sphi 0, %s153
      %s170 = sphi 0, %s154
    $region4: #{residual_max_conv.1} parent=1 // loop_header_branch
      %17 = sbr.rel (%p15) target = $region8
    $region5: #{residual_max_conv.1} parent=1 // loop_body
      %s19 = ssub.s32 %s14, 1
      %s20 = ssub.s32 %s14, 2
      %s27 = sadd.s32 1, %s22
      %p28 = scmp.ge.s32.totalorder %s27, 2
      %s29 = scalar_select %p28, 0, %s27
      %s30 = sadd.s32 1, %s21
      %s31 = scalar_select %p28, %s30, %s21
      %p32 = scmp.ge.s32.totalorder %s31, 2
      %s33 = scalar_select %p32, 0, %s31
      %s34 = ssub.s32 %s21, %s33
      %s35 = ssub.s32 %s22, %s29
      %s36 = sor.u32 %s34, %s35
      %p37 = scmp.eq.s32.totalorder %s36, 0
      %s39 = sadd.s32 %s38, 1
      %s40 = scalar_select %p37, %s38, %s39
      %p43 = pneg %p37
      %p44 = scmp.eq.s32.totalorder %s14, 3
      %p45 = por %p43, %p44
      %p46 = scmp.ne.s32.totalorder %s38, %s41
      %p47 = scmp.eq.s32.totalorder %s14, 0
      %p48 = por %p46, %p47
      %p49 = scmp.ne.s32.totalorder %s38, %s41
      %p50 = scmp.eq.s32.totalorder %s19, 3
      %p51 = por %p49, %p50
      %p52 = scmp.ne.s32.totalorder %s41, %s42
      %p53 = scmp.eq.s32.totalorder %s19, 0
      %p54 = por %p52, %p53
      %p55 = scmp.ne.s32.totalorder %s41, %s42
      %p56 = scmp.eq.s32.totalorder %s20, 3
      %p57 = por %p55, %p56
      %p59 = scmp.ne.s32.totalorder %s42, %s58
      %p60 = scmp.eq.s32.totalorder %s20, 0
      %p61 = por %p59, %p60
      %s63 = sadd.s32 %s62, 1
      %p66 = scmp.eq.s32.totalorder %s14, 3
      %p67 = scmp.ne.s32.totalorder %s62, %s64
      %p68 = scmp.eq.s32.totalorder %s14, 0
      %p69 = por %p67, %p68
      %p70 = scmp.ne.s32.totalorder %s62, %s64
      %p71 = scmp.eq.s32.totalorder %s19, 3
      %p72 = por %p70, %p71
      %p73 = scmp.ne.s32.totalorder %s64, %s65
      %p74 = scmp.eq.s32.totalorder %s19, 0
      %p75 = por %p73, %p74
      %p76 = scmp.ne.s32.totalorder %s64, %s65
      %p77 = scmp.eq.s32.totalorder %s20, 3
      %p78 = por %p76, %p77
      %p80 = scmp.ne.s32.totalorder %s65, %s79
      %p81 = scmp.eq.s32.totalorder %s20, 0
      %p82 = por %p80, %p81
      %s84 = sadd.s32 %s83, 1
      %p87 = scmp.eq.s32.totalorder %s14, 3
      %p88 = scmp.ne.s32.totalorder %s83, %s85
      %p89 = scmp.eq.s32.totalorder %s14, 0
      %p90 = por %p88, %p89
      %p91 = scmp.ne.s32.totalorder %s83, %s85
      %p92 = scmp.eq.s32.totalorder %s19, 3
      %p93 = por %p91, %p92
      %p94 = scmp.ne.s32.totalorder %s85, %s86
      %p95 = scmp.eq.s32.totalorder %s19, 0
      %p96 = por %p94, %p95
      %p97 = scmp.ne.s32.totalorder %s85, %s86
      %p98 = scmp.eq.s32.totalorder %s20, 3
      %p99 = por %p97, %p98
      %p101 = scmp.ne.s32.totalorder %s86, %s100
      %p102 = scmp.eq.s32.totalorder %s20, 0
      %p103 = por %p101, %p102
      %s105 = sadd.s32 %s104, 1
      %p108 = scmp.eq.s32.totalorder %s14, 3
      %p109 = scmp.ne.s32.totalorder %s104, %s106
      %p110 = scmp.eq.s32.totalorder %s14, 0
      %p111 = por %p109, %p110
      %p112 = scmp.ne.s32.totalorder %s104, %s106
      %p113 = scmp.eq.s32.totalorder %s19, 3
      %p114 = por %p112, %p113
      %p115 = scmp.ne.s32.totalorder %s106, %s107
      %p116 = scmp.eq.s32.totalorder %s19, 0
      %p117 = por %p115, %p116
      %p118 = scmp.ne.s32.totalorder %s106, %s107
      %p119 = scmp.eq.s32.totalorder %s20, 3
      %p120 = por %p118, %p119
      %p122 = scmp.ne.s32.totalorder %s107, %s121
      %p123 = scmp.eq.s32.totalorder %s20, 0
      %p124 = por %p122, %p123
      %s126 = sadd.s32 %s125, 1
      %p129 = scmp.eq.s32.totalorder %s14, 3
      %p130 = scmp.ne.s32.totalorder %s125, %s127
      %p131 = scmp.eq.s32.totalorder %s14, 0
      %p132 = por %p130, %p131
      %p133 = scmp.ne.s32.totalorder %s125, %s127
      %p134 = scmp.eq.s32.totalorder %s19, 3
      %p135 = por %p133, %p134
      %p136 = scmp.ne.s32.totalorder %s127, %s128
      %p137 = scmp.eq.s32.totalorder %s19, 0
      %p138 = por %p136, %p137
      %p139 = scmp.ne.s32.totalorder %s127, %s128
      %p140 = scmp.eq.s32.totalorder %s20, 3
      %p141 = por %p139, %p140
      %p143 = scmp.ne.s32.totalorder %s128, %s142
      %p144 = scmp.eq.s32.totalorder %s20, 0
      %p145 = por %p143, %p144
      %s146 = ssub.s32 %s21, %s33
      %s147 = ssub.s32 %s22, %s29
      %s148 = sor.u32 %s146, %s147
      %p149 = scmp.eq.s32.totalorder %s148, 0
      %s151 = sadd.s32 %s150, 1
      %s152 = scalar_select %p149, %s150, %s151
      %p155 = pneg %p149
      %p156 = scmp.eq.s32.totalorder %s14, 3
      %p157 = por %p155, %p156
      %p158 = scmp.ne.s32.totalorder %s150, %s153
      %p159 = scmp.eq.s32.totalorder %s14, 0
      %p160 = por %p158, %p159
      %p161 = scmp.ne.s32.totalorder %s150, %s153
      %p162 = scmp.eq.s32.totalorder %s19, 3
      %p163 = por %p161, %p162
      %p164 = scmp.ne.s32.totalorder %s153, %s154
      %p165 = scmp.eq.s32.totalorder %s19, 0
      %p166 = por %p164, %p165
      %p167 = scmp.ne.s32.totalorder %s153, %s154
      %p168 = scmp.eq.s32.totalorder %s20, 3
      %p169 = por %p167, %p168
      %p171 = scmp.ne.s32.totalorder %s154, %s170
      %p172 = scmp.eq.s32.totalorder %s20, 0
      %p173 = por %p171, %p172
      %p174 = scmp.le.s32.totalorder 1, %s14
      %p175 = scmp.lt.s32.totalorder %s14, 5
      %p176 = pnand %p174, %p175
      %p177 = pneg %p176
      // Predicated region
      $region9: #{residual_max_conv.1} parent=5 // pred_check
        _
      $region10: #{residual_max_conv.1} parent=5 // pred_check_branch
        %179 = sbr.rel (%p176) target = $region12
      $region11: #{residual_max_conv.1} parent=5 // pred_region
        %s180 = ssub.s32 %s14, 1
        // Predicated region
        $region13: #{residual_max_conv.1} parent=11 // pred_check
          %p181 = pneg %p75
        $region14: #{residual_max_conv.1} parent=11 // pred_check_branch
          %183 = sbr.rel (%p181) target = $region16
        $region15: #{residual_max_conv.1} parent=11 // pred_region
          _
        $region16: #{residual_max_conv.1} parent=11 // pred_fallthru
          _
        // Predicated region
        $region17: #{residual_max_conv.1} parent=11 // pred_check
          %p184 = pneg %p96
        $region18: #{residual_max_conv.1} parent=11 // pred_check_branch
          %186 = sbr.rel (%p184) target = $region20
        $region19: #{residual_max_conv.1} parent=11 // pred_region
          _
        $region20: #{residual_max_conv.1} parent=11 // pred_fallthru
          _
        // Predicated region
        $region21: #{residual_max_conv.1} parent=11 // pred_check
          %p187 = pneg %p117
        $region22: #{residual_max_conv.1} parent=11 // pred_check_branch
          %189 = sbr.rel (%p187) target = $region24
        $region23: #{residual_max_conv.1} parent=11 // pred_region
          _
        $region24: #{residual_max_conv.1} parent=11 // pred_fallthru
          _
        // Predicated region
        $region25: #{residual_max_conv.1} parent=11 // pred_check
          %p190 = pneg %p138
        $region26: #{residual_max_conv.1} parent=11 // pred_check_branch
          %192 = sbr.rel (%p190) target = $region28
        $region27: #{residual_max_conv.1} parent=11 // pred_region
          _
        $region28: #{residual_max_conv.1} parent=11 // pred_fallthru
          _
      $region12: #{residual_max_conv.1} parent=5 // pred_fallthru
        _
      %p193 = scmp.lt.s32.totalorder %s14, 4
      // Predicated region
      $region29: #{residual_max_conv.1} parent=5 // pred_check
        %p194 = pneg %p193
      $region30: #{residual_max_conv.1} parent=5 // pred_check_branch
        %196 = sbr.rel (%p194) target = $region32
      $region31: #{residual_max_conv.1} parent=5 // pred_region
        // Predicated region
        $region33: #{residual_max_conv.1} parent=31 // pred_check
          %p197 = pneg %p48
        $region34: #{residual_max_conv.1} parent=31 // pred_check_branch
          %199 = sbr.rel (%p197) target = $region36
        $region35: #{residual_max_conv.1} parent=31 // pred_region
          %s200 = sand.u32 %s38, 1
          %s201 = sand.u32 %s38, 1
          %s202 = smul.addr %s201, 288
          %s203 = scalar_lea.vmem [#allocation2], %s202
          %s204 = smul.u32 8, %s22
          %s205 = smul.addr %s204, 3
          %s206 = smul.addr %s21, 144
          %s207 = sadd.s32 %s205, %s206
          %s208 = smul.addr %s207, 4
          %s209 = scalar_lea.vmem %s0, %s208
          // Predicated region
          $region37: #{residual_max_conv.1} parent=35 // pred_check
            _
          $region38: #{residual_max_conv.1} parent=35 // pred_check_branch
            %211 = sbr.rel (0) target = $region40
          $region39: #{residual_max_conv.1} parent=35 // pred_region
            // Predicated region
            $region41: #{residual_max_conv.1} parent=39 // pred_check
              _
            $region42: #{residual_max_conv.1} parent=39 // pred_check_branch
              %213 = sbr.rel target = $region44
            $region43: #{residual_max_conv.1} parent=39 // pred_region
              // Predicated region
              $region56: #{residual_max_conv.1} parent=43 // pred_check
                _
              $region57: #{residual_max_conv.1} parent=43 // pred_check_branch
                %371 = sbr.rel (0) target = $region59
              $region58: #{residual_max_conv.1} parent=43 // pred_region
                loop: start=0, step=1, limit=1
                $region60: #{residual_max_conv.1} parent=58 // loop_pre_header
                  _
                $region61: #{residual_max_conv.1} parent=58 // loop_header
                  %s373 = sphi 0, %s377
                  %p374 = scmp.ge.s32.totalorder %s373, 1
                  %s378 = sphi %s209, %s209
                  %s379 = sphi %s203, %s203
                $region62: #{residual_max_conv.1} parent=58 // loop_header_branch
                  %376 = sbr.rel (%p374) target = $region66
                $region63: #{residual_max_conv.1} parent=58 // loop_body
                  _
                $region64: #{residual_max_conv.1} parent=58 // loop_footer
                  %s377 = sadd.s32 1, %s373
                $region65: #{residual_max_conv.1} parent=58 // loop_footer_branch
                  %372 = sbr.rel target = $region61
                $region66: #{residual_max_conv.1} parent=58 // loop_exit
                  _
                %s381 = ssub.s32 16, 1
                loop: start=0, step=1, limit=1
                $region67: #{residual_max_conv.1} parent=58 // loop_pre_header
                  _
                $region68: #{residual_max_conv.1} parent=58 // loop_header
                  %s383 = sphi 0, %s387
                  %p384 = scmp.ge.s32.totalorder %s383, 1
                  %s388 = sphi %s209, %s209
                  %s389 = sphi %s203, %s203
                $region69: #{residual_max_conv.1} parent=58 // loop_header_branch
                  %386 = sbr.rel (%p384) target = $region73
                $region70: #{residual_max_conv.1} parent=58 // loop_body
                  %v390 = vld [vmem:[%s388] sm:%s381]
                  %391 = vst [vmem:[%s389] sm:%s381] %v390
                  %v392 = vld [vmem:[%s388 + $0x4] sm:%s381]
                  %393 = vst [vmem:[%s389 + $0x4] sm:%s381] %v392
                  %v394 = vld [vmem:[%s388 + $0x8] sm:%s381]
                  %395 = vst [vmem:[%s389 + $0x8] sm:%s381] %v394
                  %v396 = vld [vmem:[%s388 + $0xc] sm:%s381]
                  %397 = vst [vmem:[%s389 + $0xc] sm:%s381] %v396
                  %v398 = vld [vmem:[%s388 + $0x10] sm:%s381]
                  %399 = vst [vmem:[%s389 + $0x10] sm:%s381] %v398
                  %v400 = vld [vmem:[%s388 + $0x14] sm:%s381]
                  %401 = vst [vmem:[%s389 + $0x14] sm:%s381] %v400
                  %v402 = vld [vmem:[%s388 + $0x18] sm:%s381]
                  %403 = vst [vmem:[%s389 + $0x18] sm:%s381] %v402
                  %v404 = vld [vmem:[%s388 + $0x1c] sm:%s381]
                  %405 = vst [vmem:[%s389 + $0x1c] sm:%s381] %v404
                  %v406 = vld [vmem:[%s388 + $0x20] sm:%s381]
                  %407 = vst [vmem:[%s389 + $0x20] sm:%s381] %v406
                  %v408 = vld [vmem:[%s388 + $0x24] sm:%s381]
                  %409 = vst [vmem:[%s389 + $0x24] sm:%s381] %v408
                  %v410 = vld [vmem:[%s388 + $0x28] sm:%s381]
                  %411 = vst [vmem:[%s389 + $0x28] sm:%s381] %v410
                  %v412 = vld [vmem:[%s388 + $0x2c] sm:%s381]
                  %413 = vst [vmem:[%s389 + $0x2c] sm:%s381] %v412
                  %v414 = vld [vmem:[%s388 + $0x30] sm:%s381]
                  %415 = vst [vmem:[%s389 + $0x30] sm:%s381] %v414
                  %v416 = vld [vmem:[%s388 + $0x34] sm:%s381]
                  %417 = vst [vmem:[%s389 + $0x34] sm:%s381] %v416
                  %v418 = vld [vmem:[%s388 + $0x38] sm:%s381]
                  %419 = vst [vmem:[%s389 + $0x38] sm:%s381] %v418
                  %v420 = vld [vmem:[%s388 + $0x3c] sm:%s381]
                  %421 = vst [vmem:[%s389 + $0x3c] sm:%s381] %v420
                  %v422 = vld [vmem:[%s388 + $0x40] sm:%s381]
                  %423 = vst [vmem:[%s389 + $0x40] sm:%s381] %v422
                  %v424 = vld [vmem:[%s388 + $0x44] sm:%s381]
                  %425 = vst [vmem:[%s389 + $0x44] sm:%s381] %v424
                  %v426 = vld [vmem:[%s388 + $0x48] sm:%s381]
                  %427 = vst [vmem:[%s389 + $0x48] sm:%s381] %v426
                  %v428 = vld [vmem:[%s388 + $0x4c] sm:%s381]
                  %429 = vst [vmem:[%s389 + $0x4c] sm:%s381] %v428
                  %v430 = vld [vmem:[%s388 + $0x50] sm:%s381]
                  %431 = vst [vmem:[%s389 + $0x50] sm:%s381] %v430
                  %v432 = vld [vmem:[%s388 + $0x54] sm:%s381]
                  %433 = vst [vmem:[%s389 + $0x54] sm:%s381] %v432
                  %v434 = vld [vmem:[%s388 + $0x58] sm:%s381]
                  %435 = vst [vmem:[%s389 + $0x58] sm:%s381] %v434
                  %v436 = vld [vmem:[%s388 + $0x5c] sm:%s381]
                  %437 = vst [vmem:[%s389 + $0x5c] sm:%s381] %v436
                  %v438 = vld [vmem:[%s388 + $0xc0] sm:%s381]
                  %439 = vst [vmem:[%s389 + $0x60] sm:%s381] %v438
                  %v440 = vld [vmem:[%s388 + $0xc4] sm:%s381]
                  %441 = vst [vmem:[%s389 + $0x64] sm:%s381] %v440
                  %v442 = vld [vmem:[%s388 + $0xc8] sm:%s381]
                  %443 = vst [vmem:[%s389 + $0x68] sm:%s381] %v442
                  %v444 = vld [vmem:[%s388 + $0xcc] sm:%s381]
                  %445 = vst [vmem:[%s389 + $0x6c] sm:%s381] %v444
                  %v446 = vld [vmem:[%s388 + $0xd0] sm:%s381]
                  %447 = vst [vmem:[%s389 + $0x70] sm:%s381] %v446
                  %v448 = vld [vmem:[%s388 + $0xd4] sm:%s381]
                  %449 = vst [vmem:[%s389 + $0x74] sm:%s381] %v448
                  %v450 = vld [vmem:[%s388 + $0xd8] sm:%s381]
                  %451 = vst [vmem:[%s389 + $0x78] sm:%s381] %v450
                  %v452 = vld [vmem:[%s388 + $0xdc] sm:%s381]
                  %453 = vst [vmem:[%s389 + $0x7c] sm:%s381] %v452
                  %v454 = vld [vmem:[%s388 + $0xe0] sm:%s381]
                  %455 = vst [vmem:[%s389 + $0x80] sm:%s381] %v454
                  %v456 = vld [vmem:[%s388 + $0xe4] sm:%s381]
                  %457 = vst [vmem:[%s389 + $0x84] sm:%s381] %v456
                  %v458 = vld [vmem:[%s388 + $0xe8] sm:%s381]
                  %459 = vst [vmem:[%s389 + $0x88] sm:%s381] %v458
                  %v460 = vld [vmem:[%s388 + $0xec] sm:%s381]
                  %461 = vst [vmem:[%s389 + $0x8c] sm:%s381] %v460
                  %v462 = vld [vmem:[%s388 + $0xf0] sm:%s381]
                  %463 = vst [vmem:[%s389 + $0x90] sm:%s381] %v462
                  %v464 = vld [vmem:[%s388 + $0xf4] sm:%s381]
                  %465 = vst [vmem:[%s389 + $0x94] sm:%s381] %v464
                  %v466 = vld [vmem:[%s388 + $0xf8] sm:%s381]
                  %467 = vst [vmem:[%s389 + $0x98] sm:%s381] %v466
                  %v468 = vld [vmem:[%s388 + $0xfc] sm:%s381]
                  %469 = vst [vmem:[%s389 + $0x9c] sm:%s381] %v468
                  %v470 = vld [vmem:[%s388 + $0x100] sm:%s381]
                  %471 = vst [vmem:[%s389 + $0xa0] sm:%s381] %v470
                  %v472 = vld [vmem:[%s388 + $0x104] sm:%s381]
                  %473 = vst [vmem:[%s389 + $0xa4] sm:%s381] %v472
                  %v474 = vld [vmem:[%s388 + $0x108] sm:%s381]
                  %475 = vst [vmem:[%s389 + $0xa8] sm:%s381] %v474
                  %v476 = vld [vmem:[%s388 + $0x10c] sm:%s381]
                  %477 = vst [vmem:[%s389 + $0xac] sm:%s381] %v476
                  %v478 = vld [vmem:[%s388 + $0x110] sm:%s381]
                  %479 = vst [vmem:[%s389 + $0xb0] sm:%s381] %v478
                  %v480 = vld [vmem:[%s388 + $0x114] sm:%s381]
                  %481 = vst [vmem:[%s389 + $0xb4] sm:%s381] %v480
                  %v482 = vld [vmem:[%s388 + $0x118] sm:%s381]
                  %483 = vst [vmem:[%s389 + $0xb8] sm:%s381] %v482
                  %v484 = vld [vmem:[%s388 + $0x11c] sm:%s381]
                  %485 = vst [vmem:[%s389 + $0xbc] sm:%s381] %v484
                  %v486 = vld [vmem:[%s388 + $0x180] sm:%s381]
                  %487 = vst [vmem:[%s389 + $0xc0] sm:%s381] %v486
                  %v488 = vld [vmem:[%s388 + $0x184] sm:%s381]
                  %489 = vst [vmem:[%s389 + $0xc4] sm:%s381] %v488
                  %v490 = vld [vmem:[%s388 + $0x188] sm:%s381]
                  %491 = vst [vmem:[%s389 + $0xc8] sm:%s381] %v490
                  %v492 = vld [vmem:[%s388 + $0x18c] sm:%s381]
                  %493 = vst [vmem:[%s389 + $0xcc] sm:%s381] %v492
                  %v494 = vld [vmem:[%s388 + $0x190] sm:%s381]
                  %495 = vst [vmem:[%s389 + $0xd0] sm:%s381] %v494
                  %v496 = vld [vmem:[%s388 + $0x194] sm:%s381]
                  %497 = vst [vmem:[%s389 + $0xd4] sm:%s381] %v496
                  %v498 = vld [vmem:[%s388 + $0x198] sm:%s381]
                  %499 = vst [vmem:[%s389 + $0xd8] sm:%s381] %v498
                  %v500 = vld [vmem:[%s388 + $0x19c] sm:%s381]
                  %501 = vst [vmem:[%s389 + $0xdc] sm:%s381] %v500
                  %v502 = vld [vmem:[%s388 + $0x1a0] sm:%s381]
                  %503 = vst [vmem:[%s389 + $0xe0] sm:%s381] %v502
                  %v504 = vld [vmem:[%s388 + $0x1a4] sm:%s381]
                  %505 = vst [vmem:[%s389 + $0xe4] sm:%s381] %v504
                  %v506 = vld [vmem:[%s388 + $0x1a8] sm:%s381]
                  %507 = vst [vmem:[%s389 + $0xe8] sm:%s381] %v506
                  %v508 = vld [vmem:[%s388 + $0x1ac] sm:%s381]
                  %509 = vst [vmem:[%s389 + $0xec] sm:%s381] %v508
                  %v510 = vld [vmem:[%s388 + $0x1b0] sm:%s381]
                  %511 = vst [vmem:[%s389 + $0xf0] sm:%s381] %v510
                  %v512 = vld [vmem:[%s388 + $0x1b4] sm:%s381]
                  %513 = vst [vmem:[%s389 + $0xf4] sm:%s381] %v512
                  %v514 = vld [vmem:[%s388 + $0x1b8] sm:%s381]
                  %515 = vst [vmem:[%s389 + $0xf8] sm:%s381] %v514
                  %v516 = vld [vmem:[%s388 + $0x1bc] sm:%s381]
                  %517 = vst [vmem:[%s389 + $0xfc] sm:%s381] %v516
                  %v518 = vld [vmem:[%s388 + $0x1c0] sm:%s381]
                  %519 = vst [vmem:[%s389 + $0x100] sm:%s381] %v518
                  %v520 = vld [vmem:[%s388 + $0x1c4] sm:%s381]
                  %521 = vst [vmem:[%s389 + $0x104] sm:%s381] %v520
                  %v522 = vld [vmem:[%s388 + $0x1c8] sm:%s381]
                  %523 = vst [vmem:[%s389 + $0x108] sm:%s381] %v522
                  %v524 = vld [vmem:[%s388 + $0x1cc] sm:%s381]
                  %525 = vst [vmem:[%s389 + $0x10c] sm:%s381] %v524
                  %v526 = vld [vmem:[%s388 + $0x1d0] sm:%s381]
                  %527 = vst [vmem:[%s389 + $0x110] sm:%s381] %v526
                  %v528 = vld [vmem:[%s388 + $0x1d4] sm:%s381]
                  %529 = vst [vmem:[%s389 + $0x114] sm:%s381] %v528
                  %v530 = vld [vmem:[%s388 + $0x1d8] sm:%s381]
                  %531 = vst [vmem:[%s389 + $0x118] sm:%s381] %v530
                  %v532 = vld [vmem:[%s388 + $0x1dc] sm:%s381]
                  %533 = vst [vmem:[%s389 + $0x11c] sm:%s381] %v532
                $region71: #{residual_max_conv.1} parent=58 // loop_footer
                  %s387 = sadd.s32 1, %s383
                $region72: #{residual_max_conv.1} parent=58 // loop_footer_branch
                  %382 = sbr.rel target = $region68
                $region73: #{residual_max_conv.1} parent=58 // loop_exit
                  _
              $region59: #{residual_max_conv.1} parent=43 // pred_fallthru
                _
            $region44: #{residual_max_conv.1} parent=39 // pred_fallthru
              _
            // Predicated region
            $region45: #{residual_max_conv.1} parent=39 // pred_check
              _
            $region46: #{residual_max_conv.1} parent=39 // pred_check_branch
              %215 = sbr.rel (0) target = $region48
            $region47: #{residual_max_conv.1} parent=39 // pred_region
              %s217 = ssub.s32 16, 1
              loop: start=0, step=1, limit=1
              $region49: #{residual_max_conv.1} parent=47 // loop_pre_header
                _
              $region50: #{residual_max_conv.1} parent=47 // loop_header
                %s219 = sphi 0, %s223
                %p220 = scmp.ge.s32.totalorder %s219, 1
                %s224 = sphi %s209, %s209
                %s225 = sphi %s203, %s203
              $region51: #{residual_max_conv.1} parent=47 // loop_header_branch
                %222 = sbr.rel (%p220) target = $region55
              $region52: #{residual_max_conv.1} parent=47 // loop_body
                %v226 = vld [vmem:[%s224] sm:%s217]
                %227 = vst [vmem:[%s225] sm:%s217] %v226
                %v228 = vld [vmem:[%s224 + $0x4] sm:%s217]
                %229 = vst [vmem:[%s225 + $0x4] sm:%s217] %v228
                %v230 = vld [vmem:[%s224 + $0x8] sm:%s217]
                %231 = vst [vmem:[%s225 + $0x8] sm:%s217] %v230
                %v232 = vld [vmem:[%s224 + $0xc] sm:%s217]
                %233 = vst [vmem:[%s225 + $0xc] sm:%s217] %v232
                %v234 = vld [vmem:[%s224 + $0x10] sm:%s217]
                %235 = vst [vmem:[%s225 + $0x10] sm:%s217] %v234
                %v236 = vld [vmem:[%s224 + $0x14] sm:%s217]
                %237 = vst [vmem:[%s225 + $0x14] sm:%s217] %v236
                %v238 = vld [vmem:[%s224 + $0x18] sm:%s217]
                %239 = vst [vmem:[%s225 + $0x18] sm:%s217] %v238
                %v240 = vld [vmem:[%s224 + $0x1c] sm:%s217]
                %241 = vst [vmem:[%s225 + $0x1c] sm:%s217] %v240
                %v242 = vld [vmem:[%s224 + $0x20] sm:%s217]
                %243 = vst [vmem:[%s225 + $0x20] sm:%s217] %v242
                %v244 = vld [vmem:[%s224 + $0x24] sm:%s217]
                %245 = vst [vmem:[%s225 + $0x24] sm:%s217] %v244
                %v246 = vld [vmem:[%s224 + $0x28] sm:%s217]
                %247 = vst [vmem:[%s225 + $0x28] sm:%s217] %v246
                %v248 = vld [vmem:[%s224 + $0x2c] sm:%s217]
                %249 = vst [vmem:[%s225 + $0x2c] sm:%s217] %v248
                %v250 = vld [vmem:[%s224 + $0x30] sm:%s217]
                %251 = vst [vmem:[%s225 + $0x30] sm:%s217] %v250
                %v252 = vld [vmem:[%s224 + $0x34] sm:%s217]
                %253 = vst [vmem:[%s225 + $0x34] sm:%s217] %v252
                %v254 = vld [vmem:[%s224 + $0x38] sm:%s217]
                %255 = vst [vmem:[%s225 + $0x38] sm:%s217] %v254
                %v256 = vld [vmem:[%s224 + $0x3c] sm:%s217]
                %257 = vst [vmem:[%s225 + $0x3c] sm:%s217] %v256
                %v258 = vld [vmem:[%s224 + $0x40] sm:%s217]
                %259 = vst [vmem:[%s225 + $0x40] sm:%s217] %v258
                %v260 = vld [vmem:[%s224 + $0x44] sm:%s217]
                %261 = vst [vmem:[%s225 + $0x44] sm:%s217] %v260
                %v262 = vld [vmem:[%s224 + $0x48] sm:%s217]
                %263 = vst [vmem:[%s225 + $0x48] sm:%s217] %v262
                %v264 = vld [vmem:[%s224 + $0x4c] sm:%s217]
                %265 = vst [vmem:[%s225 + $0x4c] sm:%s217] %v264
                %v266 = vld [vmem:[%s224 + $0x50] sm:%s217]
                %267 = vst [vmem:[%s225 + $0x50] sm:%s217] %v266
                %v268 = vld [vmem:[%s224 + $0x54] sm:%s217]
                %269 = vst [vmem:[%s225 + $0x54] sm:%s217] %v268
                %v270 = vld [vmem:[%s224 + $0x58] sm:%s217]
                %271 = vst [vmem:[%s225 + $0x58] sm:%s217] %v270
                %v272 = vld [vmem:[%s224 + $0x5c] sm:%s217]
                %273 = vst [vmem:[%s225 + $0x5c] sm:%s217] %v272
                %v274 = vld [vmem:[%s224 + $0xc0] sm:%s217]
                %275 = vst [vmem:[%s225 + $0x60] sm:%s217] %v274
                %v276 = vld [vmem:[%s224 + $0xc4] sm:%s217]
                %277 = vst [vmem:[%s225 + $0x64] sm:%s217] %v276
                %v278 = vld [vmem:[%s224 + $0xc8] sm:%s217]
                %279 = vst [vmem:[%s225 + $0x68] sm:%s217] %v278
                %v280 = vld [vmem:[%s224 + $0xcc] sm:%s217]
                %281 = vst [vmem:[%s225 + $0x6c] sm:%s217] %v280
                %v282 = vld [vmem:[%s224 + $0xd0] sm:%s217]
                %283 = vst [vmem:[%s225 + $0x70] sm:%s217] %v282
                %v284 = vld [vmem:[%s224 + $0xd4] sm:%s217]
                %285 = vst [vmem:[%s225 + $0x74] sm:%s217] %v284
                %v286 = vld [vmem:[%s224 + $0xd8] sm:%s217]
                %287 = vst [vmem:[%s225 + $0x78] sm:%s217] %v286
                %v288 = vld [vmem:[%s224 + $0xdc] sm:%s217]
                %289 = vst [vmem:[%s225 + $0x7c] sm:%s217] %v288
                %v290 = vld [vmem:[%s224 + $0xe0] sm:%s217]
                %291 = vst [vmem:[%s225 + $0x80] sm:%s217] %v290
                %v292 = vld [vmem:[%s224 + $0xe4] sm:%s217]
                %293 = vst [vmem:[%s225 + $0x84] sm:%s217] %v292
                %v294 = vld [vmem:[%s224 + $0xe8] sm:%s217]
                %295 = vst [vmem:[%s225 + $0x88] sm:%s217] %v294
                %v296 = vld [vmem:[%s224 + $0xec] sm:%s217]
                %297 = vst [vmem:[%s225 + $0x8c] sm:%s217] %v296
                %v298 = vld [vmem:[%s224 + $0xf0] sm:%s217]
                %299 = vst [vmem:[%s225 + $0x90] sm:%s217] %v298
                %v300 = vld [vmem:[%s224 + $0xf4] sm:%s217]
                %301 = vst [vmem:[%s225 + $0x94] sm:%s217] %v300
                %v302 = vld [vmem:[%s224 + $0xf8] sm:%s217]
                %303 = vst [vmem:[%s225 + $0x98] sm:%s217] %v302
                %v304 = vld [vmem:[%s224 + $0xfc] sm:%s217]
                %305 = vst [vmem:[%s225 + $0x9c] sm:%s217] %v304
                %v306 = vld [vmem:[%s224 + $0x100] sm:%s217]
                %307 = vst [vmem:[%s225 + $0xa0] sm:%s217] %v306
                %v308 = vld [vmem:[%s224 + $0x104] sm:%s217]
                %309 = vst [vmem:[%s225 + $0xa4] sm:%s217] %v308
                %v310 = vld [vmem:[%s224 + $0x108] sm:%s217]
                %311 = vst [vmem:[%s225 + $0xa8] sm:%s217] %v310
                %v312 = vld [vmem:[%s224 + $0x10c] sm:%s217]
                %313 = vst [vmem:[%s225 + $0xac] sm:%s217] %v312
                %v314 = vld [vmem:[%s224 + $0x110] sm:%s217]
                %315 = vst [vmem:[%s225 + $0xb0] sm:%s217] %v314
                %v316 = vld [vmem:[%s224 + $0x114] sm:%s217]
                %317 = vst [vmem:[%s225 + $0xb4] sm:%s217] %v316
                %v318 = vld [vmem:[%s224 + $0x118] sm:%s217]
                %319 = vst [vmem:[%s225 + $0xb8] sm:%s217] %v318
                %v320 = vld [vmem:[%s224 + $0x11c] sm:%s217]
                %321 = vst [vmem:[%s225 + $0xbc] sm:%s217] %v320
                %v322 = vld [vmem:[%s224 + $0x180] sm:%s217]
                %323 = vst [vmem:[%s225 + $0xc0] sm:%s217] %v322
                %v324 = vld [vmem:[%s224 + $0x184] sm:%s217]
                %325 = vst [vmem:[%s225 + $0xc4] sm:%s217] %v324
                %v326 = vld [vmem:[%s224 + $0x188] sm:%s217]
                %327 = vst [vmem:[%s225 + $0xc8] sm:%s217] %v326
                %v328 = vld [vmem:[%s224 + $0x18c] sm:%s217]
                %329 = vst [vmem:[%s225 + $0xcc] sm:%s217] %v328
                %v330 = vld [vmem:[%s224 + $0x190] sm:%s217]
                %331 = vst [vmem:[%s225 + $0xd0] sm:%s217] %v330
                %v332 = vld [vmem:[%s224 + $0x194] sm:%s217]
                %333 = vst [vmem:[%s225 + $0xd4] sm:%s217] %v332
                %v334 = vld [vmem:[%s224 + $0x198] sm:%s217]
                %335 = vst [vmem:[%s225 + $0xd8] sm:%s217] %v334
                %v336 = vld [vmem:[%s224 + $0x19c] sm:%s217]
                %337 = vst [vmem:[%s225 + $0xdc] sm:%s217] %v336
                %v338 = vld [vmem:[%s224 + $0x1a0] sm:%s217]
                %339 = vst [vmem:[%s225 + $0xe0] sm:%s217] %v338
                %v340 = vld [vmem:[%s224 + $0x1a4] sm:%s217]
                %341 = vst [vmem:[%s225 + $0xe4] sm:%s217] %v340
                %v342 = vld [vmem:[%s224 + $0x1a8] sm:%s217]
                %343 = vst [vmem:[%s225 + $0xe8] sm:%s217] %v342
                %v344 = vld [vmem:[%s224 + $0x1ac] sm:%s217]
                %345 = vst [vmem:[%s225 + $0xec] sm:%s217] %v344
                %v346 = vld [vmem:[%s224 + $0x1b0] sm:%s217]
                %347 = vst [vmem:[%s225 + $0xf0] sm:%s217] %v346
                %v348 = vld [vmem:[%s224 + $0x1b4] sm:%s217]
                %349 = vst [vmem:[%s225 + $0xf4] sm:%s217] %v348
                %v350 = vld [vmem:[%s224 + $0x1b8] sm:%s217]
                %351 = vst [vmem:[%s225 + $0xf8] sm:%s217] %v350
                %v352 = vld [vmem:[%s224 + $0x1bc] sm:%s217]
                %353 = vst [vmem:[%s225 + $0xfc] sm:%s217] %v352
                %v354 = vld [vmem:[%s224 + $0x1c0] sm:%s217]
                %355 = vst [vmem:[%s225 + $0x100] sm:%s217] %v354
                %v356 = vld [vmem:[%s224 + $0x1c4] sm:%s217]
                %357 = vst [vmem:[%s225 + $0x104] sm:%s217] %v356
                %v358 = vld [vmem:[%s224 + $0x1c8] sm:%s217]
                %359 = vst [vmem:[%s225 + $0x108] sm:%s217] %v358
                %v360 = vld [vmem:[%s224 + $0x1cc] sm:%s217]
                %361 = vst [vmem:[%s225 + $0x10c] sm:%s217] %v360
                %v362 = vld [vmem:[%s224 + $0x1d0] sm:%s217]
                %363 = vst [vmem:[%s225 + $0x110] sm:%s217] %v362
                %v364 = vld [vmem:[%s224 + $0x1d4] sm:%s217]
                %365 = vst [vmem:[%s225 + $0x114] sm:%s217] %v364
                %v366 = vld [vmem:[%s224 + $0x1d8] sm:%s217]
                %367 = vst [vmem:[%s225 + $0x118] sm:%s217] %v366
                %v368 = vld [vmem:[%s224 + $0x1dc] sm:%s217]
                %369 = vst [vmem:[%s225 + $0x11c] sm:%s217] %v368
              $region53: #{residual_max_conv.1} parent=47 // loop_footer
                %s223 = sadd.s32 1, %s219
              $region54: #{residual_max_conv.1} parent=47 // loop_footer_branch
                %218 = sbr.rel target = $region50
              $region55: #{residual_max_conv.1} parent=47 // loop_exit
                _
            $region48: #{residual_max_conv.1} parent=39 // pred_fallthru
              _
          $region40: #{residual_max_conv.1} parent=35 // pred_fallthru
            _
          %534 = vnop
        $region36: #{residual_max_conv.1} parent=31 // pred_fallthru
          _
      $region32: #{residual_max_conv.1} parent=5 // pred_fallthru
        _
      %p535 = scmp.le.s32.totalorder 1, %s14
      %p536 = scmp.lt.s32.totalorder %s14, 5
      %p537 = pnand %p535, %p536
      %p538 = pneg %p537
      // Predicated region
      $region74: #{residual_max_conv.1} parent=5 // pred_check
        _
      $region75: #{residual_max_conv.1} parent=5 // pred_check_branch
        %540 = sbr.rel (%p537) target = $region77
      $region76: #{residual_max_conv.1} parent=5 // pred_region
        %s541 = ssub.s32 %s14, 1
        %s542 = sand.u32 %s41, 1
        %s543 = sand.u32 %s41, 1
        %s544 = smul.addr %s543, 288
        %s545 = scalar_lea.vmem [#allocation2], %s544
        // Predicated region
        $region78: #{residual_max_conv.1} parent=76 // pred_check
          %p546 = pneg %p54
        $region79: #{residual_max_conv.1} parent=76 // pred_check_branch
          %548 = sbr.rel (%p546) target = $region81
        $region80: #{residual_max_conv.1} parent=76 // pred_region
          _
        $region81: #{residual_max_conv.1} parent=76 // pred_fallthru
          _
        %s549 = sand.u32 %s41, 1
        %s550 = sand.u32 %s41, 1
        %s551 = smul.addr %s550, 288
        %s552 = scalar_lea.vmem [#allocation2], %s551
        %p553 = pneg %p54
        %p554 = pneg %p51
        %p555 = pneg %p75
        %p556 = pneg %p72
        %p557 = pneg %p96
        %p558 = pneg %p93
        %p559 = pneg %p117
        %p560 = pneg %p114
        %p561 = pneg %p138
        %p562 = pneg %p135
        %p563 = pneg %p166
        %p564 = pneg %p163
        %s565 = sand.u32 %s153, 1
        %s566 = scalar_lea.sflag [#allocation4], %s565
        %s567 = sand.u32 %s153, 1
        %s568 = smul.addr %s567, 128
        %s569 = scalar_lea.vmem [#allocation3], %s568
        %s570 = smul.u32 8, %s24
        %s571 = smul.u32 8, %s24
        %v574 = vld [vmem:[%s545] sm:$0xf]
        %v575 = vld [vmem:[%s545 + $0x4] sm:$0xf]
        %v576 = vld [vmem:[%s545 + $0x8] sm:$0xf]
        %v577 = vld [vmem:[%s545 + $0xc] sm:$0xf]
        %v578 = vld [vmem:[%s545 + $0x10] sm:$0xf]
        %v579 = vld [vmem:[%s545 + $0x14] sm:$0xf]
        %v580 = vld [vmem:[%s545 + $0x18] sm:$0xf]
        %v581 = vld [vmem:[%s545 + $0x1c] sm:$0xf]
        %v582 = vld [vmem:[%s545 + $0x20] sm:$0xf]
        %v583 = vld [vmem:[%s545 + $0x24] sm:$0xf]
        %v584 = vld [vmem:[%s545 + $0x28] sm:$0xf]
        %v585 = vld [vmem:[%s545 + $0x2c] sm:$0xf]
        %v586 = vld [vmem:[%s545 + $0x30] sm:$0xf]
        %v587 = vld [vmem:[%s545 + $0x34] sm:$0xf]
        %v588 = vld [vmem:[%s545 + $0x38] sm:$0xf]
        %v589 = vld [vmem:[%s545 + $0x3c] sm:$0xf]
        %v590 = vld [vmem:[%s545 + $0x40] sm:$0xf]
        %v591 = vld [vmem:[%s545 + $0x44] sm:$0xf]
        %v592 = vld [vmem:[%s545 + $0x48] sm:$0xf]
        %v593 = vld [vmem:[%s545 + $0x4c] sm:$0xf]
        %v594 = vld [vmem:[%s545 + $0x50] sm:$0xf]
        %v595 = vld [vmem:[%s545 + $0x54] sm:$0xf]
        %v596 = vld [vmem:[%s545 + $0x58] sm:$0xf]
        %v597 = vld [vmem:[%s545 + $0x5c] sm:$0xf]
        %vm598 = vcmp.gt.bf16.partialorder %v574, 4020432802
        %vm599 = vcmp.gt.bf16.partialorder %v575, 4020432802
        %vm600 = vcmp.gt.bf16.partialorder %v576, 4020432802
        %vm601 = vcmp.gt.bf16.partialorder %v577, 4020432802
        %vm602 = vcmp.gt.bf16.partialorder %v578, 4020432802
        %vm603 = vcmp.gt.bf16.partialorder %v579, 4020432802
        %vm604 = vcmp.gt.bf16.partialorder %v580, 4020432802
        %vm605 = vcmp.gt.bf16.partialorder %v581, 4020432802
        %vm606 = vcmp.gt.bf16.partialorder %v582, 4020432802
        %vm607 = vcmp.gt.bf16.partialorder %v583, 4020432802
        %vm608 = vcmp.gt.bf16.partialorder %v584, 4020432802
        %vm609 = vcmp.gt.bf16.partialorder %v585, 4020432802
        %vm610 = vcmp.gt.bf16.partialorder %v586, 4020432802
        %vm611 = vcmp.gt.bf16.partialorder %v587, 4020432802
        %vm612 = vcmp.gt.bf16.partialorder %v588, 4020432802
        %vm613 = vcmp.gt.bf16.partialorder %v589, 4020432802
        %vm614 = vcmp.gt.bf16.partialorder %v590, 4020432802
        %vm615 = vcmp.gt.bf16.partialorder %v591, 4020432802
        %vm616 = vcmp.gt.bf16.partialorder %v592, 4020432802
        %vm617 = vcmp.gt.bf16.partialorder %v593, 4020432802
        %vm618 = vcmp.gt.bf16.partialorder %v594, 4020432802
        %vm619 = vcmp.gt.bf16.partialorder %v595, 4020432802
        %vm620 = vcmp.gt.bf16.partialorder %v596, 4020432802
        %vm621 = vcmp.gt.bf16.partialorder %v597, 4020432802
        %v622 = vsel %vm598, %v574, 0
        %v623 = vsel %vm599, %v575, 0
        %v624 = vsel %vm600, %v576, 0
        %v625 = vsel %vm601, %v577, 0
        %v626 = vsel %vm602, %v578, 0
        %v627 = vsel %vm603, %v579, 0
        %v628 = vsel %vm604, %v580, 0
        %v629 = vsel %vm605, %v581, 0
        %v630 = vsel %vm606, %v582, 0
        %v631 = vsel %vm607, %v583, 0
        %v632 = vsel %vm608, %v584, 0
        %v633 = vsel %vm609, %v585, 0
        %v634 = vsel %vm610, %v586, 0
        %v635 = vsel %vm611, %v587, 0
        %v636 = vsel %vm612, %v588, 0
        %v637 = vsel %vm613, %v589, 0
        %v638 = vsel %vm614, %v590, 0
        %v639 = vsel %vm615, %v591, 0
        %v640 = vsel %vm616, %v592, 0
        %v641 = vsel %vm617, %v593, 0
        %v642 = vsel %vm618, %v594, 0
        %v643 = vsel %vm619, %v595, 0
        %v644 = vsel %vm620, %v596, 0
        %v645 = vsel %vm621, %v597, 0
        %v646 = vld [vmem:[%s1] sm:$0xf]
        %v647 = vld [vmem:[%s1 + $0x4] sm:$0xf]
        %v648 = vld [vmem:[%s1 + $0x8] sm:$0xf]
        %v649 = vld [vmem:[%s1 + $0xc] sm:$0xf]
        %v650 = vld [vmem:[%s1 + $0x10] sm:$0xf]
        %v651 = vld [vmem:[%s1 + $0x14] sm:$0xf]
        %v652 = vld [vmem:[%s1 + $0x18] sm:$0xf]
        %v653 = vld [vmem:[%s1 + $0x1c] sm:$0xf]
        %v678 = vunpack.c.l.b16 %v622
        %v679 = vunpack.c.l.b16 %v623
        %v680 = vunpack.c.l.b16 %v624
        %v681 = vunpack.c.l.b16 %v625
        %v682 = vunpack.c.l.b16 %v626
        %v683 = vunpack.c.l.b16 %v627
        %v684 = vunpack.c.l.b16 %v628
        %v685 = vunpack.c.l.b16 %v629
        %v686 = vunpack.c.l.b16 %v630
        %v687 = vunpack.c.l.b16 %v631
        %v688 = vunpack.c.l.b16 %v632
        %v689 = vunpack.c.l.b16 %v633
        %v690 = vunpack.c.l.b16 %v634
        %v691 = vunpack.c.l.b16 %v635
        %v692 = vunpack.c.l.b16 %v636
        %v693 = vunpack.c.l.b16 %v637
        %v694 = vunpack.c.l.b16 %v638
        %v695 = vunpack.c.l.b16 %v639
        %v696 = vunpack.c.l.b16 %v640
        %v697 = vunpack.c.l.b16 %v641
        %v698 = vunpack.c.l.b16 %v642
        %v699 = vunpack.c.l.b16 %v643
        %v700 = vunpack.c.l.b16 %v644
        %v701 = vunpack.c.l.b16 %v645
        %v702 = vpack.c.b16 %v679, %v678
        %v703 = vpack.c.b16 %v681, %v680
        %v704 = vpack.c.b16 %v683, %v682
        %v705 = vpack.c.b16 %v685, %v684
        %v706 = vpack.c.b16 %v687, %v686
        %v707 = vpack.c.b16 %v689, %v688
        %v708 = vpack.c.b16 %v691, %v690
        %v709 = vpack.c.b16 %v693, %v692
        %v710 = vpack.c.b16 %v695, %v694
        %v711 = vpack.c.b16 %v697, %v696
        %v712 = vpack.c.b16 %v699, %v698
        %v713 = vpack.c.b16 %v701, %v700
        %v722 = vunpack.c.l.b16 %v646
        %v723 = vunpack.c.l.b16 %v647
        %v724 = vunpack.c.l.b16 %v648
        %v725 = vunpack.c.l.b16 %v649
        %v726 = vunpack.c.l.b16 %v650
        %v727 = vunpack.c.l.b16 %v651
        %v728 = vunpack.c.l.b16 %v652
        %v729 = vunpack.c.l.b16 %v653
        %v730 = vpack.c.b16 %v723, %v722
        %v731 = vpack.c.b16 %v725, %v724
        %v732 = vpack.c.b16 %v727, %v726
        %v733 = vpack.c.b16 %v729, %v728
        %vm738 = vcmask 523264
        %v740 = vsel %vm738, %v702, 0
        %v743 = vsel %vm738, %v703, 0
        %v746 = vsel %vm738, %v704, 0
        %v749 = vsel %vm738, %v705, 0
        %v752 = vsel %vm738, %v706, 0
        %v755 = vsel %vm738, %v707, 0
        %v758 = vsel %vm738, %v708, 0
        %v761 = vsel %vm738, %v709, 0
        %v764 = vsel %vm738, %v710, 0
        %v767 = vsel %vm738, %v711, 0
        %v770 = vsel %vm738, %v712, 0
        %v773 = vsel %vm738, %v713, 0
        %775 = vmatprep.subr.bf16.mxu0 0
        %776 = vmatpush1.bf16.msra.mxu0 0
        %777 = vmatprep.subr.bf16.mxu0 0
        %778 = vmatpush1.bf16.msra.mxu0 0
        %779 = vmatprep.subr.bf16.mxu0 0
        %780 = vmatpush1.bf16.msra.mxu0 0
        %781 = vmatprep.subr.bf16.mxu0 0
        %782 = vmatpush1.bf16.msra.mxu0 0
        %783 = vmatprep.subr.bf16.mxu0 0
        %784 = vmatpush1.bf16.msra.mxu0 %v733
        %785 = vmatprep.subr.bf16.mxu0 0
        %786 = vmatpush1.bf16.msra.mxu0 %v732
        %787 = vmatprep.subr.bf16.mxu0 0
        %788 = vmatpush1.bf16.msra.mxu0 %v731
        %789 = vmatprep.subr.bf16.mxu0 0
        %790 = vmatpush1.bf16.msra.mxu0 %v730
        %791 = vmatprep.subr.bf16.mxu0 0
        %792 = vmatpush2.bf16.msra.mxu0 0
        %793 = vmatprep.subr.bf16.mxu0 0
        %794 = vmatpush2.bf16.msra.mxu0 0
        %795 = vmatprep.subr.bf16.mxu0 0
        %796 = vmatpush2.bf16.msra.mxu0 0
        %797 = vmatprep.subr.bf16.mxu0 0
        %798 = vmatpush2.bf16.msra.mxu0 0
        %799 = vmatprep.subr.bf16.mxu0 0
        %800 = vmatpush2.bf16.msra.mxu0 0
        %801 = vmatprep.subr.bf16.mxu0 0
        %802 = vmatpush2.bf16.msra.mxu0 0
        %803 = vmatprep.subr.bf16.mxu0 0
        %804 = vmatpush2.bf16.msra.mxu0 0
        %805 = vmatprep.subr.bf16.mxu0 0
        %806 = vmatpush2.bf16.msra.mxu0 0
        %807 = vmatprep.mubr.bf16.mxu0 0
        %808 = vmatmul.mubr.bf16.gmra.mxu0 %v740
        %v809 = vpop.f32.mrf.mxu0
        %v810 = vadd.f32 0.0, %v809
        %v811 = vpop.f32.mrf.mxu0
        %v812 = vpop.f32.mrf.mxu0
        %v813 = vadd.f32 0.0, %v812
        %v814 = vpop.f32.mrf.mxu0
        %815 = vmatprep.mubr.bf16.mxu0 0
        %816 = vmatmul.mubr.bf16.gmra.mxu0 %v743
        %v817 = vpop.f32.mrf.mxu0
        %v818 = vpop.f32.mrf.mxu0
        %v819 = vpop.f32.mrf.mxu0
        %v820 = vadd.f32 0.0, %v819
        %v821 = vpop.f32.mrf.mxu0
        %822 = vmatprep.mubr.bf16.mxu0 0
        %823 = vmatmul.mubr.bf16.gmra.mxu0 %v746
        %v824 = vpop.f32.mrf.mxu0
        %v825 = vadd.f32 0.0, %v824
        %v826 = vpop.f32.mrf.mxu0
        %v827 = vpop.f32.mrf.mxu0
        %v828 = vpop.f32.mrf.mxu0
        %829 = vmatprep.mubr.bf16.mxu0 0
        %830 = vmatmul.mubr.bf16.gmra.mxu0 %v749
        %v831 = vpop.f32.mrf.mxu0
        %v832 = vadd.f32 0.0, %v831
        %v833 = vpop.f32.mrf.mxu0
        %v834 = vpop.f32.mrf.mxu0
        %v835 = vadd.f32 0.0, %v834
        %v836 = vpop.f32.mrf.mxu0
        %837 = vmatprep.mubr.bf16.mxu0 0
        %838 = vmatmul.mubr.bf16.gmra.mxu0 %v752
        %v839 = vpop.f32.mrf.mxu0
        %v840 = vpop.f32.mrf.mxu0
        %v841 = vpop.f32.mrf.mxu0
        %v842 = vadd.f32 0.0, %v841
        %v843 = vpop.f32.mrf.mxu0
        %844 = vmatprep.mubr.bf16.mxu0 0
        %845 = vmatmul.mubr.bf16.gmra.mxu0 %v755
        %v846 = vpop.f32.mrf.mxu0
        %v847 = vadd.f32 0.0, %v846
        %v848 = vpop.f32.mrf.mxu0
        %v849 = vpop.f32.mrf.mxu0
        %v850 = vpop.f32.mrf.mxu0
        %851 = vmatprep.mubr.bf16.mxu0 0
        %852 = vmatmul.mubr.bf16.gmra.mxu0 %v758
        %v853 = vpop.f32.mrf.mxu0
        %v854 = vadd.f32 0.0, %v853
        %v855 = vpop.f32.mrf.mxu0
        %v856 = vpop.f32.mrf.mxu0
        %v857 = vadd.f32 0.0, %v856
        %v858 = vpop.f32.mrf.mxu0
        %859 = vmatprep.mubr.bf16.mxu0 0
        %860 = vmatmul.mubr.bf16.gmra.mxu0 %v761
        %v861 = vpop.f32.mrf.mxu0
        %v862 = vpop.f32.mrf.mxu0
        %v863 = vpop.f32.mrf.mxu0
        %v864 = vadd.f32 0.0, %v863
        %v865 = vpop.f32.mrf.mxu0
        %866 = vmatprep.mubr.bf16.mxu0 0
        %867 = vmatmul.mubr.bf16.gmra.mxu0 %v764
        %v868 = vpop.f32.mrf.mxu0
        %v869 = vadd.f32 0.0, %v868
        %v870 = vpop.f32.mrf.mxu0
        %v871 = vpop.f32.mrf.mxu0
        %v872 = vpop.f32.mrf.mxu0
        %873 = vmatprep.mubr.bf16.mxu0 0
        %874 = vmatmul.mubr.bf16.gmra.mxu0 %v767
        %v875 = vpop.f32.mrf.mxu0
        %v876 = vadd.f32 0.0, %v875
        %v877 = vpop.f32.mrf.mxu0
        %v878 = vpop.f32.mrf.mxu0
        %v879 = vadd.f32 0.0, %v878
        %v880 = vpop.f32.mrf.mxu0
        %881 = vmatprep.mubr.bf16.mxu0 0
        %882 = vmatmul.mubr.bf16.gmra.mxu0 %v770
        %v883 = vpop.f32.mrf.mxu0
        %v884 = vpop.f32.mrf.mxu0
        %v885 = vpop.f32.mrf.mxu0
        %v886 = vadd.f32 0.0, %v885
        %v887 = vpop.f32.mrf.mxu0
        %888 = vmatprep.mubr.bf16.mxu0 0
        %889 = vmatmul.mubr.bf16.gmra.mxu0 %v773
        %v890 = vpop.f32.mrf.mxu0
        %v891 = vadd.f32 0.0, %v890
        %v892 = vpop.f32.mrf.mxu0
        %v893 = vpop.f32.mrf.mxu0
        %v894 = vpop.f32.mrf.mxu0
        %895 = vdwg.mxu0
        %s896 = scalar_lea.vmem %s1, 32
        %v897 = vld [vmem:[%s896] sm:$0xf]
        %v898 = vld [vmem:[%s896 + $0x4] sm:$0xf]
        %v899 = vld [vmem:[%s896 + $0x8] sm:$0xf]
        %v900 = vld [vmem:[%s896 + $0xc] sm:$0xf]
        %v901 = vld [vmem:[%s896 + $0x10] sm:$0xf]
        %v902 = vld [vmem:[%s896 + $0x14] sm:$0xf]
        %v903 = vld [vmem:[%s896 + $0x18] sm:$0xf]
        %v904 = vld [vmem:[%s896 + $0x1c] sm:$0xf]
        %v913 = vunpack.c.l.b16 %v897
        %v914 = vunpack.c.l.b16 %v898
        %v915 = vunpack.c.l.b16 %v899
        %v916 = vunpack.c.l.b16 %v900
        %v917 = vunpack.c.l.b16 %v901
        %v918 = vunpack.c.l.b16 %v902
        %v919 = vunpack.c.l.b16 %v903
        %v920 = vunpack.c.l.b16 %v904
        %v921 = vpack.c.b16 %v914, %v913
        %v922 = vpack.c.b16 %v916, %v915
        %v923 = vpack.c.b16 %v918, %v917
        %v924 = vpack.c.b16 %v920, %v919
        %929 = vmatprep.subr.bf16.mxu0 0
        %930 = vmatpush1.bf16.msra.mxu0 0
        %931 = vmatprep.subr.bf16.mxu0 0
        %932 = vmatpush1.bf16.msra.mxu0 0
        %933 = vmatprep.subr.bf16.mxu0 0
        %934 = vmatpush1.bf16.msra.mxu0 0
        %935 = vmatprep.subr.bf16.mxu0 0
        %936 = vmatpush1.bf16.msra.mxu0 0
        %937 = vmatprep.subr.bf16.mxu0 0
        %938 = vmatpush1.bf16.msra.mxu0 %v924
        %939 = vmatprep.subr.bf16.mxu0 0
        %940 = vmatpush1.bf16.msra.mxu0 %v923
        %941 = vmatprep.subr.bf16.mxu0 0
        %942 = vmatpush1.bf16.msra.mxu0 %v922
        %943 = vmatprep.subr.bf16.mxu0 0
        %944 = vmatpush1.bf16.msra.mxu0 %v921
        %945 = vmatprep.subr.bf16.mxu0 0
        %946 = vmatpush2.bf16.msra.mxu0 0
        %947 = vmatprep.subr.bf16.mxu0 0
        %948 = vmatpush2.bf16.msra.mxu0 0
        %949 = vmatprep.subr.bf16.mxu0 0
        %950 = vmatpush2.bf16.msra.mxu0 0
        %951 = vmatprep.subr.bf16.mxu0 0
        %952 = vmatpush2.bf16.msra.mxu0 0
        %953 = vmatprep.subr.bf16.mxu0 0
        %954 = vmatpush2.bf16.msra.mxu0 0
        %955 = vmatprep.subr.bf16.mxu0 0
        %956 = vmatpush2.bf16.msra.mxu0 0
        %957 = vmatprep.subr.bf16.mxu0 0
        %958 = vmatpush2.bf16.msra.mxu0 0
        %959 = vmatprep.subr.bf16.mxu0 0
        %960 = vmatpush2.bf16.msra.mxu0 0
        %961 = vmatprep.mubr.bf16.mxu0 0
        %962 = vmatmul.mubr.bf16.gmra.mxu0 %v740
        %v963 = vpop.f32.mrf.mxu0
        %v964 = vadd.f32 0.0, %v963
        %v965 = vpop.f32.mrf.mxu0
        %v966 = vpop.f32.mrf.mxu0
        %v967 = vadd.f32 0.0, %v966
        %v968 = vpop.f32.mrf.mxu0
        %969 = vmatprep.mubr.bf16.mxu0 0
        %970 = vmatmul.mubr.bf16.gmra.mxu0 %v743
        %v971 = vpop.f32.mrf.mxu0
        %v972 = vadd.f32 0.0, %v971
        %v973 = vpop.f32.mrf.mxu0
        %v974 = vpop.f32.mrf.mxu0
        %v975 = vadd.f32 0.0, %v974
        %v976 = vpop.f32.mrf.mxu0
        %977 = vmatprep.mubr.bf16.mxu0 0
        %978 = vmatmul.mubr.bf16.gmra.mxu0 %v746
        %v979 = vpop.f32.mrf.mxu0
        %v980 = vadd.f32 0.0, %v979
        %v981 = vpop.f32.mrf.mxu0
        %v982 = vpop.f32.mrf.mxu0
        %v983 = vadd.f32 0.0, %v982
        %v984 = vpop.f32.mrf.mxu0
        %985 = vmatprep.mubr.bf16.mxu0 0
        %986 = vmatmul.mubr.bf16.gmra.mxu0 %v749
        %v987 = vpop.f32.mrf.mxu0
        %v988 = vadd.f32 0.0, %v987
        %v989 = vpop.f32.mrf.mxu0
        %v990 = vpop.f32.mrf.mxu0
        %v991 = vadd.f32 0.0, %v990
        %v992 = vpop.f32.mrf.mxu0
        %993 = vmatprep.mubr.bf16.mxu0 0
        %994 = vmatmul.mubr.bf16.gmra.mxu0 %v752
        %v995 = vpop.f32.mrf.mxu0
        %v996 = vadd.f32 0.0, %v995
        %v997 = vpop.f32.mrf.mxu0
        %v998 = vpop.f32.mrf.mxu0
        %v999 = vadd.f32 0.0, %v998
        %v1000 = vpop.f32.mrf.mxu0
        %1001 = vmatprep.mubr.bf16.mxu0 0
        %1002 = vmatmul.mubr.bf16.gmra.mxu0 %v755
        %v1003 = vpop.f32.mrf.mxu0
        %v1004 = vadd.f32 0.0, %v1003
        %v1005 = vpop.f32.mrf.mxu0
        %v1006 = vpop.f32.mrf.mxu0
        %v1007 = vadd.f32 0.0, %v1006
        %v1008 = vpop.f32.mrf.mxu0
        %1009 = vmatprep.mubr.bf16.mxu0 0
        %1010 = vmatmul.mubr.bf16.gmra.mxu0 %v758
        %v1011 = vpop.f32.mrf.mxu0
        %v1012 = vadd.f32 0.0, %v1011
        %v1013 = vpop.f32.mrf.mxu0
        %v1014 = vpop.f32.mrf.mxu0
        %v1015 = vadd.f32 0.0, %v1014
        %v1016 = vpop.f32.mrf.mxu0
        %1017 = vmatprep.mubr.bf16.mxu0 0
        %1018 = vmatmul.mubr.bf16.gmra.mxu0 %v761
        %v1019 = vpop.f32.mrf.mxu0
        %v1020 = vadd.f32 0.0, %v1019
        %v1021 = vpop.f32.mrf.mxu0
        %v1022 = vpop.f32.mrf.mxu0
        %v1023 = vadd.f32 0.0, %v1022
        %v1024 = vpop.f32.mrf.mxu0
        %1025 = vmatprep.mubr.bf16.mxu0 0
        %1026 = vmatmul.mubr.bf16.gmra.mxu0 %v764
        %v1027 = vpop.f32.mrf.mxu0
        %v1028 = vadd.f32 0.0, %v1027
        %v1029 = vpop.f32.mrf.mxu0
        %v1030 = vpop.f32.mrf.mxu0
        %v1031 = vadd.f32 0.0, %v1030
        %v1032 = vpop.f32.mrf.mxu0
        %1033 = vmatprep.mubr.bf16.mxu0 0
        %1034 = vmatmul.mubr.bf16.gmra.mxu0 %v767
        %v1035 = vpop.f32.mrf.mxu0
        %v1036 = vadd.f32 0.0, %v1035
        %v1037 = vpop.f32.mrf.mxu0
        %v1038 = vpop.f32.mrf.mxu0
        %v1039 = vadd.f32 0.0, %v1038
        %v1040 = vpop.f32.mrf.mxu0
        %1041 = vmatprep.mubr.bf16.mxu0 0
        %1042 = vmatmul.mubr.bf16.gmra.mxu0 %v770
        %v1043 = vpop.f32.mrf.mxu0
        %v1044 = vadd.f32 0.0, %v1043
        %v1045 = vpop.f32.mrf.mxu0
        %v1046 = vpop.f32.mrf.mxu0
        %v1047 = vadd.f32 0.0, %v1046
        %v1048 = vpop.f32.mrf.mxu0
        %1049 = vmatprep.mubr.bf16.mxu0 0
        %1050 = vmatmul.mubr.bf16.gmra.mxu0 %v773
        %v1051 = vpop.f32.mrf.mxu0
        %v1052 = vadd.f32 0.0, %v1051
        %v1053 = vpop.f32.mrf.mxu0
        %v1054 = vpop.f32.mrf.mxu0
        %v1055 = vadd.f32 0.0, %v1054
        %v1056 = vpop.f32.mrf.mxu0
        %1057 = vdwg.mxu0
        %vm1082 = vcmask 1046528
        %v1083 = vrot.slane %v964, 1
        %v1084 = vrot.slane %v967, 1
        %v1085 = vsel %vm1082, %v1083, %v1084
        %v1086 = vrot.slane %v972, 1
        %v1087 = vsel %vm1082, %v1084, %v1086
        %v1088 = vrot.slane %v975, 1
        %v1089 = vrot.slane %v980, 1
        %v1090 = vsel %vm1082, %v1088, %v1089
        %v1091 = vrot.slane %v983, 1
        %v1092 = vsel %vm1082, %v1089, %v1091
        %v1093 = vrot.slane %v988, 1
        %v1094 = vrot.slane %v991, 1
        %v1095 = vsel %vm1082, %v1093, %v1094
        %v1096 = vrot.slane %v996, 1
        %v1097 = vsel %vm1082, %v1094, %v1096
        %v1098 = vrot.slane %v999, 1
        %v1099 = vrot.slane %v1004, 1
        %v1100 = vsel %vm1082, %v1098, %v1099
        %v1101 = vrot.slane %v1007, 1
        %v1102 = vsel %vm1082, %v1099, %v1101
        %v1103 = vrot.slane %v1012, 1
        %v1104 = vrot.slane %v1015, 1
        %v1105 = vsel %vm1082, %v1103, %v1104
        %v1106 = vrot.slane %v1020, 1
        %v1107 = vsel %vm1082, %v1104, %v1106
        %v1108 = vrot.slane %v1023, 1
        %v1109 = vrot.slane %v1028, 1
        %v1110 = vsel %vm1082, %v1108, %v1109
        %v1111 = vrot.slane %v1031, 1
        %v1112 = vsel %vm1082, %v1109, %v1111
        %v1113 = vrot.slane %v1036, 1
        %v1114 = vrot.slane %v1039, 1
        %v1115 = vsel %vm1082, %v1113, %v1114
        %v1116 = vrot.slane %v1044, 1
        %v1117 = vsel %vm1082, %v1114, %v1116
        %v1118 = vrot.slane %v1047, 1
        %v1119 = vrot.slane %v1052, 1
        %v1120 = vsel %vm1082, %v1118, %v1119
        %v1121 = vrot.slane %v1055, 1
        %v1122 = vsel %vm1082, %v1119, %v1121
        %v1139 = vadd.f32 %v810, %v1085
        %v1140 = vadd.f32 %v813, %v1087
        %v1141 = vadd.f32 %v820, %v1090
        %v1142 = vadd.f32 %v825, %v1092
        %v1143 = vadd.f32 %v832, %v1095
        %v1144 = vadd.f32 %v835, %v1097
        %v1145 = vadd.f32 %v842, %v1100
        %v1146 = vadd.f32 %v847, %v1102
        %v1147 = vadd.f32 %v854, %v1105
        %v1148 = vadd.f32 %v857, %v1107
        %v1149 = vadd.f32 %v864, %v1110
        %v1150 = vadd.f32 %v869, %v1112
        %v1151 = vadd.f32 %v876, %v1115
        %v1152 = vadd.f32 %v879, %v1117
        %v1153 = vadd.f32 %v886, %v1120
        %v1154 = vadd.f32 %v891, %v1122
        %1171 = vrot.lane.b32.xlu0 %v574, 96
        %v1172 = vpop.permute.xlu0 %1171
        %1173 = vrot.lane.b32.xlu0 %v575, 96
        %v1174 = vpop.permute.xlu0 %1173
        %1175 = vrot.lane.b32.xlu0 %v577, 96
        %v1176 = vpop.permute.xlu0 %1175
        %1177 = vrot.lane.b32.xlu0 %v578, 96
        %v1178 = vpop.permute.xlu0 %1177
        %1179 = vrot.lane.b32.xlu0 %v580, 96
        %v1180 = vpop.permute.xlu0 %1179
        %1181 = vrot.lane.b32.xlu0 %v581, 96
        %v1182 = vpop.permute.xlu0 %1181
        %1183 = vrot.lane.b32.xlu0 %v583, 96
        %v1184 = vpop.permute.xlu0 %1183
        %1185 = vrot.lane.b32.xlu0 %v584, 96
        %v1186 = vpop.permute.xlu0 %1185
        %1187 = vrot.lane.b32.xlu0 %v586, 96
        %v1188 = vpop.permute.xlu0 %1187
        %1189 = vrot.lane.b32.xlu0 %v587, 96
        %v1190 = vpop.permute.xlu0 %1189
        %1191 = vrot.lane.b32.xlu0 %v589, 96
        %v1192 = vpop.permute.xlu0 %1191
        %1193 = vrot.lane.b32.xlu0 %v590, 96
        %v1194 = vpop.permute.xlu0 %1193
        %1195 = vrot.lane.b32.xlu0 %v592, 96
        %v1196 = vpop.permute.xlu0 %1195
        %1197 = vrot.lane.b32.xlu0 %v593, 96
        %v1198 = vpop.permute.xlu0 %1197
        %1199 = vrot.lane.b32.xlu0 %v595, 96
        %v1200 = vpop.permute.xlu0 %1199
        %1201 = vrot.lane.b32.xlu0 %v596, 96
        %v1202 = vpop.permute.xlu0 %1201
        %v1219 = vmax.bf16 %v574, %v1172
        %v1220 = vmax.bf16 %v575, %v1174
        %v1221 = vmax.bf16 %v577, %v1176
        %v1222 = vmax.bf16 %v578, %v1178
        %v1223 = vmax.bf16 %v580, %v1180
        %v1224 = vmax.bf16 %v581, %v1182
        %v1225 = vmax.bf16 %v583, %v1184
        %v1226 = vmax.bf16 %v584, %v1186
        %v1227 = vmax.bf16 %v586, %v1188
        %v1228 = vmax.bf16 %v587, %v1190
        %v1229 = vmax.bf16 %v589, %v1192
        %v1230 = vmax.bf16 %v590, %v1194
        %v1231 = vmax.bf16 %v592, %v1196
        %v1232 = vmax.bf16 %v593, %v1198
        %v1233 = vmax.bf16 %v595, %v1200
        %v1234 = vmax.bf16 %v596, %v1202
        %vm1235 = vsmask.f32 3328
        %vm1236 = vsmask.f32 7440
        %vm1237 = vmor %vm1235, %vm1236
        %v1239 = vshrl.u32 %v574, 16
        %v1241 = vrot.slane %v1239, 4
        %v1242 = vshll.u32 %v574, 16
        %v1244 = vrot.slane %v1242, 5
        %v1245 = vor.u32 %v1241, %v1244
        %v1246 = vrot.slane %v1245, 4
        %v1248 = vshll.u32 %v575, 16
        %v1250 = vrot.slane %v1248, 5
        %v1251 = vsel %vm1237, %v1246, %v1250
        %v1252 = vshrl.u32 %v575, 16
        %v1254 = vrot.slane %v1252, 4
        %v1255 = vor.u32 %v1254, %v1250
        %v1256 = vrot.slane %v1255, 4
        %v1258 = vshll.u32 %v576, 16
        %v1260 = vrot.slane %v1258, 5
        %v1261 = vsel %vm1237, %v1256, %v1260
        %v1263 = vshrl.u32 %v577, 16
        %v1265 = vrot.slane %v1263, 4
        %v1266 = vshll.u32 %v577, 16
        %v1268 = vrot.slane %v1266, 5
        %v1269 = vor.u32 %v1265, %v1268
        %v1270 = vrot.slane %v1269, 4
        %v1272 = vshll.u32 %v578, 16
        %v1274 = vrot.slane %v1272, 5
        %v1275 = vsel %vm1237, %v1270, %v1274
        %v1276 = vshrl.u32 %v578, 16
        %v1278 = vrot.slane %v1276, 4
        %v1279 = vor.u32 %v1278, %v1274
        %v1280 = vrot.slane %v1279, 4
        %v1282 = vshll.u32 %v579, 16
        %v1284 = vrot.slane %v1282, 5
        %v1285 = vsel %vm1237, %v1280, %v1284
        %v1287 = vshrl.u32 %v580, 16
        %v1289 = vrot.slane %v1287, 4
        %v1290 = vshll.u32 %v580, 16
        %v1292 = vrot.slane %v1290, 5
        %v1293 = vor.u32 %v1289, %v1292
        %v1294 = vrot.slane %v1293, 4
        %v1296 = vshll.u32 %v581, 16
        %v1298 = vrot.slane %v1296, 5
        %v1299 = vsel %vm1237, %v1294, %v1298
        %v1300 = vshrl.u32 %v581, 16
        %v1302 = vrot.slane %v1300, 4
        %v1303 = vor.u32 %v1302, %v1298
        %v1304 = vrot.slane %v1303, 4
        %v1306 = vshll.u32 %v582, 16
        %v1308 = vrot.slane %v1306, 5
        %v1309 = vsel %vm1237, %v1304, %v1308
        %v1311 = vshrl.u32 %v583, 16
        %v1313 = vrot.slane %v1311, 4
        %v1314 = vshll.u32 %v583, 16
        %v1316 = vrot.slane %v1314, 5
        %v1317 = vor.u32 %v1313, %v1316
        %v1318 = vrot.slane %v1317, 4
        %v1320 = vshll.u32 %v584, 16
        %v1322 = vrot.slane %v1320, 5
        %v1323 = vsel %vm1237, %v1318, %v1322
        %v1324 = vshrl.u32 %v584, 16
        %v1326 = vrot.slane %v1324, 4
        %v1327 = vor.u32 %v1326, %v1322
        %v1328 = vrot.slane %v1327, 4
        %v1330 = vshll.u32 %v585, 16
        %v1332 = vrot.slane %v1330, 5
        %v1333 = vsel %vm1237, %v1328, %v1332
        %v1335 = vshrl.u32 %v586, 16
        %v1337 = vrot.slane %v1335, 4
        %v1338 = vshll.u32 %v586, 16
        %v1340 = vrot.slane %v1338, 5
        %v1341 = vor.u32 %v1337, %v1340
        %v1342 = vrot.slane %v1341, 4
        %v1344 = vshll.u32 %v587, 16
        %v1346 = vrot.slane %v1344, 5
        %v1347 = vsel %vm1237, %v1342, %v1346
        %v1348 = vshrl.u32 %v587, 16
        %v1350 = vrot.slane %v1348, 4
        %v1351 = vor.u32 %v1350, %v1346
        %v1352 = vrot.slane %v1351, 4
        %v1354 = vshll.u32 %v588, 16
        %v1356 = vrot.slane %v1354, 5
        %v1357 = vsel %vm1237, %v1352, %v1356
        %v1359 = vshrl.u32 %v589, 16
        %v1361 = vrot.slane %v1359, 4
        %v1362 = vshll.u32 %v589, 16
        %v1364 = vrot.slane %v1362, 5
        %v1365 = vor.u32 %v1361, %v1364
        %v1366 = vrot.slane %v1365, 4
        %v1368 = vshll.u32 %v590, 16
        %v1370 = vrot.slane %v1368, 5
        %v1371 = vsel %vm1237, %v1366, %v1370
        %v1372 = vshrl.u32 %v590, 16
        %v1374 = vrot.slane %v1372, 4
        %v1375 = vor.u32 %v1374, %v1370
        %v1376 = vrot.slane %v1375, 4
        %v1378 = vshll.u32 %v591, 16
        %v1380 = vrot.slane %v1378, 5
        %v1381 = vsel %vm1237, %v1376, %v1380
        %v1383 = vshrl.u32 %v592, 16
        %v1385 = vrot.slane %v1383, 4
        %v1386 = vshll.u32 %v592, 16
        %v1388 = vrot.slane %v1386, 5
        %v1389 = vor.u32 %v1385, %v1388
        %v1390 = vrot.slane %v1389, 4
        %v1392 = vshll.u32 %v593, 16
        %v1394 = vrot.slane %v1392, 5
        %v1395 = vsel %vm1237, %v1390, %v1394
        %v1396 = vshrl.u32 %v593, 16
        %v1398 = vrot.slane %v1396, 4
        %v1399 = vor.u32 %v1398, %v1394
        %v1400 = vrot.slane %v1399, 4
        %v1402 = vshll.u32 %v594, 16
        %v1404 = vrot.slane %v1402, 5
        %v1405 = vsel %vm1237, %v1400, %v1404
        %v1407 = vshrl.u32 %v595, 16
        %v1409 = vrot.slane %v1407, 4
        %v1410 = vshll.u32 %v595, 16
        %v1412 = vrot.slane %v1410, 5
        %v1413 = vor.u32 %v1409, %v1412
        %v1414 = vrot.slane %v1413, 4
        %v1416 = vshll.u32 %v596, 16
        %v1418 = vrot.slane %v1416, 5
        %v1419 = vsel %vm1237, %v1414, %v1418
        %v1420 = vshrl.u32 %v596, 16
        %v1422 = vrot.slane %v1420, 4
        %v1423 = vor.u32 %v1422, %v1418
        %v1424 = vrot.slane %v1423, 4
        %v1426 = vshll.u32 %v597, 16
        %v1428 = vrot.slane %v1426, 5
        %v1429 = vsel %vm1237, %v1424, %v1428
        %v1446 = vmax.bf16 %v1219, %v1251
        %v1447 = vmax.bf16 %v1220, %v1261
        %v1448 = vmax.bf16 %v1221, %v1275
        %v1449 = vmax.bf16 %v1222, %v1285
        %v1450 = vmax.bf16 %v1223, %v1299
        %v1451 = vmax.bf16 %v1224, %v1309
        %v1452 = vmax.bf16 %v1225, %v1323
        %v1453 = vmax.bf16 %v1226, %v1333
        %v1454 = vmax.bf16 %v1227, %v1347
        %v1455 = vmax.bf16 %v1228, %v1357
        %v1456 = vmax.bf16 %v1229, %v1371
        %v1457 = vmax.bf16 %v1230, %v1381
        %v1458 = vmax.bf16 %v1231, %v1395
        %v1459 = vmax.bf16 %v1232, %v1405
        %v1460 = vmax.bf16 %v1233, %v1419
        %v1461 = vmax.bf16 %v1234, %v1429
        %s1462 = scalar_lea.vmem %s545, 96 [#allocation2]
        %v1463 = vld [vmem:[%s1462] sm:$0xf]
        %v1464 = vld [vmem:[%s1462 + $0x4] sm:$0xf]
        %v1465 = vld [vmem:[%s1462 + $0x8] sm:$0xf]
        %v1466 = vld [vmem:[%s1462 + $0xc] sm:$0xf]
        %v1467 = vld [vmem:[%s1462 + $0x10] sm:$0xf]
        %v1468 = vld [vmem:[%s1462 + $0x14] sm:$0xf]
        %v1469 = vld [vmem:[%s1462 + $0x18] sm:$0xf]
        %v1470 = vld [vmem:[%s1462 + $0x1c] sm:$0xf]
        %v1471 = vld [vmem:[%s1462 + $0x20] sm:$0xf]
        %v1472 = vld [vmem:[%s1462 + $0x24] sm:$0xf]
        %v1473 = vld [vmem:[%s1462 + $0x28] sm:$0xf]
        %v1474 = vld [vmem:[%s1462 + $0x2c] sm:$0xf]
        %v1475 = vld [vmem:[%s1462 + $0x30] sm:$0xf]
        %v1476 = vld [vmem:[%s1462 + $0x34] sm:$0xf]
        %v1477 = vld [vmem:[%s1462 + $0x38] sm:$0xf]
        %v1478 = vld [vmem:[%s1462 + $0x3c] sm:$0xf]
        %v1479 = vld [vmem:[%s1462 + $0x40] sm:$0xf]
        %v1480 = vld [vmem:[%s1462 + $0x44] sm:$0xf]
        %v1481 = vld [vmem:[%s1462 + $0x48] sm:$0xf]
        %v1482 = vld [vmem:[%s1462 + $0x4c] sm:$0xf]
        %v1483 = vld [vmem:[%s1462 + $0x50] sm:$0xf]
        %v1484 = vld [vmem:[%s1462 + $0x54] sm:$0xf]
        %v1485 = vld [vmem:[%s1462 + $0x58] sm:$0xf]
        %v1486 = vld [vmem:[%s1462 + $0x5c] sm:$0xf]
        %vm1487 = vcmp.gt.bf16.partialorder %v1463, 4020432802
        %vm1488 = vcmp.gt.bf16.partialorder %v1464, 4020432802
        %vm1489 = vcmp.gt.bf16.partialorder %v1465, 4020432802
        %vm1490 = vcmp.gt.bf16.partialorder %v1466, 4020432802
        %vm1491 = vcmp.gt.bf16.partialorder %v1467, 4020432802
        %vm1492 = vcmp.gt.bf16.partialorder %v1468, 4020432802
        %vm1493 = vcmp.gt.bf16.partialorder %v1469, 4020432802
        %vm1494 = vcmp.gt.bf16.partialorder %v1470, 4020432802
        %vm1495 = vcmp.gt.bf16.partialorder %v1471, 4020432802
        %vm1496 = vcmp.gt.bf16.partialorder %v1472, 4020432802
        %vm1497 = vcmp.gt.bf16.partialorder %v1473, 4020432802
        %vm1498 = vcmp.gt.bf16.partialorder %v1474, 4020432802
        %vm1499 = vcmp.gt.bf16.partialorder %v1475, 4020432802
        %vm1500 = vcmp.gt.bf16.partialorder %v1476, 4020432802
        %vm1501 = vcmp.gt.bf16.partialorder %v1477, 4020432802
        %vm1502 = vcmp.gt.bf16.partialorder %v1478, 4020432802
        %vm1503 = vcmp.gt.bf16.partialorder %v1479, 4020432802
        %vm1504 = vcmp.gt.bf16.partialorder %v1480, 4020432802
        %vm1505 = vcmp.gt.bf16.partialorder %v1481, 4020432802
        %vm1506 = vcmp.gt.bf16.partialorder %v1482, 4020432802
        %vm1507 = vcmp.gt.bf16.partialorder %v1483, 4020432802
        %vm1508 = vcmp.gt.bf16.partialorder %v1484, 4020432802
        %vm1509 = vcmp.gt.bf16.partialorder %v1485, 4020432802
        %vm1510 = vcmp.gt.bf16.partialorder %v1486, 4020432802
        %v1511 = vsel %vm1487, %v1463, 0
        %v1512 = vsel %vm1488, %v1464, 0
        %v1513 = vsel %vm1489, %v1465, 0
        %v1514 = vsel %vm1490, %v1466, 0
        %v1515 = vsel %vm1491, %v1467, 0
        %v1516 = vsel %vm1492, %v1468, 0
        %v1517 = vsel %vm1493, %v1469, 0
        %v1518 = vsel %vm1494, %v1470, 0
        %v1519 = vsel %vm1495, %v1471, 0
        %v1520 = vsel %vm1496, %v1472, 0
        %v1521 = vsel %vm1497, %v1473, 0
        %v1522 = vsel %vm1498, %v1474, 0
        %v1523 = vsel %vm1499, %v1475, 0
        %v1524 = vsel %vm1500, %v1476, 0
        %v1525 = vsel %vm1501, %v1477, 0
        %v1526 = vsel %vm1502, %v1478, 0
        %v1527 = vsel %vm1503, %v1479, 0
        %v1528 = vsel %vm1504, %v1480, 0
        %v1529 = vsel %vm1505, %v1481, 0
        %v1530 = vsel %vm1506, %v1482, 0
        %v1531 = vsel %vm1507, %v1483, 0
        %v1532 = vsel %vm1508, %v1484, 0
        %v1533 = vsel %vm1509, %v1485, 0
        %v1534 = vsel %vm1510, %v1486, 0
        %s1535 = scalar_lea.vmem %s1, 64
        %v1536 = vld [vmem:[%s1535] sm:$0xf]
        %v1537 = vld [vmem:[%s1535 + $0x4] sm:$0xf]
        %v1538 = vld [vmem:[%s1535 + $0x8] sm:$0xf]
        %v1539 = vld [vmem:[%s1535 + $0xc] sm:$0xf]
        %v1540 = vld [vmem:[%s1535 + $0x10] sm:$0xf]
        %v1541 = vld [vmem:[%s1535 + $0x14] sm:$0xf]
        %v1542 = vld [vmem:[%s1535 + $0x18] sm:$0xf]
        %v1543 = vld [vmem:[%s1535 + $0x1c] sm:$0xf]
        %v1568 = vunpack.c.l.b16 %v1511
        %v1569 = vunpack.c.l.b16 %v1512
        %v1570 = vunpack.c.l.b16 %v1513
        %v1571 = vunpack.c.l.b16 %v1514
        %v1572 = vunpack.c.l.b16 %v1515
        %v1573 = vunpack.c.l.b16 %v1516
        %v1574 = vunpack.c.l.b16 %v1517
        %v1575 = vunpack.c.l.b16 %v1518
        %v1576 = vunpack.c.l.b16 %v1519
        %v1577 = vunpack.c.l.b16 %v1520
        %v1578 = vunpack.c.l.b16 %v1521
        %v1579 = vunpack.c.l.b16 %v1522
        %v1580 = vunpack.c.l.b16 %v1523
        %v1581 = vunpack.c.l.b16 %v1524
        %v1582 = vunpack.c.l.b16 %v1525
        %v1583 = vunpack.c.l.b16 %v1526
        %v1584 = vunpack.c.l.b16 %v1527
        %v1585 = vunpack.c.l.b16 %v1528
        %v1586 = vunpack.c.l.b16 %v1529
        %v1587 = vunpack.c.l.b16 %v1530
        %v1588 = vunpack.c.l.b16 %v1531
        %v1589 = vunpack.c.l.b16 %v1532
        %v1590 = vunpack.c.l.b16 %v1533
        %v1591 = vunpack.c.l.b16 %v1534
        %v1592 = vpack.c.b16 %v1569, %v1568
        %v1593 = vpack.c.b16 %v1571, %v1570
        %v1594 = vpack.c.b16 %v1573, %v1572
        %v1595 = vpack.c.b16 %v1575, %v1574
        %v1596 = vpack.c.b16 %v1577, %v1576
        %v1597 = vpack.c.b16 %v1579, %v1578
        %v1598 = vpack.c.b16 %v1581, %v1580
        %v1599 = vpack.c.b16 %v1583, %v1582
        %v1600 = vpack.c.b16 %v1585, %v1584
        %v1601 = vpack.c.b16 %v1587, %v1586
        %v1602 = vpack.c.b16 %v1589, %v1588
        %v1603 = vpack.c.b16 %v1591, %v1590
        %v1612 = vunpack.c.l.b16 %v1536
        %v1613 = vunpack.c.l.b16 %v1537
        %v1614 = vunpack.c.l.b16 %v1538
        %v1615 = vunpack.c.l.b16 %v1539
        %v1616 = vunpack.c.l.b16 %v1540
        %v1617 = vunpack.c.l.b16 %v1541
        %v1618 = vunpack.c.l.b16 %v1542
        %v1619 = vunpack.c.l.b16 %v1543
        %v1620 = vpack.c.b16 %v1613, %v1612
        %v1621 = vpack.c.b16 %v1615, %v1614
        %v1622 = vpack.c.b16 %v1617, %v1616
        %v1623 = vpack.c.b16 %v1619, %v1618
        %v1629 = vsel %vm738, %v1592, 0
        %v1632 = vsel %vm738, %v1593, 0
        %v1635 = vsel %vm738, %v1594, 0
        %v1638 = vsel %vm738, %v1595, 0
        %v1641 = vsel %vm738, %v1596, 0
        %v1644 = vsel %vm738, %v1597, 0
        %v1647 = vsel %vm738, %v1598, 0
        %v1650 = vsel %vm738, %v1599, 0
        %v1653 = vsel %vm738, %v1600, 0
        %v1656 = vsel %vm738, %v1601, 0
        %v1659 = vsel %vm738, %v1602, 0
        %v1662 = vsel %vm738, %v1603, 0
        %1664 = vmatprep.subr.bf16.mxu0 0
        %1665 = vmatpush1.bf16.msra.mxu0 0
        %1666 = vmatprep.subr.bf16.mxu0 0
        %1667 = vmatpush1.bf16.msra.mxu0 0
        %1668 = vmatprep.subr.bf16.mxu0 0
        %1669 = vmatpush1.bf16.msra.mxu0 0
        %1670 = vmatprep.subr.bf16.mxu0 0
        %1671 = vmatpush1.bf16.msra.mxu0 0
        %1672 = vmatprep.subr.bf16.mxu0 0
        %1673 = vmatpush1.bf16.msra.mxu0 %v1623
        %1674 = vmatprep.subr.bf16.mxu0 0
        %1675 = vmatpush1.bf16.msra.mxu0 %v1622
        %1676 = vmatprep.subr.bf16.mxu0 0
        %1677 = vmatpush1.bf16.msra.mxu0 %v1621
        %1678 = vmatprep.subr.bf16.mxu0 0
        %1679 = vmatpush1.bf16.msra.mxu0 %v1620
        %1680 = vmatprep.subr.bf16.mxu0 0
        %1681 = vmatpush2.bf16.msra.mxu0 0
        %1682 = vmatprep.subr.bf16.mxu0 0
        %1683 = vmatpush2.bf16.msra.mxu0 0
        %1684 = vmatprep.subr.bf16.mxu0 0
        %1685 = vmatpush2.bf16.msra.mxu0 0
        %1686 = vmatprep.subr.bf16.mxu0 0
        %1687 = vmatpush2.bf16.msra.mxu0 0
        %1688 = vmatprep.subr.bf16.mxu0 0
        %1689 = vmatpush2.bf16.msra.mxu0 0
        %1690 = vmatprep.subr.bf16.mxu0 0
        %1691 = vmatpush2.bf16.msra.mxu0 0
        %1692 = vmatprep.subr.bf16.mxu0 0
        %1693 = vmatpush2.bf16.msra.mxu0 0
        %1694 = vmatprep.subr.bf16.mxu0 0
        %1695 = vmatpush2.bf16.msra.mxu0 0
        %1696 = vmatprep.mubr.bf16.mxu0 0
        %1697 = vmatmul.mubr.bf16.gmra.mxu0 %v1629
        %v1698 = vpop.f32.mrf.mxu0
        %v1699 = vadd.f32 0.0, %v1698
        %v1700 = vpop.f32.mrf.mxu0
        %v1701 = vpop.f32.mrf.mxu0
        %v1702 = vadd.f32 0.0, %v1701
        %v1703 = vpop.f32.mrf.mxu0
        %1704 = vmatprep.mubr.bf16.mxu0 0
        %1705 = vmatmul.mubr.bf16.gmra.mxu0 %v1632
        %v1706 = vpop.f32.mrf.mxu0
        %v1707 = vpop.f32.mrf.mxu0
        %v1708 = vpop.f32.mrf.mxu0
        %v1709 = vadd.f32 0.0, %v1708
        %v1710 = vpop.f32.mrf.mxu0
        %1711 = vmatprep.mubr.bf16.mxu0 0
        %1712 = vmatmul.mubr.bf16.gmra.mxu0 %v1635
        %v1713 = vpop.f32.mrf.mxu0
        %v1714 = vadd.f32 0.0, %v1713
        %v1715 = vpop.f32.mrf.mxu0
        %v1716 = vpop.f32.mrf.mxu0
        %v1717 = vpop.f32.mrf.mxu0
        %1718 = vmatprep.mubr.bf16.mxu0 0
        %1719 = vmatmul.mubr.bf16.gmra.mxu0 %v1638
        %v1720 = vpop.f32.mrf.mxu0
        %v1721 = vadd.f32 0.0, %v1720
        %v1722 = vpop.f32.mrf.mxu0
        %v1723 = vpop.f32.mrf.mxu0
        %v1724 = vadd.f32 0.0, %v1723
        %v1725 = vpop.f32.mrf.mxu0
        %1726 = vmatprep.mubr.bf16.mxu0 0
        %1727 = vmatmul.mubr.bf16.gmra.mxu0 %v1641
        %v1728 = vpop.f32.mrf.mxu0
        %v1729 = vpop.f32.mrf.mxu0
        %v1730 = vpop.f32.mrf.mxu0
        %v1731 = vadd.f32 0.0, %v1730
        %v1732 = vpop.f32.mrf.mxu0
        %1733 = vmatprep.mubr.bf16.mxu0 0
        %1734 = vmatmul.mubr.bf16.gmra.mxu0 %v1644
        %v1735 = vpop.f32.mrf.mxu0
        %v1736 = vadd.f32 0.0, %v1735
        %v1737 = vpop.f32.mrf.mxu0
        %v1738 = vpop.f32.mrf.mxu0
        %v1739 = vpop.f32.mrf.mxu0
        %1740 = vmatprep.mubr.bf16.mxu0 0
        %1741 = vmatmul.mubr.bf16.gmra.mxu0 %v1647
        %v1742 = vpop.f32.mrf.mxu0
        %v1743 = vadd.f32 0.0, %v1742
        %v1744 = vpop.f32.mrf.mxu0
        %v1745 = vpop.f32.mrf.mxu0
        %v1746 = vadd.f32 0.0, %v1745
        %v1747 = vpop.f32.mrf.mxu0
        %1748 = vmatprep.mubr.bf16.mxu0 0
        %1749 = vmatmul.mubr.bf16.gmra.mxu0 %v1650
        %v1750 = vpop.f32.mrf.mxu0
        %v1751 = vpop.f32.mrf.mxu0
        %v1752 = vpop.f32.mrf.mxu0
        %v1753 = vadd.f32 0.0, %v1752
        %v1754 = vpop.f32.mrf.mxu0
        %1755 = vmatprep.mubr.bf16.mxu0 0
        %1756 = vmatmul.mubr.bf16.gmra.mxu0 %v1653
        %v1757 = vpop.f32.mrf.mxu0
        %v1758 = vadd.f32 0.0, %v1757
        %v1759 = vpop.f32.mrf.mxu0
        %v1760 = vpop.f32.mrf.mxu0
        %v1761 = vpop.f32.mrf.mxu0
        %1762 = vmatprep.mubr.bf16.mxu0 0
        %1763 = vmatmul.mubr.bf16.gmra.mxu0 %v1656
        %v1764 = vpop.f32.mrf.mxu0
        %v1765 = vadd.f32 0.0, %v1764
        %v1766 = vpop.f32.mrf.mxu0
        %v1767 = vpop.f32.mrf.mxu0
        %v1768 = vadd.f32 0.0, %v1767
        %v1769 = vpop.f32.mrf.mxu0
        %1770 = vmatprep.mubr.bf16.mxu0 0
        %1771 = vmatmul.mubr.bf16.gmra.mxu0 %v1659
        %v1772 = vpop.f32.mrf.mxu0
        %v1773 = vpop.f32.mrf.mxu0
        %v1774 = vpop.f32.mrf.mxu0
        %v1775 = vadd.f32 0.0, %v1774
        %v1776 = vpop.f32.mrf.mxu0
        %1777 = vmatprep.mubr.bf16.mxu0 0
        %1778 = vmatmul.mubr.bf16.gmra.mxu0 %v1662
        %v1779 = vpop.f32.mrf.mxu0
        %v1780 = vadd.f32 0.0, %v1779
        %v1781 = vpop.f32.mrf.mxu0
        %v1782 = vpop.f32.mrf.mxu0
        %v1783 = vpop.f32.mrf.mxu0
        %1784 = vdwg.mxu0
        %v1785 = vadd.f32 %v1139, %v1699
        %v1786 = vadd.f32 %v1140, %v1702
        %v1787 = vadd.f32 %v1141, %v1709
        %v1788 = vadd.f32 %v1142, %v1714
        %v1789 = vadd.f32 %v1143, %v1721
        %v1790 = vadd.f32 %v1144, %v1724
        %v1791 = vadd.f32 %v1145, %v1731
        %v1792 = vadd.f32 %v1146, %v1736
        %v1793 = vadd.f32 %v1147, %v1743
        %v1794 = vadd.f32 %v1148, %v1746
        %v1795 = vadd.f32 %v1149, %v1753
        %v1796 = vadd.f32 %v1150, %v1758
        %v1797 = vadd.f32 %v1151, %v1765
        %v1798 = vadd.f32 %v1152, %v1768
        %v1799 = vadd.f32 %v1153, %v1775
        %v1800 = vadd.f32 %v1154, %v1780
        %s1801 = scalar_lea.vmem %s1, 96
        %v1802 = vld [vmem:[%s1801] sm:$0xf]
        %v1803 = vld [vmem:[%s1801 + $0x4] sm:$0xf]
        %v1804 = vld [vmem:[%s1801 + $0x8] sm:$0xf]
        %v1805 = vld [vmem:[%s1801 + $0xc] sm:$0xf]
        %v1806 = vld [vmem:[%s1801 + $0x10] sm:$0xf]
        %v1807 = vld [vmem:[%s1801 + $0x14] sm:$0xf]
        %v1808 = vld [vmem:[%s1801 + $0x18] sm:$0xf]
        %v1809 = vld [vmem:[%s1801 + $0x1c] sm:$0xf]
        %v1818 = vunpack.c.l.b16 %v1802
        %v1819 = vunpack.c.l.b16 %v1803
        %v1820 = vunpack.c.l.b16 %v1804
        %v1821 = vunpack.c.l.b16 %v1805
        %v1822 = vunpack.c.l.b16 %v1806
        %v1823 = vunpack.c.l.b16 %v1807
        %v1824 = vunpack.c.l.b16 %v1808
        %v1825 = vunpack.c.l.b16 %v1809
        %v1826 = vpack.c.b16 %v1819, %v1818
        %v1827 = vpack.c.b16 %v1821, %v1820
        %v1828 = vpack.c.b16 %v1823, %v1822
        %v1829 = vpack.c.b16 %v1825, %v1824
        %1834 = vmatprep.subr.bf16.mxu0 0
        %1835 = vmatpush1.bf16.msra.mxu0 0
        %1836 = vmatprep.subr.bf16.mxu0 0
        %1837 = vmatpush1.bf16.msra.mxu0 0
        %1838 = vmatprep.subr.bf16.mxu0 0
        %1839 = vmatpush1.bf16.msra.mxu0 0
        %1840 = vmatprep.subr.bf16.mxu0 0
        %1841 = vmatpush1.bf16.msra.mxu0 0
        %1842 = vmatprep.subr.bf16.mxu0 0
        %1843 = vmatpush1.bf16.msra.mxu0 %v1829
        %1844 = vmatprep.subr.bf16.mxu0 0
        %1845 = vmatpush1.bf16.msra.mxu0 %v1828
        %1846 = vmatprep.subr.bf16.mxu0 0
        %1847 = vmatpush1.bf16.msra.mxu0 %v1827
        %1848 = vmatprep.subr.bf16.mxu0 0
        %1849 = vmatpush1.bf16.msra.mxu0 %v1826
        %1850 = vmatprep.subr.bf16.mxu0 0
        %1851 = vmatpush2.bf16.msra.mxu0 0
        %1852 = vmatprep.subr.bf16.mxu0 0
        %1853 = vmatpush2.bf16.msra.mxu0 0
        %1854 = vmatprep.subr.bf16.mxu0 0
        %1855 = vmatpush2.bf16.msra.mxu0 0
        %1856 = vmatprep.subr.bf16.mxu0 0
        %1857 = vmatpush2.bf16.msra.mxu0 0
        %1858 = vmatprep.subr.bf16.mxu0 0
        %1859 = vmatpush2.bf16.msra.mxu0 0
        %1860 = vmatprep.subr.bf16.mxu0 0
        %1861 = vmatpush2.bf16.msra.mxu0 0
        %1862 = vmatprep.subr.bf16.mxu0 0
        %1863 = vmatpush2.bf16.msra.mxu0 0
        %1864 = vmatprep.subr.bf16.mxu0 0
        %1865 = vmatpush2.bf16.msra.mxu0 0
        %1866 = vmatprep.mubr.bf16.mxu0 0
        %1867 = vmatmul.mubr.bf16.gmra.mxu0 %v1629
        %v1868 = vpop.f32.mrf.mxu0
        %v1869 = vadd.f32 0.0, %v1868
        %v1870 = vpop.f32.mrf.mxu0
        %v1871 = vpop.f32.mrf.mxu0
        %v1872 = vadd.f32 0.0, %v1871
        %v1873 = vpop.f32.mrf.mxu0
        %1874 = vmatprep.mubr.bf16.mxu0 0
        %1875 = vmatmul.mubr.bf16.gmra.mxu0 %v1632
        %v1876 = vpop.f32.mrf.mxu0
        %v1877 = vadd.f32 0.0, %v1876
        %v1878 = vpop.f32.mrf.mxu0
        %v1879 = vpop.f32.mrf.mxu0
        %v1880 = vadd.f32 0.0, %v1879
        %v1881 = vpop.f32.mrf.mxu0
        %1882 = vmatprep.mubr.bf16.mxu0 0
        %1883 = vmatmul.mubr.bf16.gmra.mxu0 %v1635
        %v1884 = vpop.f32.mrf.mxu0
        %v1885 = vadd.f32 0.0, %v1884
        %v1886 = vpop.f32.mrf.mxu0
        %v1887 = vpop.f32.mrf.mxu0
        %v1888 = vadd.f32 0.0, %v1887
        %v1889 = vpop.f32.mrf.mxu0
        %1890 = vmatprep.mubr.bf16.mxu0 0
        %1891 = vmatmul.mubr.bf16.gmra.mxu0 %v1638
        %v1892 = vpop.f32.mrf.mxu0
        %v1893 = vadd.f32 0.0, %v1892
        %v1894 = vpop.f32.mrf.mxu0
        %v1895 = vpop.f32.mrf.mxu0
        %v1896 = vadd.f32 0.0, %v1895
        %v1897 = vpop.f32.mrf.mxu0
        %1898 = vmatprep.mubr.bf16.mxu0 0
        %1899 = vmatmul.mubr.bf16.gmra.mxu0 %v1641
        %v1900 = vpop.f32.mrf.mxu0
        %v1901 = vadd.f32 0.0, %v1900
        %v1902 = vpop.f32.mrf.mxu0
        %v1903 = vpop.f32.mrf.mxu0
        %v1904 = vadd.f32 0.0, %v1903
        %v1905 = vpop.f32.mrf.mxu0
        %1906 = vmatprep.mubr.bf16.mxu0 0
        %1907 = vmatmul.mubr.bf16.gmra.mxu0 %v1644
        %v1908 = vpop.f32.mrf.mxu0
        %v1909 = vadd.f32 0.0, %v1908
        %v1910 = vpop.f32.mrf.mxu0
        %v1911 = vpop.f32.mrf.mxu0
        %v1912 = vadd.f32 0.0, %v1911
        %v1913 = vpop.f32.mrf.mxu0
        %1914 = vmatprep.mubr.bf16.mxu0 0
        %1915 = vmatmul.mubr.bf16.gmra.mxu0 %v1647
        %v1916 = vpop.f32.mrf.mxu0
        %v1917 = vadd.f32 0.0, %v1916
        %v1918 = vpop.f32.mrf.mxu0
        %v1919 = vpop.f32.mrf.mxu0
        %v1920 = vadd.f32 0.0, %v1919
        %v1921 = vpop.f32.mrf.mxu0
        %1922 = vmatprep.mubr.bf16.mxu0 0
        %1923 = vmatmul.mubr.bf16.gmra.mxu0 %v1650
        %v1924 = vpop.f32.mrf.mxu0
        %v1925 = vadd.f32 0.0, %v1924
        %v1926 = vpop.f32.mrf.mxu0
        %v1927 = vpop.f32.mrf.mxu0
        %v1928 = vadd.f32 0.0, %v1927
        %v1929 = vpop.f32.mrf.mxu0
        %1930 = vmatprep.mubr.bf16.mxu0 0
        %1931 = vmatmul.mubr.bf16.gmra.mxu0 %v1653
        %v1932 = vpop.f32.mrf.mxu0
        %v1933 = vadd.f32 0.0, %v1932
        %v1934 = vpop.f32.mrf.mxu0
        %v1935 = vpop.f32.mrf.mxu0
        %v1936 = vadd.f32 0.0, %v1935
        %v1937 = vpop.f32.mrf.mxu0
        %1938 = vmatprep.mubr.bf16.mxu0 0
        %1939 = vmatmul.mubr.bf16.gmra.mxu0 %v1656
        %v1940 = vpop.f32.mrf.mxu0
        %v1941 = vadd.f32 0.0, %v1940
        %v1942 = vpop.f32.mrf.mxu0
        %v1943 = vpop.f32.mrf.mxu0
        %v1944 = vadd.f32 0.0, %v1943
        %v1945 = vpop.f32.mrf.mxu0
        %1946 = vmatprep.mubr.bf16.mxu0 0
        %1947 = vmatmul.mubr.bf16.gmra.mxu0 %v1659
        %v1948 = vpop.f32.mrf.mxu0
        %v1949 = vadd.f32 0.0, %v1948
        %v1950 = vpop.f32.mrf.mxu0
        %v1951 = vpop.f32.mrf.mxu0
        %v1952 = vadd.f32 0.0, %v1951
        %v1953 = vpop.f32.mrf.mxu0
        %1954 = vmatprep.mubr.bf16.mxu0 0
        %1955 = vmatmul.mubr.bf16.gmra.mxu0 %v1662
        %v1956 = vpop.f32.mrf.mxu0
        %v1957 = vadd.f32 0.0, %v1956
        %v1958 = vpop.f32.mrf.mxu0
        %v1959 = vpop.f32.mrf.mxu0
        %v1960 = vadd.f32 0.0, %v1959
        %v1961 = vpop.f32.mrf.mxu0
        %1962 = vdwg.mxu0
        %v1987 = vrot.slane %v1869, 1
        %v1988 = vrot.slane %v1872, 1
        %v1989 = vsel %vm1082, %v1987, %v1988
        %v1990 = vrot.slane %v1877, 1
        %v1991 = vsel %vm1082, %v1988, %v1990
        %v1992 = vrot.slane %v1880, 1
        %v1993 = vrot.slane %v1885, 1
        %v1994 = vsel %vm1082, %v1992, %v1993
        %v1995 = vrot.slane %v1888, 1
        %v1996 = vsel %vm1082, %v1993, %v1995
        %v1997 = vrot.slane %v1893, 1
        %v1998 = vrot.slane %v1896, 1
        %v1999 = vsel %vm1082, %v1997, %v1998
        %v2000 = vrot.slane %v1901, 1
        %v2001 = vsel %vm1082, %v1998, %v2000
        %v2002 = vrot.slane %v1904, 1
        %v2003 = vrot.slane %v1909, 1
        %v2004 = vsel %vm1082, %v2002, %v2003
        %v2005 = vrot.slane %v1912, 1
        %v2006 = vsel %vm1082, %v2003, %v2005
        %v2007 = vrot.slane %v1917, 1
        %v2008 = vrot.slane %v1920, 1
        %v2009 = vsel %vm1082, %v2007, %v2008
        %v2010 = vrot.slane %v1925, 1
        %v2011 = vsel %vm1082, %v2008, %v2010
        %v2012 = vrot.slane %v1928, 1
        %v2013 = vrot.slane %v1933, 1
        %v2014 = vsel %vm1082, %v2012, %v2013
        %v2015 = vrot.slane %v1936, 1
        %v2016 = vsel %vm1082, %v2013, %v2015
        %v2017 = vrot.slane %v1941, 1
        %v2018 = vrot.slane %v1944, 1
        %v2019 = vsel %vm1082, %v2017, %v2018
        %v2020 = vrot.slane %v1949, 1
        %v2021 = vsel %vm1082, %v2018, %v2020
        %v2022 = vrot.slane %v1952, 1
        %v2023 = vrot.slane %v1957, 1
        %v2024 = vsel %vm1082, %v2022, %v2023
        %v2025 = vrot.slane %v1960, 1
        %v2026 = vsel %vm1082, %v2023, %v2025
        %v2043 = vadd.f32 %v1785, %v1989
        %v2044 = vadd.f32 %v1786, %v1991
        %v2045 = vadd.f32 %v1787, %v1994
        %v2046 = vadd.f32 %v1788, %v1996
        %v2047 = vadd.f32 %v1789, %v1999
        %v2048 = vadd.f32 %v1790, %v2001
        %v2049 = vadd.f32 %v1791, %v2004
        %v2050 = vadd.f32 %v1792, %v2006
        %v2051 = vadd.f32 %v1793, %v2009
        %v2052 = vadd.f32 %v1794, %v2011
        %v2053 = vadd.f32 %v1795, %v2014
        %v2054 = vadd.f32 %v1796, %v2016
        %v2055 = vadd.f32 %v1797, %v2019
        %v2056 = vadd.f32 %v1798, %v2021
        %v2057 = vadd.f32 %v1799, %v2024
        %v2058 = vadd.f32 %v1800, %v2026
        %2075 = vrot.lane.b32.xlu0 %v1463, 96
        %v2076 = vpop.permute.xlu0 %2075
        %2077 = vrot.lane.b32.xlu0 %v1464, 96
        %v2078 = vpop.permute.xlu0 %2077
        %2079 = vrot.lane.b32.xlu0 %v1466, 96
        %v2080 = vpop.permute.xlu0 %2079
        %2081 = vrot.lane.b32.xlu0 %v1467, 96
        %v2082 = vpop.permute.xlu0 %2081
        %2083 = vrot.lane.b32.xlu0 %v1469, 96
        %v2084 = vpop.permute.xlu0 %2083
        %2085 = vrot.lane.b32.xlu0 %v1470, 96
        %v2086 = vpop.permute.xlu0 %2085
        %2087 = vrot.lane.b32.xlu0 %v1472, 96
        %v2088 = vpop.permute.xlu0 %2087
        %2089 = vrot.lane.b32.xlu0 %v1473, 96
        %v2090 = vpop.permute.xlu0 %2089
        %2091 = vrot.lane.b32.xlu0 %v1475, 96
        %v2092 = vpop.permute.xlu0 %2091
        %2093 = vrot.lane.b32.xlu0 %v1476, 96
        %v2094 = vpop.permute.xlu0 %2093
        %2095 = vrot.lane.b32.xlu0 %v1478, 96
        %v2096 = vpop.permute.xlu0 %2095
        %2097 = vrot.lane.b32.xlu0 %v1479, 96
        %v2098 = vpop.permute.xlu0 %2097
        %2099 = vrot.lane.b32.xlu0 %v1481, 96
        %v2100 = vpop.permute.xlu0 %2099
        %2101 = vrot.lane.b32.xlu0 %v1482, 96
        %v2102 = vpop.permute.xlu0 %2101
        %2103 = vrot.lane.b32.xlu0 %v1484, 96
        %v2104 = vpop.permute.xlu0 %2103
        %2105 = vrot.lane.b32.xlu0 %v1485, 96
        %v2106 = vpop.permute.xlu0 %2105
        %v2123 = vmax.bf16 %v1463, %v2076
        %v2124 = vmax.bf16 %v1464, %v2078
        %v2125 = vmax.bf16 %v1466, %v2080
        %v2126 = vmax.bf16 %v1467, %v2082
        %v2127 = vmax.bf16 %v1469, %v2084
        %v2128 = vmax.bf16 %v1470, %v2086
        %v2129 = vmax.bf16 %v1472, %v2088
        %v2130 = vmax.bf16 %v1473, %v2090
        %v2131 = vmax.bf16 %v1475, %v2092
        %v2132 = vmax.bf16 %v1476, %v2094
        %v2133 = vmax.bf16 %v1478, %v2096
        %v2134 = vmax.bf16 %v1479, %v2098
        %v2135 = vmax.bf16 %v1481, %v2100
        %v2136 = vmax.bf16 %v1482, %v2102
        %v2137 = vmax.bf16 %v1484, %v2104
        %v2138 = vmax.bf16 %v1485, %v2106
        %v2139 = vmax.bf16 %v1446, %v2123
        %v2140 = vmax.bf16 %v1447, %v2124
        %v2141 = vmax.bf16 %v1448, %v2125
        %v2142 = vmax.bf16 %v1449, %v2126
        %v2143 = vmax.bf16 %v1450, %v2127
        %v2144 = vmax.bf16 %v1451, %v2128
        %v2145 = vmax.bf16 %v1452, %v2129
        %v2146 = vmax.bf16 %v1453, %v2130
        %v2147 = vmax.bf16 %v1454, %v2131
        %v2148 = vmax.bf16 %v1455, %v2132
        %v2149 = vmax.bf16 %v1456, %v2133
        %v2150 = vmax.bf16 %v1457, %v2134
        %v2151 = vmax.bf16 %v1458, %v2135
        %v2152 = vmax.bf16 %v1459, %v2136
        %v2153 = vmax.bf16 %v1460, %v2137
        %v2154 = vmax.bf16 %v1461, %v2138
        %v2156 = vshrl.u32 %v1463, 16
        %v2158 = vrot.slane %v2156, 4
        %v2159 = vshll.u32 %v1463, 16
        %v2161 = vrot.slane %v2159, 5
        %v2162 = vor.u32 %v2158, %v2161
        %v2163 = vrot.slane %v2162, 4
        %v2165 = vshll.u32 %v1464, 16
        %v2167 = vrot.slane %v2165, 5
        %v2168 = vsel %vm1237, %v2163, %v2167
        %v2169 = vshrl.u32 %v1464, 16
        %v2171 = vrot.slane %v2169, 4
        %v2172 = vor.u32 %v2171, %v2167
        %v2173 = vrot.slane %v2172, 4
        %v2175 = vshll.u32 %v1465, 16
        %v2177 = vrot.slane %v2175, 5
        %v2178 = vsel %vm1237, %v2173, %v2177
        %v2180 = vshrl.u32 %v1466, 16
        %v2182 = vrot.slane %v2180, 4
        %v2183 = vshll.u32 %v1466, 16
        %v2185 = vrot.slane %v2183, 5
        %v2186 = vor.u32 %v2182, %v2185
        %v2187 = vrot.slane %v2186, 4
        %v2189 = vshll.u32 %v1467, 16
        %v2191 = vrot.slane %v2189, 5
        %v2192 = vsel %vm1237, %v2187, %v2191
        %v2193 = vshrl.u32 %v1467, 16
        %v2195 = vrot.slane %v2193, 4
        %v2196 = vor.u32 %v2195, %v2191
        %v2197 = vrot.slane %v2196, 4
        %v2199 = vshll.u32 %v1468, 16
        %v2201 = vrot.slane %v2199, 5
        %v2202 = vsel %vm1237, %v2197, %v2201
        %v2204 = vshrl.u32 %v1469, 16
        %v2206 = vrot.slane %v2204, 4
        %v2207 = vshll.u32 %v1469, 16
        %v2209 = vrot.slane %v2207, 5
        %v2210 = vor.u32 %v2206, %v2209
        %v2211 = vrot.slane %v2210, 4
        %v2213 = vshll.u32 %v1470, 16
        %v2215 = vrot.slane %v2213, 5
        %v2216 = vsel %vm1237, %v2211, %v2215
        %v2217 = vshrl.u32 %v1470, 16
        %v2219 = vrot.slane %v2217, 4
        %v2220 = vor.u32 %v2219, %v2215
        %v2221 = vrot.slane %v2220, 4
        %v2223 = vshll.u32 %v1471, 16
        %v2225 = vrot.slane %v2223, 5
        %v2226 = vsel %vm1237, %v2221, %v2225
        %v2228 = vshrl.u32 %v1472, 16
        %v2230 = vrot.slane %v2228, 4
        %v2231 = vshll.u32 %v1472, 16
        %v2233 = vrot.slane %v2231, 5
        %v2234 = vor.u32 %v2230, %v2233
        %v2235 = vrot.slane %v2234, 4
        %v2237 = vshll.u32 %v1473, 16
        %v2239 = vrot.slane %v2237, 5
        %v2240 = vsel %vm1237, %v2235, %v2239
        %v2241 = vshrl.u32 %v1473, 16
        %v2243 = vrot.slane %v2241, 4
        %v2244 = vor.u32 %v2243, %v2239
        %v2245 = vrot.slane %v2244, 4
        %v2247 = vshll.u32 %v1474, 16
        %v2249 = vrot.slane %v2247, 5
        %v2250 = vsel %vm1237, %v2245, %v2249
        %v2252 = vshrl.u32 %v1475, 16
        %v2254 = vrot.slane %v2252, 4
        %v2255 = vshll.u32 %v1475, 16
        %v2257 = vrot.slane %v2255, 5
        %v2258 = vor.u32 %v2254, %v2257
        %v2259 = vrot.slane %v2258, 4
        %v2261 = vshll.u32 %v1476, 16
        %v2263 = vrot.slane %v2261, 5
        %v2264 = vsel %vm1237, %v2259, %v2263
        %v2265 = vshrl.u32 %v1476, 16
        %v2267 = vrot.slane %v2265, 4
        %v2268 = vor.u32 %v2267, %v2263
        %v2269 = vrot.slane %v2268, 4
        %v2271 = vshll.u32 %v1477, 16
        %v2273 = vrot.slane %v2271, 5
        %v2274 = vsel %vm1237, %v2269, %v2273
        %v2276 = vshrl.u32 %v1478, 16
        %v2278 = vrot.slane %v2276, 4
        %v2279 = vshll.u32 %v1478, 16
        %v2281 = vrot.slane %v2279, 5
        %v2282 = vor.u32 %v2278, %v2281
        %v2283 = vrot.slane %v2282, 4
        %v2285 = vshll.u32 %v1479, 16
        %v2287 = vrot.slane %v2285, 5
        %v2288 = vsel %vm1237, %v2283, %v2287
        %v2289 = vshrl.u32 %v1479, 16
        %v2291 = vrot.slane %v2289, 4
        %v2292 = vor.u32 %v2291, %v2287
        %v2293 = vrot.slane %v2292, 4
        %v2295 = vshll.u32 %v1480, 16
        %v2297 = vrot.slane %v2295, 5
        %v2298 = vsel %vm1237, %v2293, %v2297
        %v2300 = vshrl.u32 %v1481, 16
        %v2302 = vrot.slane %v2300, 4
        %v2303 = vshll.u32 %v1481, 16
        %v2305 = vrot.slane %v2303, 5
        %v2306 = vor.u32 %v2302, %v2305
        %v2307 = vrot.slane %v2306, 4
        %v2309 = vshll.u32 %v1482, 16
        %v2311 = vrot.slane %v2309, 5
        %v2312 = vsel %vm1237, %v2307, %v2311
        %v2313 = vshrl.u32 %v1482, 16
        %v2315 = vrot.slane %v2313, 4
        %v2316 = vor.u32 %v2315, %v2311
        %v2317 = vrot.slane %v2316, 4
        %v2319 = vshll.u32 %v1483, 16
        %v2321 = vrot.slane %v2319, 5
        %v2322 = vsel %vm1237, %v2317, %v2321
        %v2324 = vshrl.u32 %v1484, 16
        %v2326 = vrot.slane %v2324, 4
        %v2327 = vshll.u32 %v1484, 16
        %v2329 = vrot.slane %v2327, 5
        %v2330 = vor.u32 %v2326, %v2329
        %v2331 = vrot.slane %v2330, 4
        %v2333 = vshll.u32 %v1485, 16
        %v2335 = vrot.slane %v2333, 5
        %v2336 = vsel %vm1237, %v2331, %v2335
        %v2337 = vshrl.u32 %v1485, 16
        %v2339 = vrot.slane %v2337, 4
        %v2340 = vor.u32 %v2339, %v2335
        %v2341 = vrot.slane %v2340, 4
        %v2343 = vshll.u32 %v1486, 16
        %v2345 = vrot.slane %v2343, 5
        %v2346 = vsel %vm1237, %v2341, %v2345
        %v2363 = vmax.bf16 %v2139, %v2168
        %v2364 = vmax.bf16 %v2140, %v2178
        %v2365 = vmax.bf16 %v2141, %v2192
        %v2366 = vmax.bf16 %v2142, %v2202
        %v2367 = vmax.bf16 %v2143, %v2216
        %v2368 = vmax.bf16 %v2144, %v2226
        %v2369 = vmax.bf16 %v2145, %v2240
        %v2370 = vmax.bf16 %v2146, %v2250
        %v2371 = vmax.bf16 %v2147, %v2264
        %v2372 = vmax.bf16 %v2148, %v2274
        %v2373 = vmax.bf16 %v2149, %v2288
        %v2374 = vmax.bf16 %v2150, %v2298
        %v2375 = vmax.bf16 %v2151, %v2312
        %v2376 = vmax.bf16 %v2152, %v2322
        %v2377 = vmax.bf16 %v2153, %v2336
        %v2378 = vmax.bf16 %v2154, %v2346
        %s2379 = scalar_lea.vmem %s545, 192 [#allocation2]
        %v2380 = vld [vmem:[%s2379] sm:$0xf]
        %v2381 = vld [vmem:[%s2379 + $0x4] sm:$0xf]
        %v2382 = vld [vmem:[%s2379 + $0x8] sm:$0xf]
        %v2383 = vld [vmem:[%s2379 + $0xc] sm:$0xf]
        %v2384 = vld [vmem:[%s2379 + $0x10] sm:$0xf]
        %v2385 = vld [vmem:[%s2379 + $0x14] sm:$0xf]
        %v2386 = vld [vmem:[%s2379 + $0x18] sm:$0xf]
        %v2387 = vld [vmem:[%s2379 + $0x1c] sm:$0xf]
        %v2388 = vld [vmem:[%s2379 + $0x20] sm:$0xf]
        %v2389 = vld [vmem:[%s2379 + $0x24] sm:$0xf]
        %v2390 = vld [vmem:[%s2379 + $0x28] sm:$0xf]
        %v2391 = vld [vmem:[%s2379 + $0x2c] sm:$0xf]
        %v2392 = vld [vmem:[%s2379 + $0x30] sm:$0xf]
        %v2393 = vld [vmem:[%s2379 + $0x34] sm:$0xf]
        %v2394 = vld [vmem:[%s2379 + $0x38] sm:$0xf]
        %v2395 = vld [vmem:[%s2379 + $0x3c] sm:$0xf]
        %v2396 = vld [vmem:[%s2379 + $0x40] sm:$0xf]
        %v2397 = vld [vmem:[%s2379 + $0x44] sm:$0xf]
        %v2398 = vld [vmem:[%s2379 + $0x48] sm:$0xf]
        %v2399 = vld [vmem:[%s2379 + $0x4c] sm:$0xf]
        %v2400 = vld [vmem:[%s2379 + $0x50] sm:$0xf]
        %v2401 = vld [vmem:[%s2379 + $0x54] sm:$0xf]
        %v2402 = vld [vmem:[%s2379 + $0x58] sm:$0xf]
        %v2403 = vld [vmem:[%s2379 + $0x5c] sm:$0xf]
        %vm2404 = vcmp.gt.bf16.partialorder %v2380, 4020432802
        %vm2405 = vcmp.gt.bf16.partialorder %v2381, 4020432802
        %vm2406 = vcmp.gt.bf16.partialorder %v2382, 4020432802
        %vm2407 = vcmp.gt.bf16.partialorder %v2383, 4020432802
        %vm2408 = vcmp.gt.bf16.partialorder %v2384, 4020432802
        %vm2409 = vcmp.gt.bf16.partialorder %v2385, 4020432802
        %vm2410 = vcmp.gt.bf16.partialorder %v2386, 4020432802
        %vm2411 = vcmp.gt.bf16.partialorder %v2387, 4020432802
        %vm2412 = vcmp.gt.bf16.partialorder %v2388, 4020432802
        %vm2413 = vcmp.gt.bf16.partialorder %v2389, 4020432802
        %vm2414 = vcmp.gt.bf16.partialorder %v2390, 4020432802
        %vm2415 = vcmp.gt.bf16.partialorder %v2391, 4020432802
        %vm2416 = vcmp.gt.bf16.partialorder %v2392, 4020432802
        %vm2417 = vcmp.gt.bf16.partialorder %v2393, 4020432802
        %vm2418 = vcmp.gt.bf16.partialorder %v2394, 4020432802
        %vm2419 = vcmp.gt.bf16.partialorder %v2395, 4020432802
        %vm2420 = vcmp.gt.bf16.partialorder %v2396, 4020432802
        %vm2421 = vcmp.gt.bf16.partialorder %v2397, 4020432802
        %vm2422 = vcmp.gt.bf16.partialorder %v2398, 4020432802
        %vm2423 = vcmp.gt.bf16.partialorder %v2399, 4020432802
        %vm2424 = vcmp.gt.bf16.partialorder %v2400, 4020432802
        %vm2425 = vcmp.gt.bf16.partialorder %v2401, 4020432802
        %vm2426 = vcmp.gt.bf16.partialorder %v2402, 4020432802
        %vm2427 = vcmp.gt.bf16.partialorder %v2403, 4020432802
        %v2428 = vsel %vm2404, %v2380, 0
        %v2429 = vsel %vm2405, %v2381, 0
        %v2430 = vsel %vm2406, %v2382, 0
        %v2431 = vsel %vm2407, %v2383, 0
        %v2432 = vsel %vm2408, %v2384, 0
        %v2433 = vsel %vm2409, %v2385, 0
        %v2434 = vsel %vm2410, %v2386, 0
        %v2435 = vsel %vm2411, %v2387, 0
        %v2436 = vsel %vm2412, %v2388, 0
        %v2437 = vsel %vm2413, %v2389, 0
        %v2438 = vsel %vm2414, %v2390, 0
        %v2439 = vsel %vm2415, %v2391, 0
        %v2440 = vsel %vm2416, %v2392, 0
        %v2441 = vsel %vm2417, %v2393, 0
        %v2442 = vsel %vm2418, %v2394, 0
        %v2443 = vsel %vm2419, %v2395, 0
        %v2444 = vsel %vm2420, %v2396, 0
        %v2445 = vsel %vm2421, %v2397, 0
        %v2446 = vsel %vm2422, %v2398, 0
        %v2447 = vsel %vm2423, %v2399, 0
        %v2448 = vsel %vm2424, %v2400, 0
        %v2449 = vsel %vm2425, %v2401, 0
        %v2450 = vsel %vm2426, %v2402, 0
        %v2451 = vsel %vm2427, %v2403, 0
        %s2452 = scalar_lea.vmem %s1, 128
        %v2453 = vld [vmem:[%s2452] sm:$0xf]
        %v2454 = vld [vmem:[%s2452 + $0x4] sm:$0xf]
        %v2455 = vld [vmem:[%s2452 + $0x8] sm:$0xf]
        %v2456 = vld [vmem:[%s2452 + $0xc] sm:$0xf]
        %v2457 = vld [vmem:[%s2452 + $0x10] sm:$0xf]
        %v2458 = vld [vmem:[%s2452 + $0x14] sm:$0xf]
        %v2459 = vld [vmem:[%s2452 + $0x18] sm:$0xf]
        %v2460 = vld [vmem:[%s2452 + $0x1c] sm:$0xf]
        %v2485 = vunpack.c.l.b16 %v2428
        %v2486 = vunpack.c.l.b16 %v2429
        %v2487 = vunpack.c.l.b16 %v2430
        %v2488 = vunpack.c.l.b16 %v2431
        %v2489 = vunpack.c.l.b16 %v2432
        %v2490 = vunpack.c.l.b16 %v2433
        %v2491 = vunpack.c.l.b16 %v2434
        %v2492 = vunpack.c.l.b16 %v2435
        %v2493 = vunpack.c.l.b16 %v2436
        %v2494 = vunpack.c.l.b16 %v2437
        %v2495 = vunpack.c.l.b16 %v2438
        %v2496 = vunpack.c.l.b16 %v2439
        %v2497 = vunpack.c.l.b16 %v2440
        %v2498 = vunpack.c.l.b16 %v2441
        %v2499 = vunpack.c.l.b16 %v2442
        %v2500 = vunpack.c.l.b16 %v2443
        %v2501 = vunpack.c.l.b16 %v2444
        %v2502 = vunpack.c.l.b16 %v2445
        %v2503 = vunpack.c.l.b16 %v2446
        %v2504 = vunpack.c.l.b16 %v2447
        %v2505 = vunpack.c.l.b16 %v2448
        %v2506 = vunpack.c.l.b16 %v2449
        %v2507 = vunpack.c.l.b16 %v2450
        %v2508 = vunpack.c.l.b16 %v2451
        %v2509 = vpack.c.b16 %v2486, %v2485
        %v2510 = vpack.c.b16 %v2488, %v2487
        %v2511 = vpack.c.b16 %v2490, %v2489
        %v2512 = vpack.c.b16 %v2492, %v2491
        %v2513 = vpack.c.b16 %v2494, %v2493
        %v2514 = vpack.c.b16 %v2496, %v2495
        %v2515 = vpack.c.b16 %v2498, %v2497
        %v2516 = vpack.c.b16 %v2500, %v2499
        %v2517 = vpack.c.b16 %v2502, %v2501
        %v2518 = vpack.c.b16 %v2504, %v2503
        %v2519 = vpack.c.b16 %v2506, %v2505
        %v2520 = vpack.c.b16 %v2508, %v2507
        %v2529 = vunpack.c.l.b16 %v2453
        %v2530 = vunpack.c.l.b16 %v2454
        %v2531 = vunpack.c.l.b16 %v2455
        %v2532 = vunpack.c.l.b16 %v2456
        %v2533 = vunpack.c.l.b16 %v2457
        %v2534 = vunpack.c.l.b16 %v2458
        %v2535 = vunpack.c.l.b16 %v2459
        %v2536 = vunpack.c.l.b16 %v2460
        %v2537 = vpack.c.b16 %v2530, %v2529
        %v2538 = vpack.c.b16 %v2532, %v2531
        %v2539 = vpack.c.b16 %v2534, %v2533
        %v2540 = vpack.c.b16 %v2536, %v2535
        %v2546 = vsel %vm738, %v2509, 0
        %v2549 = vsel %vm738, %v2510, 0
        %v2552 = vsel %vm738, %v2511, 0
        %v2555 = vsel %vm738, %v2512, 0
        %v2558 = vsel %vm738, %v2513, 0
        %v2561 = vsel %vm738, %v2514, 0
        %v2564 = vsel %vm738, %v2515, 0
        %v2567 = vsel %vm738, %v2516, 0
        %v2570 = vsel %vm738, %v2517, 0
        %v2573 = vsel %vm738, %v2518, 0
        %v2576 = vsel %vm738, %v2519, 0
        %v2579 = vsel %vm738, %v2520, 0
        %2581 = vmatprep.subr.bf16.mxu0 0
        %2582 = vmatpush1.bf16.msra.mxu0 0
        %2583 = vmatprep.subr.bf16.mxu0 0
        %2584 = vmatpush1.bf16.msra.mxu0 0
        %2585 = vmatprep.subr.bf16.mxu0 0
        %2586 = vmatpush1.bf16.msra.mxu0 0
        %2587 = vmatprep.subr.bf16.mxu0 0
        %2588 = vmatpush1.bf16.msra.mxu0 0
        %2589 = vmatprep.subr.bf16.mxu0 0
        %2590 = vmatpush1.bf16.msra.mxu0 %v2540
        %2591 = vmatprep.subr.bf16.mxu0 0
        %2592 = vmatpush1.bf16.msra.mxu0 %v2539
        %2593 = vmatprep.subr.bf16.mxu0 0
        %2594 = vmatpush1.bf16.msra.mxu0 %v2538
        %2595 = vmatprep.subr.bf16.mxu0 0
        %2596 = vmatpush1.bf16.msra.mxu0 %v2537
        %2597 = vmatprep.subr.bf16.mxu0 0
        %2598 = vmatpush2.bf16.msra.mxu0 0
        %2599 = vmatprep.subr.bf16.mxu0 0
        %2600 = vmatpush2.bf16.msra.mxu0 0
        %2601 = vmatprep.subr.bf16.mxu0 0
        %2602 = vmatpush2.bf16.msra.mxu0 0
        %2603 = vmatprep.subr.bf16.mxu0 0
        %2604 = vmatpush2.bf16.msra.mxu0 0
        %2605 = vmatprep.subr.bf16.mxu0 0
        %2606 = vmatpush2.bf16.msra.mxu0 0
        %2607 = vmatprep.subr.bf16.mxu0 0
        %2608 = vmatpush2.bf16.msra.mxu0 0
        %2609 = vmatprep.subr.bf16.mxu0 0
        %2610 = vmatpush2.bf16.msra.mxu0 0
        %2611 = vmatprep.subr.bf16.mxu0 0
        %2612 = vmatpush2.bf16.msra.mxu0 0
        %2613 = vmatprep.mubr.bf16.mxu0 0
        %2614 = vmatmul.mubr.bf16.gmra.mxu0 %v2546
        %v2615 = vpop.f32.mrf.mxu0
        %v2616 = vadd.f32 0.0, %v2615
        %v2617 = vpop.f32.mrf.mxu0
        %v2618 = vpop.f32.mrf.mxu0
        %v2619 = vadd.f32 0.0, %v2618
        %v2620 = vpop.f32.mrf.mxu0
        %2621 = vmatprep.mubr.bf16.mxu0 0
        %2622 = vmatmul.mubr.bf16.gmra.mxu0 %v2549
        %v2623 = vpop.f32.mrf.mxu0
        %v2624 = vpop.f32.mrf.mxu0
        %v2625 = vpop.f32.mrf.mxu0
        %v2626 = vadd.f32 0.0, %v2625
        %v2627 = vpop.f32.mrf.mxu0
        %2628 = vmatprep.mubr.bf16.mxu0 0
        %2629 = vmatmul.mubr.bf16.gmra.mxu0 %v2552
        %v2630 = vpop.f32.mrf.mxu0
        %v2631 = vadd.f32 0.0, %v2630
        %v2632 = vpop.f32.mrf.mxu0
        %v2633 = vpop.f32.mrf.mxu0
        %v2634 = vpop.f32.mrf.mxu0
        %2635 = vmatprep.mubr.bf16.mxu0 0
        %2636 = vmatmul.mubr.bf16.gmra.mxu0 %v2555
        %v2637 = vpop.f32.mrf.mxu0
        %v2638 = vadd.f32 0.0, %v2637
        %v2639 = vpop.f32.mrf.mxu0
        %v2640 = vpop.f32.mrf.mxu0
        %v2641 = vadd.f32 0.0, %v2640
        %v2642 = vpop.f32.mrf.mxu0
        %2643 = vmatprep.mubr.bf16.mxu0 0
        %2644 = vmatmul.mubr.bf16.gmra.mxu0 %v2558
        %v2645 = vpop.f32.mrf.mxu0
        %v2646 = vpop.f32.mrf.mxu0
        %v2647 = vpop.f32.mrf.mxu0
        %v2648 = vadd.f32 0.0, %v2647
        %v2649 = vpop.f32.mrf.mxu0
        %2650 = vmatprep.mubr.bf16.mxu0 0
        %2651 = vmatmul.mubr.bf16.gmra.mxu0 %v2561
        %v2652 = vpop.f32.mrf.mxu0
        %v2653 = vadd.f32 0.0, %v2652
        %v2654 = vpop.f32.mrf.mxu0
        %v2655 = vpop.f32.mrf.mxu0
        %v2656 = vpop.f32.mrf.mxu0
        %2657 = vmatprep.mubr.bf16.mxu0 0
        %2658 = vmatmul.mubr.bf16.gmra.mxu0 %v2564
        %v2659 = vpop.f32.mrf.mxu0
        %v2660 = vadd.f32 0.0, %v2659
        %v2661 = vpop.f32.mrf.mxu0
        %v2662 = vpop.f32.mrf.mxu0
        %v2663 = vadd.f32 0.0, %v2662
        %v2664 = vpop.f32.mrf.mxu0
        %2665 = vmatprep.mubr.bf16.mxu0 0
        %2666 = vmatmul.mubr.bf16.gmra.mxu0 %v2567
        %v2667 = vpop.f32.mrf.mxu0
        %v2668 = vpop.f32.mrf.mxu0
        %v2669 = vpop.f32.mrf.mxu0
        %v2670 = vadd.f32 0.0, %v2669
        %v2671 = vpop.f32.mrf.mxu0
        %2672 = vmatprep.mubr.bf16.mxu0 0
        %2673 = vmatmul.mubr.bf16.gmra.mxu0 %v2570
        %v2674 = vpop.f32.mrf.mxu0
        %v2675 = vadd.f32 0.0, %v2674
        %v2676 = vpop.f32.mrf.mxu0
        %v2677 = vpop.f32.mrf.mxu0
        %v2678 = vpop.f32.mrf.mxu0
        %2679 = vmatprep.mubr.bf16.mxu0 0
        %2680 = vmatmul.mubr.bf16.gmra.mxu0 %v2573
        %v2681 = vpop.f32.mrf.mxu0
        %v2682 = vadd.f32 0.0, %v2681
        %v2683 = vpop.f32.mrf.mxu0
        %v2684 = vpop.f32.mrf.mxu0
        %v2685 = vadd.f32 0.0, %v2684
        %v2686 = vpop.f32.mrf.mxu0
        %2687 = vmatprep.mubr.bf16.mxu0 0
        %2688 = vmatmul.mubr.bf16.gmra.mxu0 %v2576
        %v2689 = vpop.f32.mrf.mxu0
        %v2690 = vpop.f32.mrf.mxu0
        %v2691 = vpop.f32.mrf.mxu0
        %v2692 = vadd.f32 0.0, %v2691
        %v2693 = vpop.f32.mrf.mxu0
        %2694 = vmatprep.mubr.bf16.mxu0 0
        %2695 = vmatmul.mubr.bf16.gmra.mxu0 %v2579
        %v2696 = vpop.f32.mrf.mxu0
        %v2697 = vadd.f32 0.0, %v2696
        %v2698 = vpop.f32.mrf.mxu0
        %v2699 = vpop.f32.mrf.mxu0
        %v2700 = vpop.f32.mrf.mxu0
        %2701 = vdwg.mxu0
        %v2702 = vadd.f32 %v2043, %v2616
        %v2703 = vadd.f32 %v2044, %v2619
        %v2704 = vadd.f32 %v2045, %v2626
        %v2705 = vadd.f32 %v2046, %v2631
        %v2706 = vadd.f32 %v2047, %v2638
        %v2707 = vadd.f32 %v2048, %v2641
        %v2708 = vadd.f32 %v2049, %v2648
        %v2709 = vadd.f32 %v2050, %v2653
        %v2710 = vadd.f32 %v2051, %v2660
        %v2711 = vadd.f32 %v2052, %v2663
        %v2712 = vadd.f32 %v2053, %v2670
        %v2713 = vadd.f32 %v2054, %v2675
        %v2714 = vadd.f32 %v2055, %v2682
        %v2715 = vadd.f32 %v2056, %v2685
        %v2716 = vadd.f32 %v2057, %v2692
        %v2717 = vadd.f32 %v2058, %v2697
        %s2718 = scalar_lea.vmem %s1, 160
        %v2719 = vld [vmem:[%s2718] sm:$0xf]
        %v2720 = vld [vmem:[%s2718 + $0x4] sm:$0xf]
        %v2721 = vld [vmem:[%s2718 + $0x8] sm:$0xf]
        %v2722 = vld [vmem:[%s2718 + $0xc] sm:$0xf]
        %v2723 = vld [vmem:[%s2718 + $0x10] sm:$0xf]
        %v2724 = vld [vmem:[%s2718 + $0x14] sm:$0xf]
        %v2725 = vld [vmem:[%s2718 + $0x18] sm:$0xf]
        %v2726 = vld [vmem:[%s2718 + $0x1c] sm:$0xf]
        %v2735 = vunpack.c.l.b16 %v2719
        %v2736 = vunpack.c.l.b16 %v2720
        %v2737 = vunpack.c.l.b16 %v2721
        %v2738 = vunpack.c.l.b16 %v2722
        %v2739 = vunpack.c.l.b16 %v2723
        %v2740 = vunpack.c.l.b16 %v2724
        %v2741 = vunpack.c.l.b16 %v2725
        %v2742 = vunpack.c.l.b16 %v2726
        %v2743 = vpack.c.b16 %v2736, %v2735
        %v2744 = vpack.c.b16 %v2738, %v2737
        %v2745 = vpack.c.b16 %v2740, %v2739
        %v2746 = vpack.c.b16 %v2742, %v2741
        %2751 = vmatprep.subr.bf16.mxu0 0
        %2752 = vmatpush1.bf16.msra.mxu0 0
        %2753 = vmatprep.subr.bf16.mxu0 0
        %2754 = vmatpush1.bf16.msra.mxu0 0
        %2755 = vmatprep.subr.bf16.mxu0 0
        %2756 = vmatpush1.bf16.msra.mxu0 0
        %2757 = vmatprep.subr.bf16.mxu0 0
        %2758 = vmatpush1.bf16.msra.mxu0 0
        %2759 = vmatprep.subr.bf16.mxu0 0
        %2760 = vmatpush1.bf16.msra.mxu0 %v2746
        %2761 = vmatprep.subr.bf16.mxu0 0
        %2762 = vmatpush1.bf16.msra.mxu0 %v2745
        %2763 = vmatprep.subr.bf16.mxu0 0
        %2764 = vmatpush1.bf16.msra.mxu0 %v2744
        %2765 = vmatprep.subr.bf16.mxu0 0
        %2766 = vmatpush1.bf16.msra.mxu0 %v2743
        %2767 = vmatprep.subr.bf16.mxu0 0
        %2768 = vmatpush2.bf16.msra.mxu0 0
        %2769 = vmatprep.subr.bf16.mxu0 0
        %2770 = vmatpush2.bf16.msra.mxu0 0
        %2771 = vmatprep.subr.bf16.mxu0 0
        %2772 = vmatpush2.bf16.msra.mxu0 0
        %2773 = vmatprep.subr.bf16.mxu0 0
        %2774 = vmatpush2.bf16.msra.mxu0 0
        %2775 = vmatprep.subr.bf16.mxu0 0
        %2776 = vmatpush2.bf16.msra.mxu0 0
        %2777 = vmatprep.subr.bf16.mxu0 0
        %2778 = vmatpush2.bf16.msra.mxu0 0
        %2779 = vmatprep.subr.bf16.mxu0 0
        %2780 = vmatpush2.bf16.msra.mxu0 0
        %2781 = vmatprep.subr.bf16.mxu0 0
        %2782 = vmatpush2.bf16.msra.mxu0 0
        %2783 = vmatprep.mubr.bf16.mxu0 0
        %2784 = vmatmul.mubr.bf16.gmra.mxu0 %v2546
        %v2785 = vpop.f32.mrf.mxu0
        %v2786 = vadd.f32 0.0, %v2785
        %v2787 = vpop.f32.mrf.mxu0
        %v2788 = vpop.f32.mrf.mxu0
        %v2789 = vadd.f32 0.0, %v2788
        %v2790 = vpop.f32.mrf.mxu0
        %2791 = vmatprep.mubr.bf16.mxu0 0
        %2792 = vmatmul.mubr.bf16.gmra.mxu0 %v2549
        %v2793 = vpop.f32.mrf.mxu0
        %v2794 = vadd.f32 0.0, %v2793
        %v2795 = vpop.f32.mrf.mxu0
        %v2796 = vpop.f32.mrf.mxu0
        %v2797 = vadd.f32 0.0, %v2796
        %v2798 = vpop.f32.mrf.mxu0
        %2799 = vmatprep.mubr.bf16.mxu0 0
        %2800 = vmatmul.mubr.bf16.gmra.mxu0 %v2552
        %v2801 = vpop.f32.mrf.mxu0
        %v2802 = vadd.f32 0.0, %v2801
        %v2803 = vpop.f32.mrf.mxu0
        %v2804 = vpop.f32.mrf.mxu0
        %v2805 = vadd.f32 0.0, %v2804
        %v2806 = vpop.f32.mrf.mxu0
        %2807 = vmatprep.mubr.bf16.mxu0 0
        %2808 = vmatmul.mubr.bf16.gmra.mxu0 %v2555
        %v2809 = vpop.f32.mrf.mxu0
        %v2810 = vadd.f32 0.0, %v2809
        %v2811 = vpop.f32.mrf.mxu0
        %v2812 = vpop.f32.mrf.mxu0
        %v2813 = vadd.f32 0.0, %v2812
        %v2814 = vpop.f32.mrf.mxu0
        %2815 = vmatprep.mubr.bf16.mxu0 0
        %2816 = vmatmul.mubr.bf16.gmra.mxu0 %v2558
        %v2817 = vpop.f32.mrf.mxu0
        %v2818 = vadd.f32 0.0, %v2817
        %v2819 = vpop.f32.mrf.mxu0
        %v2820 = vpop.f32.mrf.mxu0
        %v2821 = vadd.f32 0.0, %v2820
        %v2822 = vpop.f32.mrf.mxu0
        %2823 = vmatprep.mubr.bf16.mxu0 0
        %2824 = vmatmul.mubr.bf16.gmra.mxu0 %v2561
        %v2825 = vpop.f32.mrf.mxu0
        %v2826 = vadd.f32 0.0, %v2825
        %v2827 = vpop.f32.mrf.mxu0
        %v2828 = vpop.f32.mrf.mxu0
        %v2829 = vadd.f32 0.0, %v2828
        %v2830 = vpop.f32.mrf.mxu0
        %2831 = vmatprep.mubr.bf16.mxu0 0
        %2832 = vmatmul.mubr.bf16.gmra.mxu0 %v2564
        %v2833 = vpop.f32.mrf.mxu0
        %v2834 = vadd.f32 0.0, %v2833
        %v2835 = vpop.f32.mrf.mxu0
        %v2836 = vpop.f32.mrf.mxu0
        %v2837 = vadd.f32 0.0, %v2836
        %v2838 = vpop.f32.mrf.mxu0
        %2839 = vmatprep.mubr.bf16.mxu0 0
        %2840 = vmatmul.mubr.bf16.gmra.mxu0 %v2567
        %v2841 = vpop.f32.mrf.mxu0
        %v2842 = vadd.f32 0.0, %v2841
        %v2843 = vpop.f32.mrf.mxu0
        %v2844 = vpop.f32.mrf.mxu0
        %v2845 = vadd.f32 0.0, %v2844
        %v2846 = vpop.f32.mrf.mxu0
        %2847 = vmatprep.mubr.bf16.mxu0 0
        %2848 = vmatmul.mubr.bf16.gmra.mxu0 %v2570
        %v2849 = vpop.f32.mrf.mxu0
        %v2850 = vadd.f32 0.0, %v2849
        %v2851 = vpop.f32.mrf.mxu0
        %v2852 = vpop.f32.mrf.mxu0
        %v2853 = vadd.f32 0.0, %v2852
        %v2854 = vpop.f32.mrf.mxu0
        %2855 = vmatprep.mubr.bf16.mxu0 0
        %2856 = vmatmul.mubr.bf16.gmra.mxu0 %v2573
        %v2857 = vpop.f32.mrf.mxu0
        %v2858 = vadd.f32 0.0, %v2857
        %v2859 = vpop.f32.mrf.mxu0
        %v2860 = vpop.f32.mrf.mxu0
        %v2861 = vadd.f32 0.0, %v2860
        %v2862 = vpop.f32.mrf.mxu0
        %2863 = vmatprep.mubr.bf16.mxu0 0
        %2864 = vmatmul.mubr.bf16.gmra.mxu0 %v2576
        %v2865 = vpop.f32.mrf.mxu0
        %v2866 = vadd.f32 0.0, %v2865
        %v2867 = vpop.f32.mrf.mxu0
        %v2868 = vpop.f32.mrf.mxu0
        %v2869 = vadd.f32 0.0, %v2868
        %v2870 = vpop.f32.mrf.mxu0
        %2871 = vmatprep.mubr.bf16.mxu0 0
        %2872 = vmatmul.mubr.bf16.gmra.mxu0 %v2579
        %v2873 = vpop.f32.mrf.mxu0
        %v2874 = vadd.f32 0.0, %v2873
        %v2875 = vpop.f32.mrf.mxu0
        %v2876 = vpop.f32.mrf.mxu0
        %v2877 = vadd.f32 0.0, %v2876
        %v2878 = vpop.f32.mrf.mxu0
        %2879 = vdwg.mxu0
        %v2904 = vrot.slane %v2786, 1
        %v2905 = vrot.slane %v2789, 1
        %v2906 = vsel %vm1082, %v2904, %v2905
        %v2907 = vrot.slane %v2794, 1
        %v2908 = vsel %vm1082, %v2905, %v2907
        %v2909 = vrot.slane %v2797, 1
        %v2910 = vrot.slane %v2802, 1
        %v2911 = vsel %vm1082, %v2909, %v2910
        %v2912 = vrot.slane %v2805, 1
        %v2913 = vsel %vm1082, %v2910, %v2912
        %v2914 = vrot.slane %v2810, 1
        %v2915 = vrot.slane %v2813, 1
        %v2916 = vsel %vm1082, %v2914, %v2915
        %v2917 = vrot.slane %v2818, 1
        %v2918 = vsel %vm1082, %v2915, %v2917
        %v2919 = vrot.slane %v2821, 1
        %v2920 = vrot.slane %v2826, 1
        %v2921 = vsel %vm1082, %v2919, %v2920
        %v2922 = vrot.slane %v2829, 1
        %v2923 = vsel %vm1082, %v2920, %v2922
        %v2924 = vrot.slane %v2834, 1
        %v2925 = vrot.slane %v2837, 1
        %v2926 = vsel %vm1082, %v2924, %v2925
        %v2927 = vrot.slane %v2842, 1
        %v2928 = vsel %vm1082, %v2925, %v2927
        %v2929 = vrot.slane %v2845, 1
        %v2930 = vrot.slane %v2850, 1
        %v2931 = vsel %vm1082, %v2929, %v2930
        %v2932 = vrot.slane %v2853, 1
        %v2933 = vsel %vm1082, %v2930, %v2932
        %v2934 = vrot.slane %v2858, 1
        %v2935 = vrot.slane %v2861, 1
        %v2936 = vsel %vm1082, %v2934, %v2935
        %v2937 = vrot.slane %v2866, 1
        %v2938 = vsel %vm1082, %v2935, %v2937
        %v2939 = vrot.slane %v2869, 1
        %v2940 = vrot.slane %v2874, 1
        %v2941 = vsel %vm1082, %v2939, %v2940
        %v2942 = vrot.slane %v2877, 1
        %v2943 = vsel %vm1082, %v2940, %v2942
        %v2960 = vadd.f32 %v2702, %v2906
        %v2961 = vadd.f32 %v2703, %v2908
        %v2962 = vadd.f32 %v2704, %v2911
        %v2963 = vadd.f32 %v2705, %v2913
        %v2964 = vadd.f32 %v2706, %v2916
        %v2965 = vadd.f32 %v2707, %v2918
        %v2966 = vadd.f32 %v2708, %v2921
        %v2967 = vadd.f32 %v2709, %v2923
        %v2968 = vadd.f32 %v2710, %v2926
        %v2969 = vadd.f32 %v2711, %v2928
        %v2970 = vadd.f32 %v2712, %v2931
        %v2971 = vadd.f32 %v2713, %v2933
        %v2972 = vadd.f32 %v2714, %v2936
        %v2973 = vadd.f32 %v2715, %v2938
        %v2974 = vadd.f32 %v2716, %v2941
        %v2975 = vadd.f32 %v2717, %v2943
        %2992 = vrot.lane.b32.xlu0 %v2380, 96
        %v2993 = vpop.permute.xlu0 %2992
        %2994 = vrot.lane.b32.xlu0 %v2381, 96
        %v2995 = vpop.permute.xlu0 %2994
        %2996 = vrot.lane.b32.xlu0 %v2383, 96
        %v2997 = vpop.permute.xlu0 %2996
        %2998 = vrot.lane.b32.xlu0 %v2384, 96
        %v2999 = vpop.permute.xlu0 %2998
        %3000 = vrot.lane.b32.xlu0 %v2386, 96
        %v3001 = vpop.permute.xlu0 %3000
        %3002 = vrot.lane.b32.xlu0 %v2387, 96
        %v3003 = vpop.permute.xlu0 %3002
        %3004 = vrot.lane.b32.xlu0 %v2389, 96
        %v3005 = vpop.permute.xlu0 %3004
        %3006 = vrot.lane.b32.xlu0 %v2390, 96
        %v3007 = vpop.permute.xlu0 %3006
        %3008 = vrot.lane.b32.xlu0 %v2392, 96
        %v3009 = vpop.permute.xlu0 %3008
        %3010 = vrot.lane.b32.xlu0 %v2393, 96
        %v3011 = vpop.permute.xlu0 %3010
        %3012 = vrot.lane.b32.xlu0 %v2395, 96
        %v3013 = vpop.permute.xlu0 %3012
        %3014 = vrot.lane.b32.xlu0 %v2396, 96
        %v3015 = vpop.permute.xlu0 %3014
        %3016 = vrot.lane.b32.xlu0 %v2398, 96
        %v3017 = vpop.permute.xlu0 %3016
        %3018 = vrot.lane.b32.xlu0 %v2399, 96
        %v3019 = vpop.permute.xlu0 %3018
        %3020 = vrot.lane.b32.xlu0 %v2401, 96
        %v3021 = vpop.permute.xlu0 %3020
        %3022 = vrot.lane.b32.xlu0 %v2402, 96
        %v3023 = vpop.permute.xlu0 %3022
        %v3040 = vmax.bf16 %v2380, %v2993
        %v3041 = vmax.bf16 %v2381, %v2995
        %v3042 = vmax.bf16 %v2383, %v2997
        %v3043 = vmax.bf16 %v2384, %v2999
        %v3044 = vmax.bf16 %v2386, %v3001
        %v3045 = vmax.bf16 %v2387, %v3003
        %v3046 = vmax.bf16 %v2389, %v3005
        %v3047 = vmax.bf16 %v2390, %v3007
        %v3048 = vmax.bf16 %v2392, %v3009
        %v3049 = vmax.bf16 %v2393, %v3011
        %v3050 = vmax.bf16 %v2395, %v3013
        %v3051 = vmax.bf16 %v2396, %v3015
        %v3052 = vmax.bf16 %v2398, %v3017
        %v3053 = vmax.bf16 %v2399, %v3019
        %v3054 = vmax.bf16 %v2401, %v3021
        %v3055 = vmax.bf16 %v2402, %v3023
        %v3056 = vmax.bf16 %v2363, %v3040
        %v3057 = vmax.bf16 %v2364, %v3041
        %v3058 = vmax.bf16 %v2365, %v3042
        %v3059 = vmax.bf16 %v2366, %v3043
        %v3060 = vmax.bf16 %v2367, %v3044
        %v3061 = vmax.bf16 %v2368, %v3045
        %v3062 = vmax.bf16 %v2369, %v3046
        %v3063 = vmax.bf16 %v2370, %v3047
        %v3064 = vmax.bf16 %v2371, %v3048
        %v3065 = vmax.bf16 %v2372, %v3049
        %v3066 = vmax.bf16 %v2373, %v3050
        %v3067 = vmax.bf16 %v2374, %v3051
        %v3068 = vmax.bf16 %v2375, %v3052
        %v3069 = vmax.bf16 %v2376, %v3053
        %v3070 = vmax.bf16 %v2377, %v3054
        %v3071 = vmax.bf16 %v2378, %v3055
        %v3073 = vshrl.u32 %v2380, 16
        %v3075 = vrot.slane %v3073, 4
        %v3076 = vshll.u32 %v2380, 16
        %v3078 = vrot.slane %v3076, 5
        %v3079 = vor.u32 %v3075, %v3078
        %v3080 = vrot.slane %v3079, 4
        %v3082 = vshll.u32 %v2381, 16
        %v3084 = vrot.slane %v3082, 5
        %v3085 = vsel %vm1237, %v3080, %v3084
        %v3086 = vshrl.u32 %v2381, 16
        %v3088 = vrot.slane %v3086, 4
        %v3089 = vor.u32 %v3088, %v3084
        %v3090 = vrot.slane %v3089, 4
        %v3092 = vshll.u32 %v2382, 16
        %v3094 = vrot.slane %v3092, 5
        %v3095 = vsel %vm1237, %v3090, %v3094
        %v3097 = vshrl.u32 %v2383, 16
        %v3099 = vrot.slane %v3097, 4
        %v3100 = vshll.u32 %v2383, 16
        %v3102 = vrot.slane %v3100, 5
        %v3103 = vor.u32 %v3099, %v3102
        %v3104 = vrot.slane %v3103, 4
        %v3106 = vshll.u32 %v2384, 16
        %v3108 = vrot.slane %v3106, 5
        %v3109 = vsel %vm1237, %v3104, %v3108
        %v3110 = vshrl.u32 %v2384, 16
        %v3112 = vrot.slane %v3110, 4
        %v3113 = vor.u32 %v3112, %v3108
        %v3114 = vrot.slane %v3113, 4
        %v3116 = vshll.u32 %v2385, 16
        %v3118 = vrot.slane %v3116, 5
        %v3119 = vsel %vm1237, %v3114, %v3118
        %v3121 = vshrl.u32 %v2386, 16
        %v3123 = vrot.slane %v3121, 4
        %v3124 = vshll.u32 %v2386, 16
        %v3126 = vrot.slane %v3124, 5
        %v3127 = vor.u32 %v3123, %v3126
        %v3128 = vrot.slane %v3127, 4
        %v3130 = vshll.u32 %v2387, 16
        %v3132 = vrot.slane %v3130, 5
        %v3133 = vsel %vm1237, %v3128, %v3132
        %v3134 = vshrl.u32 %v2387, 16
        %v3136 = vrot.slane %v3134, 4
        %v3137 = vor.u32 %v3136, %v3132
        %v3138 = vrot.slane %v3137, 4
        %v3140 = vshll.u32 %v2388, 16
        %v3142 = vrot.slane %v3140, 5
        %v3143 = vsel %vm1237, %v3138, %v3142
        %v3145 = vshrl.u32 %v2389, 16
        %v3147 = vrot.slane %v3145, 4
        %v3148 = vshll.u32 %v2389, 16
        %v3150 = vrot.slane %v3148, 5
        %v3151 = vor.u32 %v3147, %v3150
        %v3152 = vrot.slane %v3151, 4
        %v3154 = vshll.u32 %v2390, 16
        %v3156 = vrot.slane %v3154, 5
        %v3157 = vsel %vm1237, %v3152, %v3156
        %v3158 = vshrl.u32 %v2390, 16
        %v3160 = vrot.slane %v3158, 4
        %v3161 = vor.u32 %v3160, %v3156
        %v3162 = vrot.slane %v3161, 4
        %v3164 = vshll.u32 %v2391, 16
        %v3166 = vrot.slane %v3164, 5
        %v3167 = vsel %vm1237, %v3162, %v3166
        %v3169 = vshrl.u32 %v2392, 16
        %v3171 = vrot.slane %v3169, 4
        %v3172 = vshll.u32 %v2392, 16
        %v3174 = vrot.slane %v3172, 5
        %v3175 = vor.u32 %v3171, %v3174
        %v3176 = vrot.slane %v3175, 4
        %v3178 = vshll.u32 %v2393, 16
        %v3180 = vrot.slane %v3178, 5
        %v3181 = vsel %vm1237, %v3176, %v3180
        %v3182 = vshrl.u32 %v2393, 16
        %v3184 = vrot.slane %v3182, 4
        %v3185 = vor.u32 %v3184, %v3180
        %v3186 = vrot.slane %v3185, 4
        %v3188 = vshll.u32 %v2394, 16
        %v3190 = vrot.slane %v3188, 5
        %v3191 = vsel %vm1237, %v3186, %v3190
        %v3193 = vshrl.u32 %v2395, 16
        %v3195 = vrot.slane %v3193, 4
        %v3196 = vshll.u32 %v2395, 16
        %v3198 = vrot.slane %v3196, 5
        %v3199 = vor.u32 %v3195, %v3198
        %v3200 = vrot.slane %v3199, 4
        %v3202 = vshll.u32 %v2396, 16
        %v3204 = vrot.slane %v3202, 5
        %v3205 = vsel %vm1237, %v3200, %v3204
        %v3206 = vshrl.u32 %v2396, 16
        %v3208 = vrot.slane %v3206, 4
        %v3209 = vor.u32 %v3208, %v3204
        %v3210 = vrot.slane %v3209, 4
        %v3212 = vshll.u32 %v2397, 16
        %v3214 = vrot.slane %v3212, 5
        %v3215 = vsel %vm1237, %v3210, %v3214
        %v3217 = vshrl.u32 %v2398, 16
        %v3219 = vrot.slane %v3217, 4
        %v3220 = vshll.u32 %v2398, 16
        %v3222 = vrot.slane %v3220, 5
        %v3223 = vor.u32 %v3219, %v3222
        %v3224 = vrot.slane %v3223, 4
        %v3226 = vshll.u32 %v2399, 16
        %v3228 = vrot.slane %v3226, 5
        %v3229 = vsel %vm1237, %v3224, %v3228
        %v3230 = vshrl.u32 %v2399, 16
        %v3232 = vrot.slane %v3230, 4
        %v3233 = vor.u32 %v3232, %v3228
        %v3234 = vrot.slane %v3233, 4
        %v3236 = vshll.u32 %v2400, 16
        %v3238 = vrot.slane %v3236, 5
        %v3239 = vsel %vm1237, %v3234, %v3238
        %v3241 = vshrl.u32 %v2401, 16
        %v3243 = vrot.slane %v3241, 4
        %v3244 = vshll.u32 %v2401, 16
        %v3246 = vrot.slane %v3244, 5
        %v3247 = vor.u32 %v3243, %v3246
        %v3248 = vrot.slane %v3247, 4
        %v3250 = vshll.u32 %v2402, 16
        %v3252 = vrot.slane %v3250, 5
        %v3253 = vsel %vm1237, %v3248, %v3252
        %v3254 = vshrl.u32 %v2402, 16
        %v3256 = vrot.slane %v3254, 4
        %v3257 = vor.u32 %v3256, %v3252
        %v3258 = vrot.slane %v3257, 4
        %v3260 = vshll.u32 %v2403, 16
        %v3262 = vrot.slane %v3260, 5
        %v3263 = vsel %vm1237, %v3258, %v3262
        %v3280 = vmax.bf16 %v3056, %v3085
        %v3281 = vmax.bf16 %v3057, %v3095
        %v3282 = vmax.bf16 %v3058, %v3109
        %v3283 = vmax.bf16 %v3059, %v3119
        %v3284 = vmax.bf16 %v3060, %v3133
        %v3285 = vmax.bf16 %v3061, %v3143
        %v3286 = vmax.bf16 %v3062, %v3157
        %v3287 = vmax.bf16 %v3063, %v3167
        %v3288 = vmax.bf16 %v3064, %v3181
        %v3289 = vmax.bf16 %v3065, %v3191
        %v3290 = vmax.bf16 %v3066, %v3205
        %v3291 = vmax.bf16 %v3067, %v3215
        %v3292 = vmax.bf16 %v3068, %v3229
        %v3293 = vmax.bf16 %v3069, %v3239
        %v3294 = vmax.bf16 %v3070, %v3253
        %v3295 = vmax.bf16 %v3071, %v3263
        %v3296 = vld [vmem:[%s2] sm:$0x1]
        %v3298 = vlaneseq
        %v3299 = vshrl.u32 %v3298, 7
        %v3300 = vsub.s32 0, %v3299
        %v3301 = vrot.slane %v3296, %v3300
        %v3303 = vadd.f32 %v2960, %v3301
        %v3304 = vadd.f32 %v2961, %v3301
        %v3305 = vadd.f32 %v2962, %v3301
        %v3306 = vadd.f32 %v2963, %v3301
        %v3307 = vadd.f32 %v2964, %v3301
        %v3308 = vadd.f32 %v2965, %v3301
        %v3309 = vadd.f32 %v2966, %v3301
        %v3310 = vadd.f32 %v2967, %v3301
        %v3311 = vadd.f32 %v2968, %v3301
        %v3312 = vadd.f32 %v2969, %v3301
        %v3313 = vadd.f32 %v2970, %v3301
        %v3314 = vadd.f32 %v2971, %v3301
        %v3315 = vadd.f32 %v2972, %v3301
        %v3316 = vadd.f32 %v2973, %v3301
        %v3317 = vadd.f32 %v2974, %v3301
        %v3318 = vadd.f32 %v2975, %v3301
        %vm3319 = vcmask 261120
        %v3320 = vsel %vm3319, %v3303, 0.0
        %3321 = vadd.xlane.f32.xlu0 %v3320
        %v3322 = vpop.xlane.xlu0 %3321
        %v3323 = vsel %vm3319, %v3304, 0.0
        %3324 = vadd.xlane.f32.xlu0 %v3323
        %v3325 = vpop.xlane.xlu0 %3324
        %v3326 = vsel %vm3319, %v3305, 0.0
        %3327 = vadd.xlane.f32.xlu0 %v3326
        %v3328 = vpop.xlane.xlu0 %3327
        %v3329 = vsel %vm3319, %v3306, 0.0
        %3330 = vadd.xlane.f32.xlu0 %v3329
        %v3331 = vpop.xlane.xlu0 %3330
        %v3332 = vsel %vm3319, %v3307, 0.0
        %3333 = vadd.xlane.f32.xlu0 %v3332
        %v3334 = vpop.xlane.xlu0 %3333
        %v3335 = vsel %vm3319, %v3308, 0.0
        %3336 = vadd.xlane.f32.xlu0 %v3335
        %v3337 = vpop.xlane.xlu0 %3336
        %v3338 = vsel %vm3319, %v3309, 0.0
        %3339 = vadd.xlane.f32.xlu0 %v3338
        %v3340 = vpop.xlane.xlu0 %3339
        %v3341 = vsel %vm3319, %v3310, 0.0
        %3342 = vadd.xlane.f32.xlu0 %v3341
        %v3343 = vpop.xlane.xlu0 %3342
        %v3344 = vsel %vm3319, %v3311, 0.0
        %3345 = vadd.xlane.f32.xlu0 %v3344
        %v3346 = vpop.xlane.xlu0 %3345
        %v3347 = vsel %vm3319, %v3312, 0.0
        %3348 = vadd.xlane.f32.xlu0 %v3347
        %v3349 = vpop.xlane.xlu0 %3348
        %v3350 = vsel %vm3319, %v3313, 0.0
        %3351 = vadd.xlane.f32.xlu0 %v3350
        %v3352 = vpop.xlane.xlu0 %3351
        %v3353 = vsel %vm3319, %v3314, 0.0
        %3354 = vadd.xlane.f32.xlu0 %v3353
        %v3355 = vpop.xlane.xlu0 %3354
        %v3356 = vsel %vm3319, %v3315, 0.0
        %3357 = vadd.xlane.f32.xlu0 %v3356
        %v3358 = vpop.xlane.xlu0 %3357
        %v3359 = vsel %vm3319, %v3316, 0.0
        %3360 = vadd.xlane.f32.xlu0 %v3359
        %v3361 = vpop.xlane.xlu0 %3360
        %v3362 = vsel %vm3319, %v3317, 0.0
        %3363 = vadd.xlane.f32.xlu0 %v3362
        %v3364 = vpop.xlane.xlu0 %3363
        %v3365 = vsel %vm3319, %v3318, 0.0
        %3366 = vadd.xlane.f32.xlu0 %v3365
        %v3367 = vpop.xlane.xlu0 %3366
        %v3368 = vmul.f32 %v3322, 0.03125
        %v3369 = vmul.f32 %v3325, 0.03125
        %v3370 = vmul.f32 %v3328, 0.03125
        %v3371 = vmul.f32 %v3331, 0.03125
        %v3372 = vmul.f32 %v3334, 0.03125
        %v3373 = vmul.f32 %v3337, 0.03125
        %v3374 = vmul.f32 %v3340, 0.03125
        %v3375 = vmul.f32 %v3343, 0.03125
        %v3376 = vmul.f32 %v3346, 0.03125
        %v3377 = vmul.f32 %v3349, 0.03125
        %v3378 = vmul.f32 %v3352, 0.03125
        %v3379 = vmul.f32 %v3355, 0.03125
        %v3380 = vmul.f32 %v3358, 0.03125
        %v3381 = vmul.f32 %v3361, 0.03125
        %v3382 = vmul.f32 %v3364, 0.03125
        %v3383 = vmul.f32 %v3367, 0.03125
        %v3384 = vsub.f32 %v3303, %v3368
        %v3385 = vsub.f32 %v3304, %v3369
        %v3386 = vsub.f32 %v3305, %v3370
        %v3387 = vsub.f32 %v3306, %v3371
        %v3388 = vsub.f32 %v3307, %v3372
        %v3389 = vsub.f32 %v3308, %v3373
        %v3390 = vsub.f32 %v3309, %v3374
        %v3391 = vsub.f32 %v3310, %v3375
        %v3392 = vsub.f32 %v3311, %v3376
        %v3393 = vsub.f32 %v3312, %v3377
        %v3394 = vsub.f32 %v3313, %v3378
        %v3395 = vsub.f32 %v3314, %v3379
        %v3396 = vsub.f32 %v3315, %v3380
        %v3397 = vsub.f32 %v3316, %v3381
        %v3398 = vsub.f32 %v3317, %v3382
        %v3399 = vsub.f32 %v3318, %v3383
        %v3400 = vmul.f32 %v3384, %v3384
        %v3401 = vmul.f32 %v3385, %v3385
        %v3402 = vmul.f32 %v3386, %v3386
        %v3403 = vmul.f32 %v3387, %v3387
        %v3404 = vmul.f32 %v3388, %v3388
        %v3405 = vmul.f32 %v3389, %v3389
        %v3406 = vmul.f32 %v3390, %v3390
        %v3407 = vmul.f32 %v3391, %v3391
        %v3408 = vmul.f32 %v3392, %v3392
        %v3409 = vmul.f32 %v3393, %v3393
        %v3410 = vmul.f32 %v3394, %v3394
        %v3411 = vmul.f32 %v3395, %v3395
        %v3412 = vmul.f32 %v3396, %v3396
        %v3413 = vmul.f32 %v3397, %v3397
        %v3414 = vmul.f32 %v3398, %v3398
        %v3415 = vmul.f32 %v3399, %v3399
        %v3416 = vsel %vm3319, %v3400, 0.0
        %3417 = vadd.xlane.f32.xlu0 %v3416
        %v3418 = vpop.xlane.xlu0 %3417
        %v3419 = vsel %vm3319, %v3401, 0.0
        %3420 = vadd.xlane.f32.xlu0 %v3419
        %v3421 = vpop.xlane.xlu0 %3420
        %v3422 = vsel %vm3319, %v3402, 0.0
        %3423 = vadd.xlane.f32.xlu0 %v3422
        %v3424 = vpop.xlane.xlu0 %3423
        %v3425 = vsel %vm3319, %v3403, 0.0
        %3426 = vadd.xlane.f32.xlu0 %v3425
        %v3427 = vpop.xlane.xlu0 %3426
        %v3428 = vsel %vm3319, %v3404, 0.0
        %3429 = vadd.xlane.f32.xlu0 %v3428
        %v3430 = vpop.xlane.xlu0 %3429
        %v3431 = vsel %vm3319, %v3405, 0.0
        %3432 = vadd.xlane.f32.xlu0 %v3431
        %v3433 = vpop.xlane.xlu0 %3432
        %v3434 = vsel %vm3319, %v3406, 0.0
        %3435 = vadd.xlane.f32.xlu0 %v3434
        %v3436 = vpop.xlane.xlu0 %3435
        %v3437 = vsel %vm3319, %v3407, 0.0
        %3438 = vadd.xlane.f32.xlu0 %v3437
        %v3439 = vpop.xlane.xlu0 %3438
        %v3440 = vsel %vm3319, %v3408, 0.0
        %3441 = vadd.xlane.f32.xlu0 %v3440
        %v3442 = vpop.xlane.xlu0 %3441
        %v3443 = vsel %vm3319, %v3409, 0.0
        %3444 = vadd.xlane.f32.xlu0 %v3443
        %v3445 = vpop.xlane.xlu0 %3444
        %v3446 = vsel %vm3319, %v3410, 0.0
        %3447 = vadd.xlane.f32.xlu0 %v3446
        %v3448 = vpop.xlane.xlu0 %3447
        %v3449 = vsel %vm3319, %v3411, 0.0
        %3450 = vadd.xlane.f32.xlu0 %v3449
        %v3451 = vpop.xlane.xlu0 %3450
        %v3452 = vsel %vm3319, %v3412, 0.0
        %3453 = vadd.xlane.f32.xlu0 %v3452
        %v3454 = vpop.xlane.xlu0 %3453
        %v3455 = vsel %vm3319, %v3413, 0.0
        %3456 = vadd.xlane.f32.xlu0 %v3455
        %v3457 = vpop.xlane.xlu0 %3456
        %v3458 = vsel %vm3319, %v3414, 0.0
        %3459 = vadd.xlane.f32.xlu0 %v3458
        %v3460 = vpop.xlane.xlu0 %3459
        %v3461 = vsel %vm3319, %v3415, 0.0
        %3462 = vadd.xlane.f32.xlu0 %v3461
        %v3463 = vpop.xlane.xlu0 %3462
        %v3464 = vmul.f32 %v3418, 0.03125
        %v3465 = vmul.f32 %v3421, 0.03125
        %v3466 = vmul.f32 %v3424, 0.03125
        %v3467 = vmul.f32 %v3427, 0.03125
        %v3468 = vmul.f32 %v3430, 0.03125
        %v3469 = vmul.f32 %v3433, 0.03125
        %v3470 = vmul.f32 %v3436, 0.03125
        %v3471 = vmul.f32 %v3439, 0.03125
        %v3472 = vmul.f32 %v3442, 0.03125
        %v3473 = vmul.f32 %v3445, 0.03125
        %v3474 = vmul.f32 %v3448, 0.03125
        %v3475 = vmul.f32 %v3451, 0.03125
        %v3476 = vmul.f32 %v3454, 0.03125
        %v3477 = vmul.f32 %v3457, 0.03125
        %v3478 = vmul.f32 %v3460, 0.03125
        %v3479 = vmul.f32 %v3463, 0.03125
        %v3480 = vadd.f32 %v3464, 1e-06
        %v3481 = vadd.f32 %v3465, 1e-06
        %v3482 = vadd.f32 %v3466, 1e-06
        %v3483 = vadd.f32 %v3467, 1e-06
        %v3484 = vadd.f32 %v3468, 1e-06
        %v3485 = vadd.f32 %v3469, 1e-06
        %v3486 = vadd.f32 %v3470, 1e-06
        %v3487 = vadd.f32 %v3471, 1e-06
        %v3488 = vadd.f32 %v3472, 1e-06
        %v3489 = vadd.f32 %v3473, 1e-06
        %v3490 = vadd.f32 %v3474, 1e-06
        %v3491 = vadd.f32 %v3475, 1e-06
        %v3492 = vadd.f32 %v3476, 1e-06
        %v3493 = vadd.f32 %v3477, 1e-06
        %v3494 = vadd.f32 %v3478, 1e-06
        %v3495 = vadd.f32 %v3479, 1e-06
        %v3496 = vrsqrt.pop %v3480
        %v3497 = vrsqrt.pop %v3481
        %v3498 = vrsqrt.pop %v3482
        %v3499 = vrsqrt.pop %v3483
        %v3500 = vrsqrt.pop %v3484
        %v3501 = vrsqrt.pop %v3485
        %v3502 = vrsqrt.pop %v3486
        %v3503 = vrsqrt.pop %v3487
        %v3504 = vrsqrt.pop %v3488
        %v3505 = vrsqrt.pop %v3489
        %v3506 = vrsqrt.pop %v3490
        %v3507 = vrsqrt.pop %v3491
        %v3508 = vrsqrt.pop %v3492
        %v3509 = vrsqrt.pop %v3493
        %v3510 = vrsqrt.pop %v3494
        %v3511 = vrsqrt.pop %v3495
        %v3512 = vmul.f32 %v3384, %v3496
        %v3513 = vmul.f32 %v3385, %v3497
        %v3514 = vmul.f32 %v3386, %v3498
        %v3515 = vmul.f32 %v3387, %v3499
        %v3516 = vmul.f32 %v3388, %v3500
        %v3517 = vmul.f32 %v3389, %v3501
        %v3518 = vmul.f32 %v3390, %v3502
        %v3519 = vmul.f32 %v3391, %v3503
        %v3520 = vmul.f32 %v3392, %v3504
        %v3521 = vmul.f32 %v3393, %v3505
        %v3522 = vmul.f32 %v3394, %v3506
        %v3523 = vmul.f32 %v3395, %v3507
        %v3524 = vmul.f32 %v3396, %v3508
        %v3525 = vmul.f32 %v3397, %v3509
        %v3526 = vmul.f32 %v3398, %v3510
        %v3527 = vmul.f32 %v3399, %v3511
        %v3528 = vld [vmem:[%s3] sm:$0x1]
        %v3530 = vlaneseq
        %v3531 = vshrl.u32 %v3530, 7
        %v3532 = vsub.s32 0, %v3531
        %v3533 = vrot.slane %v3528, %v3532
        %v3535 = vmul.f32 %v3512, %v3533
        %v3536 = vmul.f32 %v3513, %v3533
        %v3537 = vmul.f32 %v3514, %v3533
        %v3538 = vmul.f32 %v3515, %v3533
        %v3539 = vmul.f32 %v3516, %v3533
        %v3540 = vmul.f32 %v3517, %v3533
        %v3541 = vmul.f32 %v3518, %v3533
        %v3542 = vmul.f32 %v3519, %v3533
        %v3543 = vmul.f32 %v3520, %v3533
        %v3544 = vmul.f32 %v3521, %v3533
        %v3545 = vmul.f32 %v3522, %v3533
        %v3546 = vmul.f32 %v3523, %v3533
        %v3547 = vmul.f32 %v3524, %v3533
        %v3548 = vmul.f32 %v3525, %v3533
        %v3549 = vmul.f32 %v3526, %v3533
        %v3550 = vmul.f32 %v3527, %v3533
        %v3551 = vld [vmem:[%s4] sm:$0x1]
        %v3553 = vlaneseq
        %v3554 = vshrl.u32 %v3553, 7
        %v3555 = vsub.s32 0, %v3554
        %v3556 = vrot.slane %v3551, %v3555
        %v3558 = vadd.f32 %v3535, %v3556
        %v3559 = vadd.f32 %v3536, %v3556
        %v3560 = vadd.f32 %v3537, %v3556
        %v3561 = vadd.f32 %v3538, %v3556
        %v3562 = vadd.f32 %v3539, %v3556
        %v3563 = vadd.f32 %v3540, %v3556
        %v3564 = vadd.f32 %v3541, %v3556
        %v3565 = vadd.f32 %v3542, %v3556
        %v3566 = vadd.f32 %v3543, %v3556
        %v3567 = vadd.f32 %v3544, %v3556
        %v3568 = vadd.f32 %v3545, %v3556
        %v3569 = vadd.f32 %v3546, %v3556
        %v3570 = vadd.f32 %v3547, %v3556
        %v3571 = vadd.f32 %v3548, %v3556
        %v3572 = vadd.f32 %v3549, %v3556
        %v3573 = vadd.f32 %v3550, %v3556
        %v3574 = vunpack.c.l.bf16 %v3280
        %v3575 = vunpack.c.l.bf16 %v3281
        %v3576 = vunpack.c.l.bf16 %v3282
        %v3577 = vunpack.c.l.bf16 %v3283
        %v3578 = vunpack.c.l.bf16 %v3284
        %v3579 = vunpack.c.l.bf16 %v3285
        %v3580 = vunpack.c.l.bf16 %v3286
        %v3581 = vunpack.c.l.bf16 %v3287
        %v3582 = vunpack.c.l.bf16 %v3288
        %v3583 = vunpack.c.l.bf16 %v3289
        %v3584 = vunpack.c.l.bf16 %v3290
        %v3585 = vunpack.c.l.bf16 %v3291
        %v3586 = vunpack.c.l.bf16 %v3292
        %v3587 = vunpack.c.l.bf16 %v3293
        %v3588 = vunpack.c.l.bf16 %v3294
        %v3589 = vunpack.c.l.bf16 %v3295
        %v3590 = vadd.f32 %v3574, %v3558
        %v3591 = vadd.f32 %v3575, %v3559
        %v3592 = vadd.f32 %v3576, %v3560
        %v3593 = vadd.f32 %v3577, %v3561
        %v3594 = vadd.f32 %v3578, %v3562
        %v3595 = vadd.f32 %v3579, %v3563
        %v3596 = vadd.f32 %v3580, %v3564
        %v3597 = vadd.f32 %v3581, %v3565
        %v3598 = vadd.f32 %v3582, %v3566
        %v3599 = vadd.f32 %v3583, %v3567
        %v3600 = vadd.f32 %v3584, %v3568
        %v3601 = vadd.f32 %v3585, %v3569
        %v3602 = vadd.f32 %v3586, %v3570
        %v3603 = vadd.f32 %v3587, %v3571
        %v3604 = vadd.f32 %v3588, %v3572
        %v3605 = vadd.f32 %v3589, %v3573
        %3606 = vst.msk [vmem:[%s569] sm:$0xff] %vm3319, %v3590
        %3607 = vst.msk [vmem:[%s569 + $0x8] sm:$0xff] %vm3319, %v3591
        %3608 = vst.msk [vmem:[%s569 + $0x10] sm:$0xff] %vm3319, %v3592
        %3609 = vst.msk [vmem:[%s569 + $0x18] sm:$0xff] %vm3319, %v3593
        %3610 = vst.msk [vmem:[%s569 + $0x20] sm:$0xff] %vm3319, %v3594
        %3611 = vst.msk [vmem:[%s569 + $0x28] sm:$0xff] %vm3319, %v3595
        %3612 = vst.msk [vmem:[%s569 + $0x30] sm:$0xff] %vm3319, %v3596
        %3613 = vst.msk [vmem:[%s569 + $0x38] sm:$0xff] %vm3319, %v3597
        %3614 = vst.msk [vmem:[%s569 + $0x40] sm:$0xff] %vm3319, %v3598
        %3615 = vst.msk [vmem:[%s569 + $0x48] sm:$0xff] %vm3319, %v3599
        %3616 = vst.msk [vmem:[%s569 + $0x50] sm:$0xff] %vm3319, %v3600
        %3617 = vst.msk [vmem:[%s569 + $0x58] sm:$0xff] %vm3319, %v3601
        %3618 = vst.msk [vmem:[%s569 + $0x60] sm:$0xff] %vm3319, %v3602
        %3619 = vst.msk [vmem:[%s569 + $0x68] sm:$0xff] %vm3319, %v3603
        %3620 = vst.msk [vmem:[%s569 + $0x70] sm:$0xff] %vm3319, %v3604
        %3621 = vst.msk [vmem:[%s569 + $0x78] sm:$0xff] %vm3319, %v3605
        %s3622 = sand.u32 %s153, 1
        %s3623 = scalar_lea.sflag [#allocation4], %s3622
        %s3624 = sand.u32 %s153, 1
        %s3625 = smul.addr %s3624, 128
        %s3626 = scalar_lea.vmem [#allocation3], %s3625
        // Predicated region
        $region82: #{residual_max_conv.1} parent=76 // pred_check
          %p3627 = pneg %p163
        $region83: #{residual_max_conv.1} parent=76 // pred_check_branch
          %3629 = sbr.rel (%p3627) target = $region85
        $region84: #{residual_max_conv.1} parent=76 // pred_region
          %s3630 = smul.u32 8, %s24
          %s3632 = ssub.s32 2048, 2048
          %3633 = vsyncadd %s3623, %s3632
          %s3634 = smul.addr %s3630, 2
          %s3635 = smul.addr %s23, 32
          %s3636 = sadd.s32 %s3634, %s3635
          %s3637 = smul.addr %s3636, 128
          %s3638 = scalar_lea.hbm %s5, %s3637
          %s3639 = sshll.u32 %s3626, 4
          %s3640 = int_to_ptr.vmem [resolvable:$true] %s3639
          %3645 = dma.vmem_to_hbm [thread:$0]  %s3640, 2048, %s3638, %s3623, 128, 128, 8
        $region85: #{residual_max_conv.1} parent=76 // pred_fallthru
          _
      $region77: #{residual_max_conv.1} parent=5 // pred_fallthru
        _
      %p3646 = scmp.le.s32.totalorder 2, %s14
      // Predicated region
      $region86: #{residual_max_conv.1} parent=5 // pred_check
        %p3647 = pneg %p3646
      $region87: #{residual_max_conv.1} parent=5 // pred_check_branch
        %3649 = sbr.rel (%p3647) target = $region89
      $region88: #{residual_max_conv.1} parent=5 // pred_region
        %s3650 = ssub.s32 %s14, 2
        // Predicated region
        $region90: #{residual_max_conv.1} parent=88 // pred_check
          %p3651 = pneg %p169
        $region91: #{residual_max_conv.1} parent=88 // pred_check_branch
          %3653 = sbr.rel (%p3651) target = $region93
        $region92: #{residual_max_conv.1} parent=88 // pred_region
          %s3654 = sand.u32 %s154, 1
          %s3655 = scalar_lea.sflag [#allocation4], %s3654
          %s3656 = sand.u32 %s154, 1
          %s3657 = smul.addr %s3656, 128
          %s3658 = scalar_lea.vmem [#allocation3], %s3657
          %3659 = dma.done %s3655, 2048
        $region93: #{residual_max_conv.1} parent=88 // pred_fallthru
          _
      $region89: #{residual_max_conv.1} parent=5 // pred_fallthru
        _
    $region6: #{residual_max_conv.1} parent=1 // loop_footer
      %s18 = sadd.s32 1, %s14
    $region7: #{residual_max_conv.1} parent=1 // loop_footer_branch
      %13 = sbr.rel target = $region3
    $region8: #{residual_max_conv.1} parent=1 // loop_exit
      _
    %3660 = vsyncpa [#allocation4], 1
    %s3661 = scalar_lea.sflag [#allocation4], 1
    %3662 = vsyncpa %s3661, 1

</llo_original>
